<compile_context>
chip_gen: v6e
topology: v6e:2x2x1
jax: 0.10.0
libtpu: 0.0.40
codegen_flags: <defaults>
</compile_context>

<pallas_src>
import functools

import jax
import jax.numpy as jnp
from jax.experimental import pallas as pl
from jax.experimental.pallas import tpu as pltpu

EPS = 1e-5                       # BatchNorm eps (eval: mean=0, var=1, gamma=1, beta=0)
LANE = 128                       # TPU lane width
VMEM_LIMIT = 48 * 1024 * 1024    # fits v7x (64 MiB) and v5e/v6e (128 MiB)


def _round_up(v, m):
    return (v + m - 1) // m * m


# ---------------------------------------------------------------------------
# Pallas kernels
# ---------------------------------------------------------------------------
def matmul_bn_relu_kernel(x_ref, w_ref, s_ref, b_ref, o_ref, acc_ref):
    """K-tiled MXU matmul with f32 accumulator; BN + ReLU epilogue on last K step."""
    k = pl.program_id(2)

    @pl.when(k == 0)
    def _():
        acc_ref[...] = jnp.zeros_like(acc_ref)

    acc_ref[...] += jnp.dot(x_ref[...], w_ref[...],
                            preferred_element_type=jnp.float32)

    @pl.when(k == pl.num_programs(2) - 1)
    def _():
        o_ref[...] = jnp.maximum(acc_ref[...] * s_ref[...] + b_ref[...],
                                 0.0).astype(o_ref.dtype)


def gap_kernel(x_ref, o_ref, acc_ref, *, inv_hw):
    """Chunked global average pool: accumulate spatial chunk sums, scale at end."""
    j = pl.program_id(1)

    @pl.when(j == 0)
    def _():
        acc_ref[...] = jnp.zeros_like(acc_ref)

    acc_ref[...] += jnp.sum(x_ref[0].astype(jnp.float32), axis=0, keepdims=True)

    @pl.when(j == pl.num_programs(1) - 1)
    def _():
        o_ref[0] = acc_ref[...] * inv_hw


def h_upsample_kernel(ah_ref, f5_ref, o_ref):
    """Row (H) pass of the separable align_corners bilinear upsample (column-tiled)."""
    o_ref[0] = jnp.dot(ah_ref[...], f5_ref[0],
                       preferred_element_type=jnp.float32).astype(o_ref.dtype)


def w_upsample_fuse_kernel(aw_ref, t_ref, fb_ref, ff_ref, o_ref, *, th):
    """Column (W) pass of the upsample fused with fe = ff + ff*fb + up(f5)*fb."""
    aw = aw_ref[...]
    for h in range(th):                      # static unroll over the row tile
        up = jnp.dot(aw, t_ref[0, h], preferred_element_type=jnp.float32)
        fbh = fb_ref[0, h]
        ffh = ff_ref[0, h]
        o_ref[0, h] = ffh + ffh * fbh + up * fbh


# ---------------------------------------------------------------------------
# Pallas wrappers
# ---------------------------------------------------------------------------
def fused_matmul_bn_relu(x, w, bn_scale, bn_shift, *, out_dtype=jnp.bfloat16):
    """relu((x @ w) * bn_scale + bn_shift).

    x: (M, K), w: (K, C).  Returns the padded (Mp, Cp) result (Cp = C rounded to a
    lane multiple, so stores inside the kernel are lane-dense); caller slices.
    """
    M, K = x.shape
    Kw, C = w.shape
    assert K == Kw
    Cp = _round_up(C, LANE)
    tn = 256 if Cp % 256 == 0 else LANE              # MXU-friendly N tile
    tk = min(512, _round_up(K, 256))                 # K tile, multiple of 256
    Kp = _round_up(K, tk)
    tm = min(256, _round_up(M, 8))                   # adaptive row tile (small-M calls)
    Mp = _round_up(M, tm)

    xp = jnp.pad(x.astype(jnp.bfloat16), ((0, Mp - M), (0, Kp - K)))
    wp = jnp.pad(w.astype(jnp.bfloat16), ((0, Kp - K), (0, Cp - C)))
    sp = jnp.pad(bn_scale.astype(jnp.float32), (0, Cp - C)).reshape(1, Cp)
    bp = jnp.pad(bn_shift.astype(jnp.float32), (0, Cp - C)).reshape(1, Cp)

    out = pl.pallas_call(
        matmul_bn_relu_kernel,
        out_shape=jax.ShapeDtypeStruct((Mp, Cp), out_dtype),
        grid=(Mp // tm, Cp // tn, Kp // tk),
        in_specs=[
            pl.BlockSpec((tm, tk), lambda i, j, k: (i, k)),
            pl.BlockSpec((tk, tn), lambda i, j, k: (k, j)),
            pl.BlockSpec((1, tn), lambda i, j, k: (0, j)),
            pl.BlockSpec((1, tn), lambda i, j, k: (0, j)),
        ],
        out_specs=pl.BlockSpec((tm, tn), lambda i, j, k: (i, j)),
        scratch_shapes=[pltpu.VMEM((tm, tn), jnp.float32)],
        compiler_params=pltpu.CompilerParams(
            dimension_semantics=("parallel", "parallel", "arbitrary"),
            vmem_limit_bytes=VMEM_LIMIT),
    )(xp, wp, sp, bp)
    return out                                        # (Mp, Cp)


def global_avg_pool(x_nhwc):
    """(N, H, W, C) -> (N, C), chunked spatial reduction."""
    N, H, W, C = x_nhwc.shape
    HW = H * W
    chunk = 512 if HW >= 512 else _round_up(HW, 8)
    HWp = _round_up(HW, chunk)
    x_flat = x_nhwc.reshape(N, HW, C).astype(jnp.bfloat16)
    if HWp != HW:
        x_flat = jnp.pad(x_flat, ((0, 0), (0, HWp - HW), (0, 0)))
    pooled = pl.pallas_call(
        functools.partial(gap_kernel, inv_hw=1.0 / float(HW)),
        out_shape=jax.ShapeDtypeStruct((N, 1, C), jnp.float32),
        grid=(N, HWp // chunk),
        in_specs=[pl.BlockSpec((1, chunk, C), lambda n, j: (n, j, 0))],
        out_specs=pl.BlockSpec((1, 1, C), lambda n, j: (n, 0, 0)),
        scratch_shapes=[pltpu.VMEM((1, C), jnp.float32)],
        compiler_params=pltpu.CompilerParams(
            dimension_semantics=("parallel", "arbitrary"),
            vmem_limit_bytes=VMEM_LIMIT),
    )(x_flat)
    return pooled.reshape(N, C)


def _pick_col_tile(w5, cp, cap_cols=4096):
    """Largest column tile (multiple of the lane-padded channel width cp) that
    divides w5*cp and is <= cap_cols (falls back to cp)."""
    max_tw = max(1, cap_cols // cp)
    for tw in range(min(w5, max_tw), 0, -1):
        if w5 % tw == 0:
            return tw * cp
    return cp


def upsample_and_fuse(f5_nhwc, fb_nhwc, ff_nhwc):
    """Separable bilinear upsample (align_corners=True) of f5 to fb's size,
    fused with fe = ff + ff*fb + up(f5)*fb.  Channel dim must be lane-padded."""
    N, H5, W5, Cp = f5_nhwc.shape
    _, Hb, Wb, Cb = fb_nhwc.shape
    assert Cb == Cp and Cp % LANE == 0

    ah = _interp_matrix(Hb, H5).astype(jnp.bfloat16)          # (Hb, H5)
    aw = _interp_matrix(Wb, W5).astype(jnp.bfloat16)          # (Wb, W5)

    # ---- pass 1: upsample along H:  (N, H5, W5*Cp) -> (N, Hb, W5*Cp)
    cols = W5 * Cp
    tcol = _pick_col_tile(W5, Cp)                             # bounded VMEM per block
    f5_flat = f5_nhwc.reshape(N, H5, cols).astype(jnp.bfloat16)
    t = pl.pallas_call(
        h_upsample_kernel,
        out_shape=jax.ShapeDtypeStruct((N, Hb, cols), jnp.bfloat16),
        grid=(N, cols // tcol),
        in_specs=[
            pl.BlockSpec((Hb, H5), lambda n, c: (0, 0)),
            pl.BlockSpec((1, H5, tcol), lambda n, c: (n, 0, c)),
        ],
        out_specs=pl.BlockSpec((1, Hb, tcol), lambda n, c: (n, 0, c)),
        compiler_params=pltpu.CompilerParams(
            dimension_semantics=("parallel", "parallel"),
            vmem_limit_bytes=VMEM_LIMIT),
    )(ah, f5_flat)
    t = t.reshape(N, Hb, W5, Cp)

    # ---- pass 2: upsample along W + elementwise fuse, tiled over Hb rows
    th = next(d for d in (8, 4, 2, 1) if Hb % d == 0)
    fb32 = fb_nhwc.astype(jnp.float32)
    ff32 = ff_nhwc.astype(jnp.float32)
    out = pl.pallas_call(
        functools.partial(w_upsample_fuse_kernel, th=th),
        out_shape=jax.ShapeDtypeStruct((N, Hb, Wb, Cp), jnp.float32),
        grid=(N, Hb // th),
        in_specs=[
            pl.BlockSpec((Wb, W5), lambda n, h: (0, 0)),
            pl.BlockSpec((1, th, W5, Cp), lambda n, h: (n, h, 0, 0)),
            pl.BlockSpec((1, th, Wb, Cp), lambda n, h: (n, h, 0, 0)),
            pl.BlockSpec((1, th, Wb, Cp), lambda n, h: (n, h, 0, 0)),
        ],
        out_specs=pl.BlockSpec((1, th, Wb, Cp), lambda n, h: (n, h, 0, 0)),
        compiler_params=pltpu.CompilerParams(
            dimension_semantics=("parallel", "parallel"),
            vmem_limit_bytes=VMEM_LIMIT),
    )(aw, t, fb32, ff32)
    return out                                                # (N, Hb, Wb, Cp) f32


# ---------------------------------------------------------------------------
# Glue (im2col, interpolation matrices, parameter init)
# ---------------------------------------------------------------------------
def _im2col_3x3(x_nhwc, dilation):
    """3x3 dilated conv patches, padding=dilation (output spatial size preserved)."""
    N, H, W, C = x_nhwc.shape
    d = dilation
    xp = jnp.pad(x_nhwc, ((0, 0), (d, d), (d, d), (0, 0)))
    cols = []
    for ky in range(3):
        for kx in range(3):
            cols.append(xp[:, ky * d:ky * d + H, kx * d:kx * d + W, :])
    patches = jnp.stack(cols, axis=3)                  # (N, H, W, 9, C)
    return patches.reshape(N * H * W, 9 * C)


def _interp_matrix(out_size, in_size):
    """Row-stochastic bilinear interpolation matrix, align_corners=True."""
    if in_size == 1:
        return jnp.ones((out_size, 1), jnp.float32)
    pos = jnp.arange(out_size, dtype=jnp.float32) * (in_size - 1) / max(out_size - 1, 1)
    i0 = jnp.clip(jnp.floor(pos).astype(jnp.int32), 0, in_size - 2)
    w1 = pos - i0.astype(jnp.float32)
    M = jnp.zeros((out_size, in_size), jnp.float32)
    r = jnp.arange(out_size)
    M = M.at[r, i0].add(1.0 - w1)
    M = M.at[r, i0 + 1].add(w1)
    return M


def conv_bn_relu(x_nhwc, w_oihw, bn_scale, bn_shift, dilation=1, keep_padded=False):
    """Conv(bias=False) + BN(eval) + ReLU as im2col + K-tiled Pallas matmul."""
    N, H, W, C = x_nhwc.shape
    C_out, C_in, kh, kw = w_oihw.shape
    assert C_in == C
    if kh == 1:
        X = x_nhwc.reshape(N * H * W, C)
        Wm = w_oihw[:, :, 0, 0].T                                  # (C_in, C_out)
    else:
        X = _im2col_3x3(x_nhwc.astype(jnp.bfloat16), dilation)     # (N*H*W, 9*C_in)
        Wm = jnp.transpose(w_oihw, (2, 3, 1, 0)).reshape(9 * C_in, C_out)
    y = fused_matmul_bn_relu(X, Wm, bn_scale, bn_shift)            # (Mp, Cp) bf16
    M = N * H * W
    cols = y.shape[1] if keep_padded else C_out
    return y[:M, :cols].reshape(N, H, W, cols)


def init_params(key, f5_in, mul_ch):
    c_out = f5_in // 8
    aspp_out = 5 * c_out
    ks = jax.random.split(key, 6)

    def kaiming(k, shape):  # (C_out, C_in, kh, kw), fan_out mode
        fan_out = shape[0] * shape[2] * shape[3]
        return jax.random.normal(k, shape, jnp.float32) * jnp.sqrt(2.0 / fan_out)

    params = {
        "b0_w": kaiming(ks[0], (c_out, f5_in, 1, 1)),
        "b1_w": kaiming(ks[1], (c_out, f5_in, 3, 3)),
        "b2_w": kaiming(ks[2], (c_out, f5_in, 3, 3)),
        "b3_w": kaiming(ks[3], (c_out, f5_in, 3, 3)),
        "b4_w": kaiming(ks[4], (c_out, f5_in, 1, 1)),
        "f5out_w": kaiming(ks[5], (mul_ch, aspp_out, 3, 3)),
    }
    # BatchNorm (eval): gamma=1, beta=0, running_mean=0, running_var=1
    bn_scale = 1.0 / jnp.sqrt(1.0 + EPS)
    for name, c in [("b0", c_out), ("b1", c_out), ("b2", c_out),
                    ("b3", c_out), ("b4", c_out), ("f5out", mul_ch)]:
        params[name + "_bn_scale"] = jnp.full((c,), bn_scale, jnp.float32)
        params[name + "_bn_shift"] = jnp.zeros((c,), jnp.float32)
    return params


# ---------------------------------------------------------------------------
# BES_Module forward
# ---------------------------------------------------------------------------
def bes_forward(params, f5, fb, ff):
    """f5: (N, f5_in, H5, W5); fb, ff: (N, mul_ch, Hb, Wb) -- NCHW, like PyTorch."""
    x = jnp.transpose(f5, (0, 2, 3, 1)).astype(jnp.bfloat16)     # NHWC activations
    fb_h = jnp.transpose(fb, (0, 2, 3, 1))
    ff_h = jnp.transpose(ff, (0, 2, 3, 1))
    N, H, W, C = x.shape
    mul_ch = fb.shape[1]

    # ASPP branches (bf16 outputs, lane-dense stores inside the kernel)
    feat0 = conv_bn_relu(x, params["b0_w"], params["b0_bn_scale"], params["b0_bn_shift"])
    feat1 = conv_bn_relu(x, params["b1_w"], params["b1_bn_scale"], params["b1_bn_shift"], dilation=12)
    feat2 = conv_bn_relu(x, params["b2_w"], params["b2_bn_scale"], params["b2_bn_shift"], dilation=24)
    feat3 = conv_bn_relu(x, params["b3_w"], params["b3_bn_scale"], params["b3_bn_shift"], dilation=36)

    # ASPP pooling branch: chunked GAP -> 1x1 conv + BN + ReLU -> broadcast to HxW
    pooled = global_avg_pool(x)                                  # (N, C) f32
    wm4 = params["b4_w"][:, :, 0, 0].T                           # (C, c_out)
    c_out = wm4.shape[1]
    p = fused_matmul_bn_relu(pooled, wm4,
                             params["b4_bn_scale"], params["b4_bn_shift"])
    p = p[:N, :c_out]                                            # (N, c_out) bf16
    feat4 = jnp.broadcast_to(p.reshape(N, 1, 1, c_out), (N, H, W, c_out))
    # TODO(synk): fold the spatially-constant feat4 into the f5_out matmul as a
    # per-batch K contribution (needs border-tap masking to match zero padding).

    aspp = jnp.concatenate([feat0, feat1, feat2, feat3, feat4], axis=-1)  # bf16

    # f5_out: 3x3 conv + BN + ReLU; keep lane-padded channels for the fuse stage
    f5o = conv_bn_relu(aspp, params["f5out_w"], params["f5out_bn_scale"],
                       params["f5out_bn_shift"], dilation=1, keep_padded=True)
    Cp_out = f5o.shape[-1]                                       # round_up(mul_ch, 128)

    # separable bilinear upsample (align_corners=True) + guided fusion
    fb_p = jnp.pad(fb_h, ((0, 0), (0, 0), (0, 0), (0, Cp_out - mul_ch)))
    ff_p = jnp.pad(ff_h, ((0, 0), (0, 0), (0, 0), (0, Cp_out - mul_ch)))
    fe = upsample_and_fuse(f5o, fb_p, ff_p)                      # (N, Hb, Wb, Cp) f32
    fe = fe[..., :mul_ch]
    return jnp.transpose(fe, (0, 3, 1, 2))                       # back to NCHW


# ---------------------------------------------------------------------------
if __name__ == "__main__":
    key = jax.random.PRNGKey(0)
    f5_in, mul_ch = 16, 8
    N, H5, W5 = 2, 8, 8
    Hb, Wb = 16, 16

    kp, k1, k2, k3 = jax.random.split(key, 4)
    params = init_params(kp, f5_in, mul_ch)
    f5 = jax.random.normal(k1, (N, f5_in, H5, W5), jnp.float32)
    fb = jax.random.normal(k2, (N, mul_ch, Hb, Wb), jnp.float32)
    ff = jax.random.normal(k3, (N, mul_ch, Hb, Wb), jnp.float32)

    fwd = jax.jit(functools.partial(bes_forward, params))
    out = fwd(f5, fb, ff)
    jax.block_until_ready(out)

    assert out.shape == (N, mul_ch, Hb, Wb), out.shape
    assert bool(jnp.all(jnp.isfinite(out)))
    print("KERNEL_OK")
</pallas_src>

<mosaic_0001>
module attributes {stable_mosaic.version = 11 : i64} {
  func.func private @main(%arg0: i32) attributes {dimension_semantics = [#tpu.dimension_semantics<core_parallel>], iteration_bounds = array<i64: 2>, tpu.core_type = #tpu.core_type<sc_scalar_subcore>, window_params = []} {
    return
  }
}

module attributes {stable_mosaic.version = 11 : i64} {
  func.func private @main(%arg0: i32) attributes {dimension_semantics = [#tpu.dimension_semantics<core_parallel>], iteration_bounds = array<i64: 2>, tpu.core_type = #tpu.core_type<sc_scalar_subcore>, window_params = []} {
    return
  }
}

module attributes {stable_mosaic.version = 11 : i64} {
  func.func @matmul_bn_relu_kernel(%arg0: i32, %arg1: i32, %arg2: i32, %arg3: memref<128x256xbf16, #tpu.memory_space<vmem>>, %arg4: memref<256x128xbf16, #tpu.memory_space<vmem>>, %arg5: memref<1x128xf32, #tpu.memory_space<vmem>>, %arg6: memref<1x128xf32, #tpu.memory_space<vmem>>, %arg7: memref<128x128xbf16, #tpu.memory_space<vmem>>, %arg8: memref<128x128xf32, #tpu.memory_space<vmem>>) attributes {dimension_semantics = [#tpu.dimension_semantics<parallel>, #tpu.dimension_semantics<parallel>, #tpu.dimension_semantics<arbitrary>], iteration_bounds = array<i64: 1, 1, 1>, scalar_prefetch = 0 : i64, scratch_operands = 1 : i64, tpu.core_type = #tpu.core_type<tc>, window_params = [{transform_indices = @transform_0, window_bounds = array<i64: 128, 256>}, {transform_indices = @transform_1, window_bounds = array<i64: 256, 128>}, {transform_indices = @transform_2, window_bounds = array<i64: 1, 128>}, {transform_indices = @transform_3, window_bounds = array<i64: 1, 128>}, {transform_indices = @transform_4, window_bounds = array<i64: 128, 128>}]} {
    %c0_i32 = arith.constant 0 : i32
    %0 = arith.cmpi eq, %arg2, %c0_i32 : i32
    %1 = arith.extui %0 : i1 to i32
    %c0_i32_0 = arith.constant 0 : i32
    %2 = arith.cmpi ne, %1, %c0_i32_0 : i32
    scf.if %2 {
      %cst_10 = arith.constant 0.000000e+00 : f32
      %12 = vector.broadcast %cst_10 : f32 to vector<128x128xf32>
      %c0_11 = arith.constant 0 : index
      %c0_12 = arith.constant 0 : index
      %13 = vector.load %arg8[%c0_11, %c0_12] : memref<128x128xf32, #tpu.memory_space<vmem>>, vector<128x128xf32>
      tpu.vector_store %arg8[%c0_11, %c0_12], %12 {strides = array<i32>} : memref<128x128xf32, #tpu.memory_space<vmem>>, vector<128x128xf32>,
    } else {
    }
    %c0 = arith.constant 0 : index
    %c0_1 = arith.constant 0 : index
    %3 = vector.load %arg8[%c0, %c0_1] : memref<128x128xf32, #tpu.memory_space<vmem>>, vector<128x128xf32>
    %c0_2 = arith.constant 0 : index
    %c0_3 = arith.constant 0 : index
    %4 = vector.load %arg3[%c0_2, %c0_3] : memref<128x256xbf16, #tpu.memory_space<vmem>>, vector<128x256xbf16>
    %c0_4 = arith.constant 0 : index
    %c0_5 = arith.constant 0 : index
    %5 = vector.load %arg4[%c0_4, %c0_5] : memref<256x128xbf16, #tpu.memory_space<vmem>>, vector<256x128xbf16>
    %cst = arith.constant dense<0.000000e+00> : vector<128x128xf32>
    %6 = tpu.matmul %4, %5, %cst {dimension_numbers = #tpu.dot_dimension_numbers<[1], [0], [0], [1], [0, 0, 1, 1], [], []>} : vector<128x256xbf16>, vector<256x128xbf16>, vector<128x128xf32> -> vector<128x128xf32>
    %7 = arith.addf %3, %6 : vector<128x128xf32>
    %c0_6 = arith.constant 0 : index
    %c0_7 = arith.constant 0 : index
    %8 = vector.load %arg8[%c0_6, %c0_7] : memref<128x128xf32, #tpu.memory_space<vmem>>, vector<128x128xf32>
    tpu.vector_store %arg8[%c0_6, %c0_7], %7 {strides = array<i32>} : memref<128x128xf32, #tpu.memory_space<vmem>>, vector<128x128xf32>,
    %c0_i32_8 = arith.constant 0 : i32
    %9 = arith.cmpi eq, %arg2, %c0_i32_8 : i32
    %10 = arith.extui %9 : i1 to i32
    %c0_i32_9 = arith.constant 0 : i32
    %11 = arith.cmpi ne, %10, %c0_i32_9 : i32
    scf.if %11 {
      %c0_10 = arith.constant 0 : index
      %c0_11 = arith.constant 0 : index
      %12 = vector.load %arg8[%c0_10, %c0_11] : memref<128x128xf32, #tpu.memory_space<vmem>>, vector<128x128xf32>
      %c0_12 = arith.constant 0 : index
      %c0_13 = arith.constant 0 : index
      %13 = vector.load %arg5[%c0_12, %c0_13] : memref<1x128xf32, #tpu.memory_space<vmem>>, vector<1x128xf32>
      %14 = vector.broadcast %13 : vector<1x128xf32> to vector<128x128xf32>
      %15 = arith.mulf %12, %14 : vector<128x128xf32>
      %c0_14 = arith.constant 0 : index
      %c0_15 = arith.constant 0 : index
      %16 = vector.load %arg6[%c0_14, %c0_15] : memref<1x128xf32, #tpu.memory_space<vmem>>, vector<1x128xf32>
      %17 = vector.broadcast %16 : vector<1x128xf32> to vector<128x128xf32>
      %18 = arith.addf %15, %17 : vector<128x128xf32>
      %cst_16 = arith.constant 0.000000e+00 : f32
      %19 = vector.broadcast %cst_16 : f32 to vector<128x128xf32>
      %20 = arith.maximumf %18, %19 : vector<128x128xf32>
      %21 = arith.truncf %20 : vector<128x128xf32> to vector<128x128xbf16>
      %c0_17 = arith.constant 0 : index
      %c0_18 = arith.constant 0 : index
      %22 = vector.load %arg7[%c0_17, %c0_18] : memref<128x128xbf16, #tpu.memory_space<vmem>>, vector<128x128xbf16>
      tpu.vector_store %arg7[%c0_17, %c0_18], %21 {strides = array<i32>} : memref<128x128xbf16, #tpu.memory_space<vmem>>, vector<128x128xbf16>,
    } else {
    }
    return
  }
  func.func @transform_0(%arg0: i32, %arg1: i32, %arg2: i32) -> (i32, i32) {
    %c0_i32 = arith.constant 0 : i32
    return %arg0, %arg2 : i32, i32
  }
  func.func @transform_1(%arg0: i32, %arg1: i32, %arg2: i32) -> (i32, i32) {
    %c0_i32 = arith.constant 0 : i32
    return %arg2, %arg1 : i32, i32
  }
  func.func @transform_2(%arg0: i32, %arg1: i32, %arg2: i32) -> (i32, i32) {
    %c0_i32 = arith.constant 0 : i32
    %c0_i32_0 = arith.constant 0 : i32
    return %c0_i32, %arg1 : i32, i32
  }
  func.func @transform_3(%arg0: i32, %arg1: i32, %arg2: i32) -> (i32, i32) {
    %c0_i32 = arith.constant 0 : i32
    %c0_i32_0 = arith.constant 0 : i32
    return %c0_i32, %arg1 : i32, i32
  }
  func.func @transform_4(%arg0: i32, %arg1: i32, %arg2: i32) -> (i32, i32) {
    %c0_i32 = arith.constant 0 : i32
    return %arg0, %arg1 : i32, i32
  }
}

module attributes {stable_mosaic.version = 11 : i64} {
  func.func @gap_kernel(%arg0: i32, %arg1: i32, %arg2: memref<1x64x16xbf16, #tpu.memory_space<vmem>>, %arg3: memref<1x1x16xf32, #tpu.memory_space<vmem>>, %arg4: memref<1x16xf32, #tpu.memory_space<vmem>>) attributes {dimension_semantics = [#tpu.dimension_semantics<parallel>, #tpu.dimension_semantics<arbitrary>], iteration_bounds = array<i64: 2, 1>, scalar_prefetch = 0 : i64, scratch_operands = 1 : i64, tpu.core_type = #tpu.core_type<tc>, window_params = [{transform_indices = @transform_0, window_bounds = array<i64: 1, 64, 16>}, {transform_indices = @transform_1, window_bounds = array<i64: 1, 1, 16>}]} {
    %c0_i32 = arith.constant 0 : i32
    %0 = arith.cmpi eq, %arg1, %c0_i32 : i32
    %1 = arith.extui %0 : i1 to i32
    %c0_i32_0 = arith.constant 0 : i32
    %2 = arith.cmpi ne, %1, %c0_i32_0 : i32
    scf.if %2 {
      %cst_9 = arith.constant 0.000000e+00 : f32
      %14 = vector.broadcast %cst_9 : f32 to vector<1x16xf32>
      %c0_10 = arith.constant 0 : index
      %c0_11 = arith.constant 0 : index
      %15 = vector.load %arg4[%c0_10, %c0_11] : memref<1x16xf32, #tpu.memory_space<vmem>>, vector<1x16xf32>
      tpu.vector_store %arg4[%c0_10, %c0_11], %14 {strides = array<i32>} : memref<1x16xf32, #tpu.memory_space<vmem>>, vector<1x16xf32>,
    } else {
    }
    %c0 = arith.constant 0 : index
    %c0_1 = arith.constant 0 : index
    %3 = vector.load %arg4[%c0, %c0_1] : memref<1x16xf32, #tpu.memory_space<vmem>>, vector<1x16xf32>
    %c0_2 = arith.constant 0 : index
    %c0_3 = arith.constant 0 : index
    %c0_4 = arith.constant 0 : index
    %4 = vector.load %arg2[%c0_2, %c0_3, %c0_4] : memref<1x64x16xbf16, #tpu.memory_space<vmem>>, vector<1x64x16xbf16>
    %5 = vector.shape_cast %4 : vector<1x64x16xbf16> to vector<64x16xbf16>
    %6 = arith.extf %5 : vector<64x16xbf16> to vector<64x16xf32>
    %cst = arith.constant dense<0.000000e+00> : vector<16xf32>
    %7 = vector.multi_reduction <add>, %6, %cst [0] : vector<64x16xf32> to vector<16xf32>
    %8 = vector.shape_cast %7 : vector<16xf32> to vector<1x16xf32>
    %9 = arith.addf %3, %8 : vector<1x16xf32>
    %c0_5 = arith.constant 0 : index
    %c0_6 = arith.constant 0 : index
    %10 = vector.load %arg4[%c0_5, %c0_6] : memref<1x16xf32, #tpu.memory_space<vmem>>, vector<1x16xf32>
    tpu.vector_store %arg4[%c0_5, %c0_6], %9 {strides = array<i32>} : memref<1x16xf32, #tpu.memory_space<vmem>>, vector<1x16xf32>,
    %c0_i32_7 = arith.constant 0 : i32
    %11 = arith.cmpi eq, %arg1, %c0_i32_7 : i32
    %12 = arith.extui %11 : i1 to i32
    %c0_i32_8 = arith.constant 0 : i32
    %13 = arith.cmpi ne, %12, %c0_i32_8 : i32
    scf.if %13 {
      %c0_9 = arith.constant 0 : index
      %c0_10 = arith.constant 0 : index
      %14 = vector.load %arg4[%c0_9, %c0_10] : memref<1x16xf32, #tpu.memory_space<vmem>>, vector<1x16xf32>
      %cst_11 = arith.constant 1.562500e-02 : f32
      %15 = vector.broadcast %cst_11 : f32 to vector<1x16xf32>
      %16 = arith.mulf %14, %15 : vector<1x16xf32>
      %c0_12 = arith.constant 0 : index
      %c0_13 = arith.constant 0 : index
      %c0_14 = arith.constant 0 : index
      %17 = vector.load %arg3[%c0_12, %c0_13, %c0_14] : memref<1x1x16xf32, #tpu.memory_space<vmem>>, vector<1x1x16xf32>
      %18 = vector.shape_cast %17 : vector<1x1x16xf32> to vector<1x16xf32>
      %19 = vector.shape_cast %16 : vector<1x16xf32> to vector<1x1x16xf32>
      tpu.vector_store %arg3[%c0_12, %c0_13, %c0_14], %19 {strides = array<i32>} : memref<1x1x16xf32, #tpu.memory_space<vmem>>, vector<1x1x16xf32>,
    } else {
    }
    return
  }
  func.func @transform_0(%arg0: i32, %arg1: i32) -> (i32, i32, i32) {
    %c0_i32 = arith.constant 0 : i32
    %c0_i32_0 = arith.constant 0 : i32
    return %arg0, %arg1, %c0_i32 : i32, i32, i32
  }
  func.func @transform_1(%arg0: i32, %arg1: i32) -> (i32, i32, i32) {
    %c0_i32 = arith.constant 0 : i32
    %c0_i32_0 = arith.constant 0 : i32
    %c0_i32_1 = arith.constant 0 : i32
    return %arg0, %c0_i32, %c0_i32_0 : i32, i32, i32
  }
}

module attributes {stable_mosaic.version = 11 : i64} {
  func.func @matmul_bn_relu_kernel(%arg0: i32, %arg1: i32, %arg2: i32, %arg3: memref<8x256xbf16, #tpu.memory_space<vmem>>, %arg4: memref<256x128xbf16, #tpu.memory_space<vmem>>, %arg5: memref<1x128xf32, #tpu.memory_space<vmem>>, %arg6: memref<1x128xf32, #tpu.memory_space<vmem>>, %arg7: memref<8x128xbf16, #tpu.memory_space<vmem>>, %arg8: memref<8x128xf32, #tpu.memory_space<vmem>>) attributes {dimension_semantics = [#tpu.dimension_semantics<parallel>, #tpu.dimension_semantics<parallel>, #tpu.dimension_semantics<arbitrary>], iteration_bounds = array<i64: 1, 1, 1>, scalar_prefetch = 0 : i64, scratch_operands = 1 : i64, tpu.core_type = #tpu.core_type<tc>, window_params = [{transform_indices = @transform_0, window_bounds = array<i64: 8, 256>}, {transform_indices = @transform_1, window_bounds = array<i64: 256, 128>}, {transform_indices = @transform_2, window_bounds = array<i64: 1, 128>}, {transform_indices = @transform_3, window_bounds = array<i64: 1, 128>}, {transform_indices = @transform_4, window_bounds = array<i64: 8, 128>}]} {
    %c0_i32 = arith.constant 0 : i32
    %0 = arith.cmpi eq, %arg2, %c0_i32 : i32
    %1 = arith.extui %0 : i1 to i32
    %c0_i32_0 = arith.constant 0 : i32
    %2 = arith.cmpi ne, %1, %c0_i32_0 : i32
    scf.if %2 {
      %cst_10 = arith.constant 0.000000e+00 : f32
      %12 = vector.broadcast %cst_10 : f32 to vector<8x128xf32>
      %c0_11 = arith.constant 0 : index
      %c0_12 = arith.constant 0 : index
      %13 = vector.load %arg8[%c0_11, %c0_12] : memref<8x128xf32, #tpu.memory_space<vmem>>, vector<8x128xf32>
      tpu.vector_store %arg8[%c0_11, %c0_12], %12 {strides = array<i32>} : memref<8x128xf32, #tpu.memory_space<vmem>>, vector<8x128xf32>,
    } else {
    }
    %c0 = arith.constant 0 : index
    %c0_1 = arith.constant 0 : index
    %3 = vector.load %arg8[%c0, %c0_1] : memref<8x128xf32, #tpu.memory_space<vmem>>, vector<8x128xf32>
    %c0_2 = arith.constant 0 : index
    %c0_3 = arith.constant 0 : index
    %4 = vector.load %arg3[%c0_2, %c0_3] : memref<8x256xbf16, #tpu.memory_space<vmem>>, vector<8x256xbf16>
    %c0_4 = arith.constant 0 : index
    %c0_5 = arith.constant 0 : index
    %5 = vector.load %arg4[%c0_4, %c0_5] : memref<256x128xbf16, #tpu.memory_space<vmem>>, vector<256x128xbf16>
    %cst = arith.constant dense<0.000000e+00> : vector<8x128xf32>
    %6 = tpu.matmul %4, %5, %cst {dimension_numbers = #tpu.dot_dimension_numbers<[1], [0], [0], [1], [0, 0, 1, 1], [], []>} : vector<8x256xbf16>, vector<256x128xbf16>, vector<8x128xf32> -> vector<8x128xf32>
    %7 = arith.addf %3, %6 : vector<8x128xf32>
    %c0_6 = arith.constant 0 : index
    %c0_7 = arith.constant 0 : index
    %8 = vector.load %arg8[%c0_6, %c0_7] : memref<8x128xf32, #tpu.memory_space<vmem>>, vector<8x128xf32>
    tpu.vector_store %arg8[%c0_6, %c0_7], %7 {strides = array<i32>} : memref<8x128xf32, #tpu.memory_space<vmem>>, vector<8x128xf32>,
    %c0_i32_8 = arith.constant 0 : i32
    %9 = arith.cmpi eq, %arg2, %c0_i32_8 : i32
    %10 = arith.extui %9 : i1 to i32
    %c0_i32_9 = arith.constant 0 : i32
    %11 = arith.cmpi ne, %10, %c0_i32_9 : i32
    scf.if %11 {
      %c0_10 = arith.constant 0 : index
      %c0_11 = arith.constant 0 : index
      %12 = vector.load %arg8[%c0_10, %c0_11] : memref<8x128xf32, #tpu.memory_space<vmem>>, vector<8x128xf32>
      %c0_12 = arith.constant 0 : index
      %c0_13 = arith.constant 0 : index
      %13 = vector.load %arg5[%c0_12, %c0_13] : memref<1x128xf32, #tpu.memory_space<vmem>>, vector<1x128xf32>
      %14 = vector.broadcast %13 : vector<1x128xf32> to vector<8x128xf32>
      %15 = arith.mulf %12, %14 : vector<8x128xf32>
      %c0_14 = arith.constant 0 : index
      %c0_15 = arith.constant 0 : index
      %16 = vector.load %arg6[%c0_14, %c0_15] : memref<1x128xf32, #tpu.memory_space<vmem>>, vector<1x128xf32>
      %17 = vector.broadcast %16 : vector<1x128xf32> to vector<8x128xf32>
      %18 = arith.addf %15, %17 : vector<8x128xf32>
      %cst_16 = arith.constant 0.000000e+00 : f32
      %19 = vector.broadcast %cst_16 : f32 to vector<8x128xf32>
      %20 = arith.maximumf %18, %19 : vector<8x128xf32>
      %21 = arith.truncf %20 : vector<8x128xf32> to vector<8x128xbf16>
      %c0_17 = arith.constant 0 : index
      %c0_18 = arith.constant 0 : index
      %22 = vector.load %arg7[%c0_17, %c0_18] : memref<8x128xbf16, #tpu.memory_space<vmem>>, vector<8x128xbf16>
      tpu.vector_store %arg7[%c0_17, %c0_18], %21 {strides = array<i32>} : memref<8x128xbf16, #tpu.memory_space<vmem>>, vector<8x128xbf16>,
    } else {
    }
    return
  }
  func.func @transform_0(%arg0: i32, %arg1: i32, %arg2: i32) -> (i32, i32) {
    %c0_i32 = arith.constant 0 : i32
    return %arg0, %arg2 : i32, i32
  }
  func.func @transform_1(%arg0: i32, %arg1: i32, %arg2: i32) -> (i32, i32) {
    %c0_i32 = arith.constant 0 : i32
    return %arg2, %arg1 : i32, i32
  }
  func.func @transform_2(%arg0: i32, %arg1: i32, %arg2: i32) -> (i32, i32) {
    %c0_i32 = arith.constant 0 : i32
    %c0_i32_0 = arith.constant 0 : i32
    return %c0_i32, %arg1 : i32, i32
  }
  func.func @transform_3(%arg0: i32, %arg1: i32, %arg2: i32) -> (i32, i32) {
    %c0_i32 = arith.constant 0 : i32
    %c0_i32_0 = arith.constant 0 : i32
    return %c0_i32, %arg1 : i32, i32
  }
  func.func @transform_4(%arg0: i32, %arg1: i32, %arg2: i32) -> (i32, i32) {
    %c0_i32 = arith.constant 0 : i32
    return %arg0, %arg1 : i32, i32
  }
}

module attributes {stable_mosaic.version = 11 : i64} {
  func.func @h_upsample_kernel(%arg0: i32, %arg1: i32, %arg2: memref<16x8xbf16, #tpu.memory_space<vmem>>, %arg3: memref<1x8x1024xbf16, #tpu.memory_space<vmem>>, %arg4: memref<1x16x1024xbf16, #tpu.memory_space<vmem>>) attributes {dimension_semantics = [#tpu.dimension_semantics<parallel>, #tpu.dimension_semantics<parallel>], iteration_bounds = array<i64: 2, 1>, scalar_prefetch = 0 : i64, scratch_operands = 0 : i64, tpu.core_type = #tpu.core_type<tc>, window_params = [{pipeline_mode = #tpu.pipeline_mode<synchronous>, transform_indices = @transform_0, window_bounds = array<i64: 16, 8>}, {transform_indices = @transform_1, window_bounds = array<i64: 1, 8, 1024>}, {transform_indices = @transform_2, window_bounds = array<i64: 1, 16, 1024>}]} {
    %c0 = arith.constant 0 : index
    %c0_0 = arith.constant 0 : index
    %0 = vector.load %arg2[%c0, %c0_0] : memref<16x8xbf16, #tpu.memory_space<vmem>>, vector<16x8xbf16>
    %c0_1 = arith.constant 0 : index
    %c0_2 = arith.constant 0 : index
    %c0_3 = arith.constant 0 : index
    %1 = vector.load %arg3[%c0_1, %c0_2, %c0_3] : memref<1x8x1024xbf16, #tpu.memory_space<vmem>>, vector<1x8x1024xbf16>
    %2 = vector.shape_cast %1 : vector<1x8x1024xbf16> to vector<8x1024xbf16>
    %cst = arith.constant dense<0.000000e+00> : vector<16x1024xf32>
    %3 = tpu.matmul %0, %2, %cst {dimension_numbers = #tpu.dot_dimension_numbers<[1], [0], [0], [1], [0, 0, 1, 1], [], []>} : vector<16x8xbf16>, vector<8x1024xbf16>, vector<16x1024xf32> -> vector<16x1024xf32>
    %4 = arith.truncf %3 : vector<16x1024xf32> to vector<16x1024xbf16>
    %c0_4 = arith.constant 0 : index
    %c0_5 = arith.constant 0 : index
    %c0_6 = arith.constant 0 : index
    %5 = vector.load %arg4[%c0_4, %c0_5, %c0_6] : memref<1x16x1024xbf16, #tpu.memory_space<vmem>>, vector<1x16x1024xbf16>
    %6 = vector.shape_cast %5 : vector<1x16x1024xbf16> to vector<16x1024xbf16>
    %7 = vector.shape_cast %4 : vector<16x1024xbf16> to vector<1x16x1024xbf16>
    tpu.vector_store %arg4[%c0_4, %c0_5, %c0_6], %7 {strides = array<i32>} : memref<1x16x1024xbf16, #tpu.memory_space<vmem>>, vector<1x16x1024xbf16>,
    return
  }
  func.func @transform_0(%arg0: i32, %arg1: i32) -> (i32, i32) {
    %c0_i32 = arith.constant 0 : i32
    %c0_i32_0 = arith.constant 0 : i32
    %c0_i32_1 = arith.constant 0 : i32
    return %c0_i32, %c0_i32_0 : i32, i32
  }
  func.func @transform_1(%arg0: i32, %arg1: i32) -> (i32, i32, i32) {
    %c0_i32 = arith.constant 0 : i32
    %c0_i32_0 = arith.constant 0 : i32
    return %arg0, %c0_i32, %arg1 : i32, i32, i32
  }
  func.func @transform_2(%arg0: i32, %arg1: i32) -> (i32, i32, i32) {
    %c0_i32 = arith.constant 0 : i32
    %c0_i32_0 = arith.constant 0 : i32
    return %arg0, %c0_i32, %arg1 : i32, i32, i32
  }
}

module attributes {stable_mosaic.version = 11 : i64} {
  func.func @w_upsample_fuse_kernel(%arg0: i32, %arg1: i32, %arg2: memref<16x8xbf16, #tpu.memory_space<vmem>>, %arg3: memref<1x8x8x128xbf16, #tpu.memory_space<vmem>>, %arg4: memref<1x8x16x128xf32, #tpu.memory_space<vmem>>, %arg5: memref<1x8x16x128xf32, #tpu.memory_space<vmem>>, %arg6: memref<1x8x16x128xf32, #tpu.memory_space<vmem>>) attributes {dimension_semantics = [#tpu.dimension_semantics<parallel>, #tpu.dimension_semantics<parallel>], iteration_bounds = array<i64: 2, 2>, scalar_prefetch = 0 : i64, scratch_operands = 0 : i64, tpu.core_type = #tpu.core_type<tc>, window_params = [{pipeline_mode = #tpu.pipeline_mode<synchronous>, transform_indices = @transform_0, window_bounds = array<i64: 16, 8>}, {transform_indices = @transform_1, window_bounds = array<i64: 1, 8, 8, 128>}, {transform_indices = @transform_2, window_bounds = array<i64: 1, 8, 16, 128>}, {transform_indices = @transform_3, window_bounds = array<i64: 1, 8, 16, 128>}, {transform_indices = @transform_4, window_bounds = array<i64: 1, 8, 16, 128>}]} {
    %c0 = arith.constant 0 : index
    %c0_0 = arith.constant 0 : index
    %0 = vector.load %arg2[%c0, %c0_0] : memref<16x8xbf16, #tpu.memory_space<vmem>>, vector<16x8xbf16>
    %c0_1 = arith.constant 0 : index
    %c0_2 = arith.constant 0 : index
    %c0_3 = arith.constant 0 : index
    %c0_4 = arith.constant 0 : index
    %1 = vector.load %arg3[%c0_1, %c0_2, %c0_3, %c0_4] : memref<1x8x8x128xbf16, #tpu.memory_space<vmem>>, vector<1x1x8x128xbf16>
    %2 = vector.shape_cast %1 : vector<1x1x8x128xbf16> to vector<8x128xbf16>
    %cst = arith.constant dense<0.000000e+00> : vector<16x128xf32>
    %3 = tpu.matmul %0, %2, %cst {dimension_numbers = #tpu.dot_dimension_numbers<[1], [0], [0], [1], [0, 0, 1, 1], [], []>} : vector<16x8xbf16>, vector<8x128xbf16>, vector<16x128xf32> -> vector<16x128xf32>
    %c0_5 = arith.constant 0 : index
    %c0_6 = arith.constant 0 : index
    %c0_7 = arith.constant 0 : index
    %c0_8 = arith.constant 0 : index
    %4 = vector.load %arg4[%c0_5, %c0_6, %c0_7, %c0_8] : memref<1x8x16x128xf32, #tpu.memory_space<vmem>>, vector<1x1x16x128xf32>
    %5 = vector.shape_cast %4 : vector<1x1x16x128xf32> to vector<16x128xf32>
    %c0_9 = arith.constant 0 : index
    %c0_10 = arith.constant 0 : index
    %c0_11 = arith.constant 0 : index
    %c0_12 = arith.constant 0 : index
    %6 = vector.load %arg5[%c0_9, %c0_10, %c0_11, %c0_12] : memref<1x8x16x128xf32, #tpu.memory_space<vmem>>, vector<1x1x16x128xf32>
    %7 = vector.shape_cast %6 : vector<1x1x16x128xf32> to vector<16x128xf32>
    %8 = arith.mulf %7, %5 : vector<16x128xf32>
    %9 = arith.addf %7, %8 : vector<16x128xf32>
    %10 = arith.mulf %3, %5 : vector<16x128xf32>
    %11 = arith.addf %9, %10 : vector<16x128xf32>
    %c0_13 = arith.constant 0 : index
    %c0_14 = arith.constant 0 : index
    %c0_15 = arith.constant 0 : index
    %c0_16 = arith.constant 0 : index
    %12 = vector.load %arg6[%c0_13, %c0_14, %c0_15, %c0_16] : memref<1x8x16x128xf32, #tpu.memory_space<vmem>>, vector<1x1x16x128xf32>
    %13 = vector.shape_cast %12 : vector<1x1x16x128xf32> to vector<16x128xf32>
    %14 = vector.shape_cast %11 : vector<16x128xf32> to vector<1x1x16x128xf32>
    tpu.vector_store %arg6[%c0_13, %c0_14, %c0_15, %c0_16], %14 {strides = array<i32>} : memref<1x8x16x128xf32, #tpu.memory_space<vmem>>, vector<1x1x16x128xf32>,
    %c0_17 = arith.constant 0 : index
    %c1 = arith.constant 1 : index
    %c0_18 = arith.constant 0 : index
    %c0_19 = arith.constant 0 : index
    %15 = vector.load %arg3[%c0_17, %c1, %c0_18, %c0_19] : memref<1x8x8x128xbf16, #tpu.memory_space<vmem>>, vector<1x1x8x128xbf16>
    %16 = vector.shape_cast %15 : vector<1x1x8x128xbf16> to vector<8x128xbf16>
    %cst_20 = arith.constant dense<0.000000e+00> : vector<16x128xf32>
    %17 = tpu.matmul %0, %16, %cst_20 {dimension_numbers = #tpu.dot_dimension_numbers<[1], [0], [0], [1], [0, 0, 1, 1], [], []>} : vector<16x8xbf16>, vector<8x128xbf16>, vector<16x128xf32> -> vector<16x128xf32>
    %c0_21 = arith.constant 0 : index
    %c1_22 = arith.constant 1 : index
    %c0_23 = arith.constant 0 : index
    %c0_24 = arith.constant 0 : index
    %18 = vector.load %arg4[%c0_21, %c1_22, %c0_23, %c0_24] : memref<1x8x16x128xf32, #tpu.memory_space<vmem>>, vector<1x1x16x128xf32>
    %19 = vector.shape_cast %18 : vector<1x1x16x128xf32> to vector<16x128xf32>
    %c0_25 = arith.constant 0 : index
    %c1_26 = arith.constant 1 : index
    %c0_27 = arith.constant 0 : index
    %c0_28 = arith.constant 0 : index
    %20 = vector.load %arg5[%c0_25, %c1_26, %c0_27, %c0_28] : memref<1x8x16x128xf32, #tpu.memory_space<vmem>>, vector<1x1x16x128xf32>
    %21 = vector.shape_cast %20 : vector<1x1x16x128xf32> to vector<16x128xf32>
    %22 = arith.mulf %21, %19 : vector<16x128xf32>
    %23 = arith.addf %21, %22 : vector<16x128xf32>
    %24 = arith.mulf %17, %19 : vector<16x128xf32>
    %25 = arith.addf %23, %24 : vector<16x128xf32>
    %c0_29 = arith.constant 0 : index
    %c1_30 = arith.constant 1 : index
    %c0_31 = arith.constant 0 : index
    %c0_32 = arith.constant 0 : index
    %26 = vector.load %arg6[%c0_29, %c1_30, %c0_31, %c0_32] : memref<1x8x16x128xf32, #tpu.memory_space<vmem>>, vector<1x1x16x128xf32>
    %27 = vector.shape_cast %26 : vector<1x1x16x128xf32> to vector<16x128xf32>
    %28 = vector.shape_cast %25 : vector<16x128xf32> to vector<1x1x16x128xf32>
    tpu.vector_store %arg6[%c0_29, %c1_30, %c0_31, %c0_32], %28 {strides = array<i32>} : memref<1x8x16x128xf32, #tpu.memory_space<vmem>>, vector<1x1x16x128xf32>,
    %c0_33 = arith.constant 0 : index
    %c2 = arith.constant 2 : index
    %c0_34 = arith.constant 0 : index
    %c0_35 = arith.constant 0 : index
    %29 = vector.load %arg3[%c0_33, %c2, %c0_34, %c0_35] : memref<1x8x8x128xbf16, #tpu.memory_space<vmem>>, vector<1x1x8x128xbf16>
    %30 = vector.shape_cast %29 : vector<1x1x8x128xbf16> to vector<8x128xbf16>
    %cst_36 = arith.constant dense<0.000000e+00> : vector<16x128xf32>
    %31 = tpu.matmul %0, %30, %cst_36 {dimension_numbers = #tpu.dot_dimension_numbers<[1], [0], [0], [1], [0, 0, 1, 1], [], []>} : vector<16x8xbf16>, vector<8x128xbf16>, vector<16x128xf32> -> vector<16x128xf32>
    %c0_37 = arith.constant 0 : index
    %c2_38 = arith.constant 2 : index
    %c0_39 = arith.constant 0 : index
    %c0_40 = arith.constant 0 : index
    %32 = vector.load %arg4[%c0_37, %c2_38, %c0_39, %c0_40] : memref<1x8x16x128xf32, #tpu.memory_space<vmem>>, vector<1x1x16x128xf32>
    %33 = vector.shape_cast %32 : vector<1x1x16x128xf32> to vector<16x128xf32>
    %c0_41 = arith.constant 0 : index
    %c2_42 = arith.constant 2 : index
    %c0_43 = arith.constant 0 : index
    %c0_44 = arith.constant 0 : index
    %34 = vector.load %arg5[%c0_41, %c2_42, %c0_43, %c0_44] : memref<1x8x16x128xf32, #tpu.memory_space<vmem>>, vector<1x1x16x128xf32>
    %35 = vector.shape_cast %34 : vector<1x1x16x128xf32> to vector<16x128xf32>
    %36 = arith.mulf %35, %33 : vector<16x128xf32>
    %37 = arith.addf %35, %36 : vector<16x128xf32>
    %38 = arith.mulf %31, %33 : vector<16x128xf32>
    %39 = arith.addf %37, %38 : vector<16x128xf32>
    %c0_45 = arith.constant 0 : index
    %c2_46 = arith.constant 2 : index
    %c0_47 = arith.constant 0 : index
    %c0_48 = arith.constant 0 : index
    %40 = vector.load %arg6[%c0_45, %c2_46, %c0_47, %c0_48] : memref<1x8x16x128xf32, #tpu.memory_space<vmem>>, vector<1x1x16x128xf32>
    %41 = vector.shape_cast %40 : vector<1x1x16x128xf32> to vector<16x128xf32>
    %42 = vector.shape_cast %39 : vector<16x128xf32> to vector<1x1x16x128xf32>
    tpu.vector_store %arg6[%c0_45, %c2_46, %c0_47, %c0_48], %42 {strides = array<i32>} : memref<1x8x16x128xf32, #tpu.memory_space<vmem>>, vector<1x1x16x128xf32>,
    %c0_49 = arith.constant 0 : index
    %c3 = arith.constant 3 : index
    %c0_50 = arith.constant 0 : index
    %c0_51 = arith.constant 0 : index
    %43 = vector.load %arg3[%c0_49, %c3, %c0_50, %c0_51] : memref<1x8x8x128xbf16, #tpu.memory_space<vmem>>, vector<1x1x8x128xbf16>
    %44 = vector.shape_cast %43 : vector<1x1x8x128xbf16> to vector<8x128xbf16>
    %cst_52 = arith.constant dense<0.000000e+00> : vector<16x128xf32>
    %45 = tpu.matmul %0, %44, %cst_52 {dimension_numbers = #tpu.dot_dimension_numbers<[1], [0], [0], [1], [0, 0, 1, 1], [], []>} : vector<16x8xbf16>, vector<8x128xbf16>, vector<16x128xf32> -> vector<16x128xf32>
    %c0_53 = arith.constant 0 : index
    %c3_54 = arith.constant 3 : index
    %c0_55 = arith.constant 0 : index
    %c0_56 = arith.constant 0 : index
    %46 = vector.load %arg4[%c0_53, %c3_54, %c0_55, %c0_56] : memref<1x8x16x128xf32, #tpu.memory_space<vmem>>, vector<1x1x16x128xf32>
    %47 = vector.shape_cast %46 : vector<1x1x16x128xf32> to vector<16x128xf32>
    %c0_57 = arith.constant 0 : index
    %c3_58 = arith.constant 3 : index
    %c0_59 = arith.constant 0 : index
    %c0_60 = arith.constant 0 : index
    %48 = vector.load %arg5[%c0_57, %c3_58, %c0_59, %c0_60] : memref<1x8x16x128xf32, #tpu.memory_space<vmem>>, vector<1x1x16x128xf32>
    %49 = vector.shape_cast %48 : vector<1x1x16x128xf32> to vector<16x128xf32>
    %50 = arith.mulf %49, %47 : vector<16x128xf32>
    %51 = arith.addf %49, %50 : vector<16x128xf32>
    %52 = arith.mulf %45, %47 : vector<16x128xf32>
    %53 = arith.addf %51, %52 : vector<16x128xf32>
    %c0_61 = arith.constant 0 : index
    %c3_62 = arith.constant 3 : index
    %c0_63 = arith.constant 0 : index
    %c0_64 = arith.constant 0 : index
    %54 = vector.load %arg6[%c0_61, %c3_62, %c0_63, %c0_64] : memref<1x8x16x128xf32, #tpu.memory_space<vmem>>, vector<1x1x16x128xf32>
    %55 = vector.shape_cast %54 : vector<1x1x16x128xf32> to vector<16x128xf32>
    %56 = vector.shape_cast %53 : vector<16x128xf32> to vector<1x1x16x128xf32>
    tpu.vector_store %arg6[%c0_61, %c3_62, %c0_63, %c0_64], %56 {strides = array<i32>} : memref<1x8x16x128xf32, #tpu.memory_space<vmem>>, vector<1x1x16x128xf32>,
    %c0_65 = arith.constant 0 : index
    %c4 = arith.constant 4 : index
    %c0_66 = arith.constant 0 : index
    %c0_67 = arith.constant 0 : index
    %57 = vector.load %arg3[%c0_65, %c4, %c0_66, %c0_67] : memref<1x8x8x128xbf16, #tpu.memory_space<vmem>>, vector<1x1x8x128xbf16>
    %58 = vector.shape_cast %57 : vector<1x1x8x128xbf16> to vector<8x128xbf16>
    %cst_68 = arith.constant dense<0.000000e+00> : vector<16x128xf32>
    %59 = tpu.matmul %0, %58, %cst_68 {dimension_numbers = #tpu.dot_dimension_numbers<[1], [0], [0], [1], [0, 0, 1, 1], [], []>} : vector<16x8xbf16>, vector<8x128xbf16>, vector<16x128xf32> -> vector<16x128xf32>
    %c0_69 = arith.constant 0 : index
    %c4_70 = arith.constant 4 : index
    %c0_71 = arith.constant 0 : index
    %c0_72 = arith.constant 0 : index
    %60 = vector.load %arg4[%c0_69, %c4_70, %c0_71, %c0_72] : memref<1x8x16x128xf32, #tpu.memory_space<vmem>>, vector<1x1x16x128xf32>
    %61 = vector.shape_cast %60 : vector<1x1x16x128xf32> to vector<16x128xf32>
    %c0_73 = arith.constant 0 : index
    %c4_74 = arith.constant 4 : index
    %c0_75 = arith.constant 0 : index
    %c0_76 = arith.constant 0 : index
    %62 = vector.load %arg5[%c0_73, %c4_74, %c0_75, %c0_76] : memref<1x8x16x128xf32, #tpu.memory_space<vmem>>, vector<1x1x16x128xf32>
    %63 = vector.shape_cast %62 : vector<1x1x16x128xf32> to vector<16x128xf32>
    %64 = arith.mulf %63, %61 : vector<16x128xf32>
    %65 = arith.addf %63, %64 : vector<16x128xf32>
    %66 = arith.mulf %59, %61 : vector<16x128xf32>
    %67 = arith.addf %65, %66 : vector<16x128xf32>
    %c0_77 = arith.constant 0 : index
    %c4_78 = arith.constant 4 : index
    %c0_79 = arith.constant 0 : index
    %c0_80 = arith.constant 0 : index
    %68 = vector.load %arg6[%c0_77, %c4_78, %c0_79, %c0_80] : memref<1x8x16x128xf32, #tpu.memory_space<vmem>>, vector<1x1x16x128xf32>
    %69 = vector.shape_cast %68 : vector<1x1x16x128xf32> to vector<16x128xf32>
    %70 = vector.shape_cast %67 : vector<16x128xf32> to vector<1x1x16x128xf32>
    tpu.vector_store %arg6[%c0_77, %c4_78, %c0_79, %c0_80], %70 {strides = array<i32>} : memref<1x8x16x128xf32, #tpu.memory_space<vmem>>, vector<1x1x16x128xf32>,
    %c0_81 = arith.constant 0 : index
    %c5 = arith.constant 5 : index
    %c0_82 = arith.constant 0 : index
    %c0_83 = arith.constant 0 : index
    %71 = vector.load %arg3[%c0_81, %c5, %c0_82, %c0_83] : memref<1x8x8x128xbf16, #tpu.memory_space<vmem>>, vector<1x1x8x128xbf16>
    %72 = vector.shape_cast %71 : vector<1x1x8x128xbf16> to vector<8x128xbf16>
    %cst_84 = arith.constant dense<0.000000e+00> : vector<16x128xf32>
    %73 = tpu.matmul %0, %72, %cst_84 {dimension_numbers = #tpu.dot_dimension_numbers<[1], [0], [0], [1], [0, 0, 1, 1], [], []>} : vector<16x8xbf16>, vector<8x128xbf16>, vector<16x128xf32> -> vector<16x128xf32>
    %c0_85 = arith.constant 0 : index
    %c5_86 = arith.constant 5 : index
    %c0_87 = arith.constant 0 : index
    %c0_88 = arith.constant 0 : index
    %74 = vector.load %arg4[%c0_85, %c5_86, %c0_87, %c0_88] : memref<1x8x16x128xf32, #tpu.memory_space<vmem>>, vector<1x1x16x128xf32>
    %75 = vector.shape_cast %74 : vector<1x1x16x128xf32> to vector<16x128xf32>
    %c0_89 = arith.constant 0 : index
    %c5_90 = arith.constant 5 : index
    %c0_91 = arith.constant 0 : index
    %c0_92 = arith.constant 0 : index
    %76 = vector.load %arg5[%c0_89, %c5_90, %c0_91, %c0_92] : memref<1x8x16x128xf32, #tpu.memory_space<vmem>>, vector<1x1x16x128xf32>
    %77 = vector.shape_cast %76 : vector<1x1x16x128xf32> to vector<16x128xf32>
    %78 = arith.mulf %77, %75 : vector<16x128xf32>
    %79 = arith.addf %77, %78 : vector<16x128xf32>
    %80 = arith.mulf %73, %75 : vector<16x128xf32>
    %81 = arith.addf %79, %80 : vector<16x128xf32>
    %c0_93 = arith.constant 0 : index
    %c5_94 = arith.constant 5 : index
    %c0_95 = arith.constant 0 : index
    %c0_96 = arith.constant 0 : index
    %82 = vector.load %arg6[%c0_93, %c5_94, %c0_95, %c0_96] : memref<1x8x16x128xf32, #tpu.memory_space<vmem>>, vector<1x1x16x128xf32>
    %83 = vector.shape_cast %82 : vector<1x1x16x128xf32> to vector<16x128xf32>
    %84 = vector.shape_cast %81 : vector<16x128xf32> to vector<1x1x16x128xf32>
    tpu.vector_store %arg6[%c0_93, %c5_94, %c0_95, %c0_96], %84 {strides = array<i32>} : memref<1x8x16x128xf32, #tpu.memory_space<vmem>>, vector<1x1x16x128xf32>,
    %c0_97 = arith.constant 0 : index
    %c6 = arith.constant 6 : index
    %c0_98 = arith.constant 0 : index
    %c0_99 = arith.constant 0 : index
    %85 = vector.load %arg3[%c0_97, %c6, %c0_98, %c0_99] : memref<1x8x8x128xbf16, #tpu.memory_space<vmem>>, vector<1x1x8x128xbf16>
    %86 = vector.shape_cast %85 : vector<1x1x8x128xbf16> to vector<8x128xbf16>
    %cst_100 = arith.constant dense<0.000000e+00> : vector<16x128xf32>
    %87 = tpu.matmul %0, %86, %cst_100 {dimension_numbers = #tpu.dot_dimension_numbers<[1], [0], [0], [1], [0, 0, 1, 1], [], []>} : vector<16x8xbf16>, vector<8x128xbf16>, vector<16x128xf32> -> vector<16x128xf32>
    %c0_101 = arith.constant 0 : index
    %c6_102 = arith.constant 6 : index
    %c0_103 = arith.constant 0 : index
    %c0_104 = arith.constant 0 : index
    %88 = vector.load %arg4[%c0_101, %c6_102, %c0_103, %c0_104] : memref<1x8x16x128xf32, #tpu.memory_space<vmem>>, vector<1x1x16x128xf32>
    %89 = vector.shape_cast %88 : vector<1x1x16x128xf32> to vector<16x128xf32>
    %c0_105 = arith.constant 0 : index
    %c6_106 = arith.constant 6 : index
    %c0_107 = arith.constant 0 : index
    %c0_108 = arith.constant 0 : index
    %90 = vector.load %arg5[%c0_105, %c6_106, %c0_107, %c0_108] : memref<1x8x16x128xf32, #tpu.memory_space<vmem>>, vector<1x1x16x128xf32>
    %91 = vector.shape_cast %90 : vector<1x1x16x128xf32> to vector<16x128xf32>
    %92 = arith.mulf %91, %89 : vector<16x128xf32>
    %93 = arith.addf %91, %92 : vector<16x128xf32>
    %94 = arith.mulf %87, %89 : vector<16x128xf32>
    %95 = arith.addf %93, %94 : vector<16x128xf32>
    %c0_109 = arith.constant 0 : index
    %c6_110 = arith.constant 6 : index
    %c0_111 = arith.constant 0 : index
    %c0_112 = arith.constant 0 : index
    %96 = vector.load %arg6[%c0_109, %c6_110, %c0_111, %c0_112] : memref<1x8x16x128xf32, #tpu.memory_space<vmem>>, vector<1x1x16x128xf32>
    %97 = vector.shape_cast %96 : vector<1x1x16x128xf32> to vector<16x128xf32>
    %98 = vector.shape_cast %95 : vector<16x128xf32> to vector<1x1x16x128xf32>
    tpu.vector_store %arg6[%c0_109, %c6_110, %c0_111, %c0_112], %98 {strides = array<i32>} : memref<1x8x16x128xf32, #tpu.memory_space<vmem>>, vector<1x1x16x128xf32>,
    %c0_113 = arith.constant 0 : index
    %c7 = arith.constant 7 : index
    %c0_114 = arith.constant 0 : index
    %c0_115 = arith.constant 0 : index
    %99 = vector.load %arg3[%c0_113, %c7, %c0_114, %c0_115] : memref<1x8x8x128xbf16, #tpu.memory_space<vmem>>, vector<1x1x8x128xbf16>
    %100 = vector.shape_cast %99 : vector<1x1x8x128xbf16> to vector<8x128xbf16>
    %cst_116 = arith.constant dense<0.000000e+00> : vector<16x128xf32>
    %101 = tpu.matmul %0, %100, %cst_116 {dimension_numbers = #tpu.dot_dimension_numbers<[1], [0], [0], [1], [0, 0, 1, 1], [], []>} : vector<16x8xbf16>, vector<8x128xbf16>, vector<16x128xf32> -> vector<16x128xf32>
    %c0_117 = arith.constant 0 : index
    %c7_118 = arith.constant 7 : index
    %c0_119 = arith.constant 0 : index
    %c0_120 = arith.constant 0 : index
    %102 = vector.load %arg4[%c0_117, %c7_118, %c0_119, %c0_120] : memref<1x8x16x128xf32, #tpu.memory_space<vmem>>, vector<1x1x16x128xf32>
    %103 = vector.shape_cast %102 : vector<1x1x16x128xf32> to vector<16x128xf32>
    %c0_121 = arith.constant 0 : index
    %c7_122 = arith.constant 7 : index
    %c0_123 = arith.constant 0 : index
    %c0_124 = arith.constant 0 : index
    %104 = vector.load %arg5[%c0_121, %c7_122, %c0_123, %c0_124] : memref<1x8x16x128xf32, #tpu.memory_space<vmem>>, vector<1x1x16x128xf32>
    %105 = vector.shape_cast %104 : vector<1x1x16x128xf32> to vector<16x128xf32>
    %106 = arith.mulf %105, %103 : vector<16x128xf32>
    %107 = arith.addf %105, %106 : vector<16x128xf32>
    %108 = arith.mulf %101, %103 : vector<16x128xf32>
    %109 = arith.addf %107, %108 : vector<16x128xf32>
    %c0_125 = arith.constant 0 : index
    %c7_126 = arith.constant 7 : index
    %c0_127 = arith.constant 0 : index
    %c0_128 = arith.constant 0 : index
    %110 = vector.load %arg6[%c0_125, %c7_126, %c0_127, %c0_128] : memref<1x8x16x128xf32, #tpu.memory_space<vmem>>, vector<1x1x16x128xf32>
    %111 = vector.shape_cast %110 : vector<1x1x16x128xf32> to vector<16x128xf32>
    %112 = vector.shape_cast %109 : vector<16x128xf32> to vector<1x1x16x128xf32>
    tpu.vector_store %arg6[%c0_125, %c7_126, %c0_127, %c0_128], %112 {strides = array<i32>} : memref<1x8x16x128xf32, #tpu.memory_space<vmem>>, vector<1x1x16x128xf32>,
    return
  }
  func.func @transform_0(%arg0: i32, %arg1: i32) -> (i32, i32) {
    %c0_i32 = arith.constant 0 : i32
    %c0_i32_0 = arith.constant 0 : i32
    %c0_i32_1 = arith.constant 0 : i32
    return %c0_i32, %c0_i32_0 : i32, i32
  }
  func.func @transform_1(%arg0: i32, %arg1: i32) -> (i32, i32, i32, i32) {
    %c0_i32 = arith.constant 0 : i32
    %c0_i32_0 = arith.constant 0 : i32
    %c0_i32_1 = arith.constant 0 : i32
    return %arg0, %arg1, %c0_i32, %c0_i32_0 : i32, i32, i32, i32
  }
  func.func @transform_2(%arg0: i32, %arg1: i32) -> (i32, i32, i32, i32) {
    %c0_i32 = arith.constant 0 : i32
    %c0_i32_0 = arith.constant 0 : i32
    %c0_i32_1 = arith.constant 0 : i32
    return %arg0, %arg1, %c0_i32, %c0_i32_0 : i32, i32, i32, i32
  }
  func.func @transform_3(%arg0: i32, %arg1: i32) -> (i32, i32, i32, i32) {
    %c0_i32 = arith.constant 0 : i32
    %c0_i32_0 = arith.constant 0 : i32
    %c0_i32_1 = arith.constant 0 : i32
    return %arg0, %arg1, %c0_i32, %c0_i32_0 : i32, i32, i32, i32
  }
  func.func @transform_4(%arg0: i32, %arg1: i32) -> (i32, i32, i32, i32) {
    %c0_i32 = arith.constant 0 : i32
    %c0_i32_0 = arith.constant 0 : i32
    %c0_i32_1 = arith.constant 0 : i32
    return %arg0, %arg1, %c0_i32, %c0_i32_0 : i32, i32, i32, i32
  }
}

</mosaic_0001>

<llo_original>
// kernel: bes_forward.12
$region0: #{bes_forward.12}
  #allocation0 [shape = 'u32[]', space=smem, size = 0x4, offset = 0x4, fixed_abs, tag = 'smem constant byte address 0x4 - core index']
  #allocation1 [shape = 'u32[144,128]{1,0:T(1,128)}', space=vmem, size = 0x12000, scoped, tag = 'internal scratch']
  #allocation2 [shape = 'f32[128,128]{1,0:T(8,128)}', space=vmem, size = 0x10000, scoped, tag = 'scratch operand']
  %s0 = inlined_call_operand.vmem [shape: bf16[128,256], index: 0, kind: input, shape index: {}]
  %s1 = inlined_call_operand.vmem [shape: bf16[256,128], index: 1, kind: input, shape index: {}]
  %s2 = inlined_call_operand.vmem [shape: f32[1,128], index: 2, kind: input, shape index: {}]
  %s3 = inlined_call_operand.vmem [shape: f32[1,128], index: 3, kind: input, shape index: {}]
  %s4 = inlined_call_operand.vmem [shape: bf16[128,128], index: 4, kind: output, shape index: {}]
  %s5 = sld [smem:[#allocation0]]
  $region34: #{bes_forward.12} parent=0
    _
  %s7 = ssub.s32 1, %s5
  %s8 = scalar_select 0, %s7, %s5
  // Predicated region
  $region2: #{bes_forward.12} parent=0 // pred_check
    _
  $region3: #{bes_forward.12} parent=0 // pred_check_branch
    %10 = sbr.rel (0) target = $region5
  $region4: #{bes_forward.12} parent=0 // pred_region
    _
  $region5: #{bes_forward.12} parent=0 // pred_fallthru
    _
  // Predicated region
  $region6: #{bes_forward.12} parent=0 // pred_check
    _
  $region7: #{bes_forward.12} parent=0 // pred_check_branch
    %12 = sbr.rel (0) target = $region9
  $region8: #{bes_forward.12} parent=0 // pred_region
    _
  $region9: #{bes_forward.12} parent=0 // pred_fallthru
    _
  // Predicated region
  $region10: #{bes_forward.12} parent=0 // pred_check
    _
  $region11: #{bes_forward.12} parent=0 // pred_check_branch
    %14 = sbr.rel (0) target = $region13
  $region12: #{bes_forward.12} parent=0 // pred_region
    _
  $region13: #{bes_forward.12} parent=0 // pred_fallthru
    _
  // Predicated region
  $region14: #{bes_forward.12} parent=0 // pred_check
    _
  $region15: #{bes_forward.12} parent=0 // pred_check_branch
    %16 = sbr.rel (0) target = $region17
  $region16: #{bes_forward.12} parent=0 // pred_region
    _
  $region17: #{bes_forward.12} parent=0 // pred_fallthru
    _
  %p18 = scmp.eq.s32.totalorder 0, 0
  // Predicated region
  $region18: #{bes_forward.12} parent=0 // pred_check
    %p19 = pneg %p18
  $region19: #{bes_forward.12} parent=0 // pred_check_branch
    %21 = sbr.rel (%p19) target = $region21
  $region20: #{bes_forward.12} parent=0 // pred_region
    %22 = vst [vmem:[#allocation2] sm:$0xff] 0.0
    %23 = vst [vmem:[#allocation2 + $0x8] sm:$0xff] 0.0
    %24 = vst [vmem:[#allocation2 + $0x10] sm:$0xff] 0.0
    %25 = vst [vmem:[#allocation2 + $0x18] sm:$0xff] 0.0
    %26 = vst [vmem:[#allocation2 + $0x20] sm:$0xff] 0.0
    %27 = vst [vmem:[#allocation2 + $0x28] sm:$0xff] 0.0
    %28 = vst [vmem:[#allocation2 + $0x30] sm:$0xff] 0.0
    %29 = vst [vmem:[#allocation2 + $0x38] sm:$0xff] 0.0
    %30 = vst [vmem:[#allocation2 + $0x40] sm:$0xff] 0.0
    %31 = vst [vmem:[#allocation2 + $0x48] sm:$0xff] 0.0
    %32 = vst [vmem:[#allocation2 + $0x50] sm:$0xff] 0.0
    %33 = vst [vmem:[#allocation2 + $0x58] sm:$0xff] 0.0
    %34 = vst [vmem:[#allocation2 + $0x60] sm:$0xff] 0.0
    %35 = vst [vmem:[#allocation2 + $0x68] sm:$0xff] 0.0
    %36 = vst [vmem:[#allocation2 + $0x70] sm:$0xff] 0.0
    %37 = vst [vmem:[#allocation2 + $0x78] sm:$0xff] 0.0
  $region21: #{bes_forward.12} parent=0 // pred_fallthru
    _
  %v38 = vld [vmem:[#allocation2] sm:$0xff]
  %v39 = vld [vmem:[#allocation2 + $0x8] sm:$0xff]
  %v40 = vld [vmem:[#allocation2 + $0x10] sm:$0xff]
  %v41 = vld [vmem:[#allocation2 + $0x18] sm:$0xff]
  %v42 = vld [vmem:[#allocation2 + $0x20] sm:$0xff]
  %v43 = vld [vmem:[#allocation2 + $0x28] sm:$0xff]
  %v44 = vld [vmem:[#allocation2 + $0x30] sm:$0xff]
  %v45 = vld [vmem:[#allocation2 + $0x38] sm:$0xff]
  %v46 = vld [vmem:[#allocation2 + $0x40] sm:$0xff]
  %v47 = vld [vmem:[#allocation2 + $0x48] sm:$0xff]
  %v48 = vld [vmem:[#allocation2 + $0x50] sm:$0xff]
  %v49 = vld [vmem:[#allocation2 + $0x58] sm:$0xff]
  %v50 = vld [vmem:[#allocation2 + $0x60] sm:$0xff]
  %v51 = vld [vmem:[#allocation2 + $0x68] sm:$0xff]
  %v52 = vld [vmem:[#allocation2 + $0x70] sm:$0xff]
  %v53 = vld [vmem:[#allocation2 + $0x78] sm:$0xff]
  %v54 = vld [vmem:[%s0] sm:$0xff]
  %v55 = vld [vmem:[%s0 + $0x8] sm:$0xff]
  %v56 = vld [vmem:[%s0 + $0x10] sm:$0xff]
  %v57 = vld [vmem:[%s0 + $0x18] sm:$0xff]
  %v58 = vld [vmem:[%s0 + $0x20] sm:$0xff]
  %v59 = vld [vmem:[%s0 + $0x28] sm:$0xff]
  %v60 = vld [vmem:[%s0 + $0x30] sm:$0xff]
  %v61 = vld [vmem:[%s0 + $0x38] sm:$0xff]
  %v62 = vld [vmem:[%s0 + $0x40] sm:$0xff]
  %v63 = vld [vmem:[%s0 + $0x48] sm:$0xff]
  %v64 = vld [vmem:[%s0 + $0x50] sm:$0xff]
  %v65 = vld [vmem:[%s0 + $0x58] sm:$0xff]
  %v66 = vld [vmem:[%s0 + $0x60] sm:$0xff]
  %v67 = vld [vmem:[%s0 + $0x68] sm:$0xff]
  %v68 = vld [vmem:[%s0 + $0x70] sm:$0xff]
  %v69 = vld [vmem:[%s0 + $0x78] sm:$0xff]
  %v70 = vld [vmem:[%s1] sm:$0xf]
  %v71 = vld [vmem:[%s1 + $0x4] sm:$0xf]
  %v72 = vld [vmem:[%s1 + $0x8] sm:$0xf]
  %v73 = vld [vmem:[%s1 + $0xc] sm:$0xf]
  %v74 = vld [vmem:[%s1 + $0x10] sm:$0xf]
  %v75 = vld [vmem:[%s1 + $0x14] sm:$0xf]
  %v76 = vld [vmem:[%s1 + $0x18] sm:$0xf]
  %v77 = vld [vmem:[%s1 + $0x1c] sm:$0xf]
  %v78 = vld [vmem:[%s1 + $0x20] sm:$0xf]
  %v79 = vld [vmem:[%s1 + $0x24] sm:$0xf]
  %v80 = vld [vmem:[%s1 + $0x28] sm:$0xf]
  %v81 = vld [vmem:[%s1 + $0x2c] sm:$0xf]
  %v82 = vld [vmem:[%s1 + $0x30] sm:$0xf]
  %v83 = vld [vmem:[%s1 + $0x34] sm:$0xf]
  %v84 = vld [vmem:[%s1 + $0x38] sm:$0xf]
  %v85 = vld [vmem:[%s1 + $0x3c] sm:$0xf]
  %v86 = vld [vmem:[%s1 + $0x40] sm:$0xf]
  %v87 = vld [vmem:[%s1 + $0x44] sm:$0xf]
  %v88 = vld [vmem:[%s1 + $0x48] sm:$0xf]
  %v89 = vld [vmem:[%s1 + $0x4c] sm:$0xf]
  %v90 = vld [vmem:[%s1 + $0x50] sm:$0xf]
  %v91 = vld [vmem:[%s1 + $0x54] sm:$0xf]
  %v92 = vld [vmem:[%s1 + $0x58] sm:$0xf]
  %v93 = vld [vmem:[%s1 + $0x5c] sm:$0xf]
  %v94 = vld [vmem:[%s1 + $0x60] sm:$0xf]
  %v95 = vld [vmem:[%s1 + $0x64] sm:$0xf]
  %v96 = vld [vmem:[%s1 + $0x68] sm:$0xf]
  %v97 = vld [vmem:[%s1 + $0x6c] sm:$0xf]
  %v98 = vld [vmem:[%s1 + $0x70] sm:$0xf]
  %v99 = vld [vmem:[%s1 + $0x74] sm:$0xf]
  %v100 = vld [vmem:[%s1 + $0x78] sm:$0xf]
  %v101 = vld [vmem:[%s1 + $0x7c] sm:$0xf]
  %v118 = vunpack.c.l.b16 %v54
  %v119 = vunpack.c.h.b16 %v54
  %v120 = vunpack.c.l.b16 %v55
  %v121 = vunpack.c.h.b16 %v55
  %v122 = vunpack.c.l.b16 %v56
  %v123 = vunpack.c.h.b16 %v56
  %v124 = vunpack.c.l.b16 %v57
  %v125 = vunpack.c.h.b16 %v57
  %v126 = vunpack.c.l.b16 %v58
  %v127 = vunpack.c.h.b16 %v58
  %v128 = vunpack.c.l.b16 %v59
  %v129 = vunpack.c.h.b16 %v59
  %v130 = vunpack.c.l.b16 %v60
  %v131 = vunpack.c.h.b16 %v60
  %v132 = vunpack.c.l.b16 %v61
  %v133 = vunpack.c.h.b16 %v61
  %v134 = vunpack.c.l.b16 %v62
  %v135 = vunpack.c.h.b16 %v62
  %v136 = vunpack.c.l.b16 %v63
  %v137 = vunpack.c.h.b16 %v63
  %v138 = vunpack.c.l.b16 %v64
  %v139 = vunpack.c.h.b16 %v64
  %v140 = vunpack.c.l.b16 %v65
  %v141 = vunpack.c.h.b16 %v65
  %v142 = vunpack.c.l.b16 %v66
  %v143 = vunpack.c.h.b16 %v66
  %v144 = vunpack.c.l.b16 %v67
  %v145 = vunpack.c.h.b16 %v67
  %v146 = vunpack.c.l.b16 %v68
  %v147 = vunpack.c.h.b16 %v68
  %v148 = vunpack.c.l.b16 %v69
  %v149 = vunpack.c.h.b16 %v69
  %v150 = vpack.c.b16 %v120, %v118
  %v151 = vpack.c.b16 %v121, %v119
  %v152 = vpack.c.b16 %v124, %v122
  %v153 = vpack.c.b16 %v125, %v123
  %v154 = vpack.c.b16 %v128, %v126
  %v155 = vpack.c.b16 %v129, %v127
  %v156 = vpack.c.b16 %v132, %v130
  %v157 = vpack.c.b16 %v133, %v131
  %v158 = vpack.c.b16 %v136, %v134
  %v159 = vpack.c.b16 %v137, %v135
  %v160 = vpack.c.b16 %v140, %v138
  %v161 = vpack.c.b16 %v141, %v139
  %v162 = vpack.c.b16 %v144, %v142
  %v163 = vpack.c.b16 %v145, %v143
  %v164 = vpack.c.b16 %v148, %v146
  %v165 = vpack.c.b16 %v149, %v147
  %v214 = vunpack.c.l.b16 %v70
  %v215 = vunpack.c.l.b16 %v71
  %v216 = vunpack.c.l.b16 %v72
  %v217 = vunpack.c.l.b16 %v73
  %v218 = vunpack.c.l.b16 %v74
  %v219 = vunpack.c.l.b16 %v75
  %v220 = vunpack.c.l.b16 %v76
  %v221 = vunpack.c.l.b16 %v77
  %v222 = vunpack.c.l.b16 %v78
  %v223 = vunpack.c.l.b16 %v79
  %v224 = vunpack.c.l.b16 %v80
  %v225 = vunpack.c.l.b16 %v81
  %v226 = vunpack.c.l.b16 %v82
  %v227 = vunpack.c.l.b16 %v83
  %v228 = vunpack.c.l.b16 %v84
  %v229 = vunpack.c.l.b16 %v85
  %v230 = vunpack.c.l.b16 %v86
  %v231 = vunpack.c.l.b16 %v87
  %v232 = vunpack.c.l.b16 %v88
  %v233 = vunpack.c.l.b16 %v89
  %v234 = vunpack.c.l.b16 %v90
  %v235 = vunpack.c.l.b16 %v91
  %v236 = vunpack.c.l.b16 %v92
  %v237 = vunpack.c.l.b16 %v93
  %v238 = vunpack.c.l.b16 %v94
  %v239 = vunpack.c.l.b16 %v95
  %v240 = vunpack.c.l.b16 %v96
  %v241 = vunpack.c.l.b16 %v97
  %v242 = vunpack.c.l.b16 %v98
  %v243 = vunpack.c.l.b16 %v99
  %v244 = vunpack.c.l.b16 %v100
  %v245 = vunpack.c.l.b16 %v101
  %v246 = vpack.c.b16 %v215, %v214
  %v247 = vpack.c.b16 %v217, %v216
  %v248 = vpack.c.b16 %v219, %v218
  %v249 = vpack.c.b16 %v221, %v220
  %v250 = vpack.c.b16 %v223, %v222
  %v251 = vpack.c.b16 %v225, %v224
  %v252 = vpack.c.b16 %v227, %v226
  %v253 = vpack.c.b16 %v229, %v228
  %v254 = vpack.c.b16 %v231, %v230
  %v255 = vpack.c.b16 %v233, %v232
  %v256 = vpack.c.b16 %v235, %v234
  %v257 = vpack.c.b16 %v237, %v236
  %v258 = vpack.c.b16 %v239, %v238
  %v259 = vpack.c.b16 %v241, %v240
  %v260 = vpack.c.b16 %v243, %v242
  %v261 = vpack.c.b16 %v245, %v244
  %278 = vmatprep.subr.bf16.mxu0 0
  %279 = vmatpush1.bf16.msra.mxu0 %v253
  %280 = vmatprep.subr.bf16.mxu0 0
  %281 = vmatpush1.bf16.msra.mxu0 %v252
  %282 = vmatprep.subr.bf16.mxu0 0
  %283 = vmatpush1.bf16.msra.mxu0 %v251
  %284 = vmatprep.subr.bf16.mxu0 0
  %285 = vmatpush1.bf16.msra.mxu0 %v250
  %286 = vmatprep.subr.bf16.mxu0 0
  %287 = vmatpush1.bf16.msra.mxu0 %v249
  %288 = vmatprep.subr.bf16.mxu0 0
  %289 = vmatpush1.bf16.msra.mxu0 %v248
  %290 = vmatprep.subr.bf16.mxu0 0
  %291 = vmatpush1.bf16.msra.mxu0 %v247
  %292 = vmatprep.subr.bf16.mxu0 0
  %293 = vmatpush1.bf16.msra.mxu0 %v246
  %294 = vmatprep.subr.bf16.mxu0 0
  %295 = vmatpush2.bf16.msra.mxu0 %v261
  %296 = vmatprep.subr.bf16.mxu0 0
  %297 = vmatpush2.bf16.msra.mxu0 %v260
  %298 = vmatprep.subr.bf16.mxu0 0
  %299 = vmatpush2.bf16.msra.mxu0 %v259
  %300 = vmatprep.subr.bf16.mxu0 0
  %301 = vmatpush2.bf16.msra.mxu0 %v258
  %302 = vmatprep.subr.bf16.mxu0 0
  %303 = vmatpush2.bf16.msra.mxu0 %v257
  %304 = vmatprep.subr.bf16.mxu0 0
  %305 = vmatpush2.bf16.msra.mxu0 %v256
  %306 = vmatprep.subr.bf16.mxu0 0
  %307 = vmatpush2.bf16.msra.mxu0 %v255
  %308 = vmatprep.subr.bf16.mxu0 0
  %309 = vmatpush2.bf16.msra.mxu0 %v254
  %310 = vmatprep.mubr.bf16.mxu0 %v151
  %311 = vmatmul.mubr.bf16.gmra.mxu0 %v150
  %v312 = vpop.f32.mrf.mxu0
  %v313 = vadd.f32 0.0, %v312
  %v314 = vpop.f32.mrf.mxu0
  %v315 = vpop.f32.mrf.mxu0
  %v316 = vadd.f32 0.0, %v315
  %v317 = vpop.f32.mrf.mxu0
  %318 = vmatprep.mubr.bf16.mxu0 %v153
  %319 = vmatmul.mubr.bf16.gmra.mxu0 %v152
  %v320 = vpop.f32.mrf.mxu0
  %v321 = vadd.f32 0.0, %v320
  %v322 = vpop.f32.mrf.mxu0
  %v323 = vpop.f32.mrf.mxu0
  %v324 = vadd.f32 0.0, %v323
  %v325 = vpop.f32.mrf.mxu0
  %326 = vmatprep.mubr.bf16.mxu0 %v155
  %327 = vmatmul.mubr.bf16.gmra.mxu0 %v154
  %v328 = vpop.f32.mrf.mxu0
  %v329 = vadd.f32 0.0, %v328
  %v330 = vpop.f32.mrf.mxu0
  %v331 = vpop.f32.mrf.mxu0
  %v332 = vadd.f32 0.0, %v331
  %v333 = vpop.f32.mrf.mxu0
  %334 = vmatprep.mubr.bf16.mxu0 %v157
  %335 = vmatmul.mubr.bf16.gmra.mxu0 %v156
  %v336 = vpop.f32.mrf.mxu0
  %v337 = vadd.f32 0.0, %v336
  %v338 = vpop.f32.mrf.mxu0
  %v339 = vpop.f32.mrf.mxu0
  %v340 = vadd.f32 0.0, %v339
  %v341 = vpop.f32.mrf.mxu0
  %342 = vmatprep.mubr.bf16.mxu0 %v159
  %343 = vmatmul.mubr.bf16.gmra.mxu0 %v158
  %v344 = vpop.f32.mrf.mxu0
  %v345 = vadd.f32 0.0, %v344
  %v346 = vpop.f32.mrf.mxu0
  %v347 = vpop.f32.mrf.mxu0
  %v348 = vadd.f32 0.0, %v347
  %v349 = vpop.f32.mrf.mxu0
  %350 = vmatprep.mubr.bf16.mxu0 %v161
  %351 = vmatmul.mubr.bf16.gmra.mxu0 %v160
  %v352 = vpop.f32.mrf.mxu0
  %v353 = vadd.f32 0.0, %v352
  %v354 = vpop.f32.mrf.mxu0
  %v355 = vpop.f32.mrf.mxu0
  %v356 = vadd.f32 0.0, %v355
  %v357 = vpop.f32.mrf.mxu0
  %358 = vmatprep.mubr.bf16.mxu0 %v163
  %359 = vmatmul.mubr.bf16.gmra.mxu0 %v162
  %v360 = vpop.f32.mrf.mxu0
  %v361 = vadd.f32 0.0, %v360
  %v362 = vpop.f32.mrf.mxu0
  %v363 = vpop.f32.mrf.mxu0
  %v364 = vadd.f32 0.0, %v363
  %v365 = vpop.f32.mrf.mxu0
  %366 = vmatprep.mubr.bf16.mxu0 %v165
  %367 = vmatmul.mubr.bf16.gmra.mxu0 %v164
  %v368 = vpop.f32.mrf.mxu0
  %v369 = vadd.f32 0.0, %v368
  %v370 = vpop.f32.mrf.mxu0
  %v371 = vpop.f32.mrf.mxu0
  %v372 = vadd.f32 0.0, %v371
  %v373 = vpop.f32.mrf.mxu0
  %374 = vdwg.mxu0
  %v375 = vadd.f32 %v38, %v313
  %v376 = vadd.f32 %v39, %v316
  %v377 = vadd.f32 %v40, %v321
  %v378 = vadd.f32 %v41, %v324
  %v379 = vadd.f32 %v42, %v329
  %v380 = vadd.f32 %v43, %v332
  %v381 = vadd.f32 %v44, %v337
  %v382 = vadd.f32 %v45, %v340
  %v383 = vadd.f32 %v46, %v345
  %v384 = vadd.f32 %v47, %v348
  %v385 = vadd.f32 %v48, %v353
  %v386 = vadd.f32 %v49, %v356
  %v387 = vadd.f32 %v50, %v361
  %v388 = vadd.f32 %v51, %v364
  %v389 = vadd.f32 %v52, %v369
  %v390 = vadd.f32 %v53, %v372
  %391 = vst [vmem:[#allocation2] sm:$0xff] %v375
  %392 = vst [vmem:[#allocation2 + $0x8] sm:$0xff] %v376
  %393 = vst [vmem:[#allocation2 + $0x10] sm:$0xff] %v377
  %394 = vst [vmem:[#allocation2 + $0x18] sm:$0xff] %v378
  %395 = vst [vmem:[#allocation2 + $0x20] sm:$0xff] %v379
  %396 = vst [vmem:[#allocation2 + $0x28] sm:$0xff] %v380
  %397 = vst [vmem:[#allocation2 + $0x30] sm:$0xff] %v381
  %398 = vst [vmem:[#allocation2 + $0x38] sm:$0xff] %v382
  %399 = vst [vmem:[#allocation2 + $0x40] sm:$0xff] %v383
  %400 = vst [vmem:[#allocation2 + $0x48] sm:$0xff] %v384
  %401 = vst [vmem:[#allocation2 + $0x50] sm:$0xff] %v385
  %402 = vst [vmem:[#allocation2 + $0x58] sm:$0xff] %v386
  %403 = vst [vmem:[#allocation2 + $0x60] sm:$0xff] %v387
  %404 = vst [vmem:[#allocation2 + $0x68] sm:$0xff] %v388
  %405 = vst [vmem:[#allocation2 + $0x70] sm:$0xff] %v389
  %406 = vst [vmem:[#allocation2 + $0x78] sm:$0xff] %v390
  // Predicated region
  $region22: #{bes_forward.12} parent=0 // pred_check
    %p407 = pneg %p18
  $region23: #{bes_forward.12} parent=0 // pred_check_branch
    %409 = sbr.rel (%p407) target = $region25
  $region24: #{bes_forward.12} parent=0 // pred_region
    %v410 = vld [vmem:[#allocation2] sm:$0xff]
    %v411 = vld [vmem:[#allocation2 + $0x8] sm:$0xff]
    %v412 = vld [vmem:[#allocation2 + $0x10] sm:$0xff]
    %v413 = vld [vmem:[#allocation2 + $0x18] sm:$0xff]
    %v414 = vld [vmem:[#allocation2 + $0x20] sm:$0xff]
    %v415 = vld [vmem:[#allocation2 + $0x28] sm:$0xff]
    %v416 = vld [vmem:[#allocation2 + $0x30] sm:$0xff]
    %v417 = vld [vmem:[#allocation2 + $0x38] sm:$0xff]
    %v418 = vld [vmem:[#allocation2 + $0x40] sm:$0xff]
    %v419 = vld [vmem:[#allocation2 + $0x48] sm:$0xff]
    %v420 = vld [vmem:[#allocation2 + $0x50] sm:$0xff]
    %v421 = vld [vmem:[#allocation2 + $0x58] sm:$0xff]
    %v422 = vld [vmem:[#allocation2 + $0x60] sm:$0xff]
    %v423 = vld [vmem:[#allocation2 + $0x68] sm:$0xff]
    %v424 = vld [vmem:[#allocation2 + $0x70] sm:$0xff]
    %v425 = vld [vmem:[#allocation2 + $0x78] sm:$0xff]
    %v426 = vld [vmem:[%s2] sm:$0x1]
    %v428 = vlaneseq
    %v429 = vshrl.u32 %v428, 7
    %v430 = vsub.s32 0, %v429
    %v431 = vrot.slane %v426, %v430
    %v433 = vmul.f32 %v410, %v431
    %v434 = vmul.f32 %v411, %v431
    %v435 = vmul.f32 %v412, %v431
    %v436 = vmul.f32 %v413, %v431
    %v437 = vmul.f32 %v414, %v431
    %v438 = vmul.f32 %v415, %v431
    %v439 = vmul.f32 %v416, %v431
    %v440 = vmul.f32 %v417, %v431
    %v441 = vmul.f32 %v418, %v431
    %v442 = vmul.f32 %v419, %v431
    %v443 = vmul.f32 %v420, %v431
    %v444 = vmul.f32 %v421, %v431
    %v445 = vmul.f32 %v422, %v431
    %v446 = vmul.f32 %v423, %v431
    %v447 = vmul.f32 %v424, %v431
    %v448 = vmul.f32 %v425, %v431
    %v449 = vld [vmem:[%s3] sm:$0x1]
    %v451 = vlaneseq
    %v452 = vshrl.u32 %v451, 7
    %v453 = vsub.s32 0, %v452
    %v454 = vrot.slane %v449, %v453
    %v456 = vadd.f32 %v433, %v454
    %v457 = vadd.f32 %v434, %v454
    %v458 = vadd.f32 %v435, %v454
    %v459 = vadd.f32 %v436, %v454
    %v460 = vadd.f32 %v437, %v454
    %v461 = vadd.f32 %v438, %v454
    %v462 = vadd.f32 %v439, %v454
    %v463 = vadd.f32 %v440, %v454
    %v464 = vadd.f32 %v441, %v454
    %v465 = vadd.f32 %v442, %v454
    %v466 = vadd.f32 %v443, %v454
    %v467 = vadd.f32 %v444, %v454
    %v468 = vadd.f32 %v445, %v454
    %v469 = vadd.f32 %v446, %v454
    %v470 = vadd.f32 %v447, %v454
    %v471 = vadd.f32 %v448, %v454
    %v472 = vmax.f32 %v456, 0.0
    %v473 = vmax.f32 %v457, 0.0
    %v474 = vmax.f32 %v458, 0.0
    %v475 = vmax.f32 %v459, 0.0
    %v476 = vmax.f32 %v460, 0.0
    %v477 = vmax.f32 %v461, 0.0
    %v478 = vmax.f32 %v462, 0.0
    %v479 = vmax.f32 %v463, 0.0
    %v480 = vmax.f32 %v464, 0.0
    %v481 = vmax.f32 %v465, 0.0
    %v482 = vmax.f32 %v466, 0.0
    %v483 = vmax.f32 %v467, 0.0
    %v484 = vmax.f32 %v468, 0.0
    %v485 = vmax.f32 %v469, 0.0
    %v486 = vmax.f32 %v470, 0.0
    %v487 = vmax.f32 %v471, 0.0
    %v488 = vpack.c.bf16 %v473, %v472
    %v489 = vpack.c.bf16 %v475, %v474
    %v490 = vpack.c.bf16 %v477, %v476
    %v491 = vpack.c.bf16 %v479, %v478
    %v492 = vpack.c.bf16 %v481, %v480
    %v493 = vpack.c.bf16 %v483, %v482
    %v494 = vpack.c.bf16 %v485, %v484
    %v495 = vpack.c.bf16 %v487, %v486
    %v504 = vunpack.c.l.b16 %v488
    %v505 = vunpack.c.h.b16 %v488
    %v506 = vunpack.c.l.b16 %v489
    %v507 = vunpack.c.h.b16 %v489
    %v508 = vunpack.c.l.b16 %v490
    %v509 = vunpack.c.h.b16 %v490
    %v510 = vunpack.c.l.b16 %v491
    %v511 = vunpack.c.h.b16 %v491
    %v512 = vunpack.c.l.b16 %v492
    %v513 = vunpack.c.h.b16 %v492
    %v514 = vunpack.c.l.b16 %v493
    %v515 = vunpack.c.h.b16 %v493
    %v516 = vunpack.c.l.b16 %v494
    %v517 = vunpack.c.h.b16 %v494
    %v518 = vunpack.c.l.b16 %v495
    %v519 = vunpack.c.h.b16 %v495
    %v520 = vpack.c.b16 %v504, %v504
    %v521 = vpack.c.b16 %v505, %v505
    %v522 = vpack.c.b16 %v506, %v506
    %v523 = vpack.c.b16 %v507, %v507
    %v524 = vpack.c.b16 %v508, %v508
    %v525 = vpack.c.b16 %v509, %v509
    %v526 = vpack.c.b16 %v510, %v510
    %v527 = vpack.c.b16 %v511, %v511
    %v528 = vpack.c.b16 %v512, %v512
    %v529 = vpack.c.b16 %v513, %v513
    %v530 = vpack.c.b16 %v514, %v514
    %v531 = vpack.c.b16 %v515, %v515
    %v532 = vpack.c.b16 %v516, %v516
    %v533 = vpack.c.b16 %v517, %v517
    %v534 = vpack.c.b16 %v518, %v518
    %v535 = vpack.c.b16 %v519, %v519
    %552 = vst [vmem:[%s4] sm:$0xf] %v520
    %553 = vst [vmem:[%s4 + $0x4] sm:$0xf] %v521
    %554 = vst [vmem:[%s4 + $0x8] sm:$0xf] %v522
    %555 = vst [vmem:[%s4 + $0xc] sm:$0xf] %v523
    %556 = vst [vmem:[%s4 + $0x10] sm:$0xf] %v524
    %557 = vst [vmem:[%s4 + $0x14] sm:$0xf] %v525
    %558 = vst [vmem:[%s4 + $0x18] sm:$0xf] %v526
    %559 = vst [vmem:[%s4 + $0x1c] sm:$0xf] %v527
    %560 = vst [vmem:[%s4 + $0x20] sm:$0xf] %v528
    %561 = vst [vmem:[%s4 + $0x24] sm:$0xf] %v529
    %562 = vst [vmem:[%s4 + $0x28] sm:$0xf] %v530
    %563 = vst [vmem:[%s4 + $0x2c] sm:$0xf] %v531
    %564 = vst [vmem:[%s4 + $0x30] sm:$0xf] %v532
    %565 = vst [vmem:[%s4 + $0x34] sm:$0xf] %v533
    %566 = vst [vmem:[%s4 + $0x38] sm:$0xf] %v534
    %567 = vst [vmem:[%s4 + $0x3c] sm:$0xf] %v535
  $region25: #{bes_forward.12} parent=0 // pred_fallthru
    _
  // Predicated region
  $region26: #{bes_forward.12} parent=0 // pred_check
    _
  $region27: #{bes_forward.12} parent=0 // pred_check_branch
    %569 = sbr.rel (0) target = $region29
  $region28: #{bes_forward.12} parent=0 // pred_region
    _
  $region29: #{bes_forward.12} parent=0 // pred_fallthru
    _
  // Predicated region
  $region30: #{bes_forward.12} parent=0 // pred_check
    _
  $region31: #{bes_forward.12} parent=0 // pred_check_branch
    %571 = sbr.rel (0) target = $region33
  $region32: #{bes_forward.12} parent=0 // pred_region
    _
  $region33: #{bes_forward.12} parent=0 // pred_fallthru
    _

// kernel: bes_forward.13
$region0: #{bes_forward.13}
  #allocation0 [shape = 'u32[]', space=smem, size = 0x4, offset = 0x4, fixed_abs, tag = 'smem constant byte address 0x4 - core index']
  #allocation1 [shape = 'u32[144,128]{1,0:T(1,128)}', space=vmem, size = 0x12000, scoped, tag = 'internal scratch']
  #allocation2 [shape = 'f32[1,16]{1,0:T(1,128)}', space=vmem, size = 0x200, scoped, tag = 'scratch operand']
  %s0 = inlined_call_operand.vmem [shape: bf16[2,64,16], index: 0, kind: input, shape index: {}]
  %s1 = inlined_call_operand.vmem [shape: f32[2,1,16], index: 1, kind: output, shape index: {}]
  %s2 = sld [smem:[#allocation0]]
  $region45: #{bes_forward.13} parent=0
    _
  %s4 = ssub.s32 1, %s2
  %s5 = scalar_select 0, %s4, %s2
  loop: start=0, step=1, limit=4
  $region2: #{bes_forward.13} parent=0 // loop_pre_header
    _
  $region3: #{bes_forward.13} parent=0 // loop_header
    %s7 = sphi 0, %s11
    %p8 = scmp.ge.s32.totalorder %s7, 4
    %s14 = sphi 0, %s26
    %s15 = sphi 0, %s22
    %s16 = sphi 0, %s14
    %s17 = sphi 0, %s15
    %s18 = sphi 0, %s16
    %s19 = sphi 0, %s17
    %s31 = sphi 0, %s33
    %s34 = sphi 0, %s31
    %s35 = sphi 0, %s34
    %s51 = sphi 0, %s35
    %s57 = sphi 0, %s59
    %s60 = sphi 0, %s57
    %s61 = sphi 0, %s60
    %s77 = sphi 0, %s61
  $region4: #{bes_forward.13} parent=0 // loop_header_branch
    %10 = sbr.rel (%p8) target = $region8
  $region5: #{bes_forward.13} parent=0 // loop_body
    %s12 = ssub.s32 %s7, 1
    %s13 = ssub.s32 %s7, 2
    %s20 = sadd.s32 1, %s15
    %p21 = scmp.ge.s32.totalorder %s20, 1
    %s22 = scalar_select %p21, 0, %s20
    %s23 = sadd.s32 1, %s14
    %s24 = scalar_select %p21, %s23, %s14
    %p25 = scmp.ge.s32.totalorder %s24, 2
    %s26 = scalar_select %p25, 0, %s24
    %s27 = ssub.s32 %s14, %s26
    %s28 = ssub.s32 %s15, %s22
    %s29 = sor.u32 %s27, %s28
    %p30 = scmp.eq.s32.totalorder %s29, 0
    %s32 = sadd.s32 %s31, 1
    %s33 = scalar_select %p30, %s31, %s32
    %p36 = pneg %p30
    %p37 = scmp.eq.s32.totalorder %s7, 1
    %p38 = por %p36, %p37
    %p39 = scmp.ne.s32.totalorder %s31, %s34
    %p40 = scmp.eq.s32.totalorder %s7, 0
    %p41 = por %p39, %p40
    %p42 = scmp.ne.s32.totalorder %s31, %s34
    %p43 = scmp.eq.s32.totalorder %s12, 1
    %p44 = por %p42, %p43
    %p45 = scmp.ne.s32.totalorder %s34, %s35
    %p46 = scmp.eq.s32.totalorder %s12, 0
    %p47 = por %p45, %p46
    %p48 = scmp.ne.s32.totalorder %s34, %s35
    %p49 = scmp.eq.s32.totalorder %s13, 1
    %p50 = por %p48, %p49
    %p52 = scmp.ne.s32.totalorder %s35, %s51
    %p53 = scmp.eq.s32.totalorder %s13, 0
    %p54 = por %p52, %p53
    %s55 = ssub.s32 %s14, %s26
    %p56 = scmp.eq.s32.totalorder %s55, 0
    %s58 = sadd.s32 %s57, 1
    %s59 = scalar_select %p56, %s57, %s58
    %p62 = pneg %p56
    %p63 = scmp.eq.s32.totalorder %s7, 1
    %p64 = por %p62, %p63
    %p65 = scmp.ne.s32.totalorder %s57, %s60
    %p66 = scmp.eq.s32.totalorder %s7, 0
    %p67 = por %p65, %p66
    %p68 = scmp.ne.s32.totalorder %s57, %s60
    %p69 = scmp.eq.s32.totalorder %s12, 1
    %p70 = por %p68, %p69
    %p71 = scmp.ne.s32.totalorder %s60, %s61
    %p72 = scmp.eq.s32.totalorder %s12, 0
    %p73 = por %p71, %p72
    %p74 = scmp.ne.s32.totalorder %s60, %s61
    %p75 = scmp.eq.s32.totalorder %s13, 1
    %p76 = por %p74, %p75
    %p78 = scmp.ne.s32.totalorder %s61, %s77
    %p79 = scmp.eq.s32.totalorder %s13, 0
    %p80 = por %p78, %p79
    %p81 = scmp.le.s32.totalorder 1, %s7
    %p82 = scmp.lt.s32.totalorder %s7, 3
    %p83 = pnand %p81, %p82
    %p84 = pneg %p83
    // Predicated region
    $region9: #{bes_forward.13} parent=5 // pred_check
      _
    $region10: #{bes_forward.13} parent=5 // pred_check_branch
      %86 = sbr.rel (%p83) target = $region12
    $region11: #{bes_forward.13} parent=5 // pred_region
      %s87 = ssub.s32 %s7, 1
    $region12: #{bes_forward.13} parent=5 // pred_fallthru
      _
    %p88 = scmp.lt.s32.totalorder %s7, 2
    // Predicated region
    $region13: #{bes_forward.13} parent=5 // pred_check
      %p89 = pneg %p88
    $region14: #{bes_forward.13} parent=5 // pred_check_branch
      %91 = sbr.rel (%p89) target = $region16
    $region15: #{bes_forward.13} parent=5 // pred_region
      // Predicated region
      $region17: #{bes_forward.13} parent=15 // pred_check
        %p92 = pneg %p41
      $region18: #{bes_forward.13} parent=15 // pred_check_branch
        %94 = sbr.rel (%p92) target = $region20
      $region19: #{bes_forward.13} parent=15 // pred_region
        %s95 = smul.u32 8, %s15
        %p96 = scmp.lt.s32.totalorder %s14, 1
        %s97 = scalar_select %p96, %s14, 1
        %p98 = scmp.lt.s32.totalorder %s95, 7
        %s99 = scalar_select %p98, %s95, 7
        %s100 = smul.addr %s97, 8
        %s101 = sadd.s32 %s99, %s100
        %s102 = smul.addr %s101, 4
        %s103 = scalar_lea.vmem %s0, %s102
        %s104 = smul.u32 8, %s15
      $region20: #{bes_forward.13} parent=15 // pred_fallthru
        _
    $region16: #{bes_forward.13} parent=5 // pred_fallthru
      _
    %p105 = scmp.le.s32.totalorder 1, %s7
    %p106 = scmp.lt.s32.totalorder %s7, 3
    %p107 = pnand %p105, %p106
    %p108 = pneg %p107
    // Predicated region
    $region21: #{bes_forward.13} parent=5 // pred_check
      _
    $region22: #{bes_forward.13} parent=5 // pred_check_branch
      %110 = sbr.rel (%p107) target = $region24
    $region23: #{bes_forward.13} parent=5 // pred_region
      %s111 = ssub.s32 %s7, 1
      %s112 = smul.u32 8, %s17
      %p113 = scmp.lt.s32.totalorder %s16, 1
      %s114 = scalar_select %p113, %s16, 1
      %p115 = scmp.lt.s32.totalorder %s112, 7
      %s116 = scalar_select %p115, %s112, 7
      %s117 = smul.addr %s114, 8
      %s118 = sadd.s32 %s116, %s117
      %s119 = smul.addr %s118, 4
      %s120 = scalar_lea.vmem %s0, %s119
      %p121 = pneg %p47
      %p122 = pneg %p44
      %p123 = pneg %p73
      %p124 = pneg %p70
      %p125 = scmp.lt.s32.totalorder %s16, 1
      %s126 = scalar_select %p125, %s16, 1
      %s127 = scalar_lea.vmem %s1, %s126
      %s128 = smul.u32 8, %s17
      %p129 = scmp.lt.s32.totalorder %s16, 1
      %s130 = scalar_select %p129, %s16, 1
      %p131 = scmp.lt.s32.totalorder %s128, 7
      %s132 = scalar_select %p131, %s128, 7
      %s133 = smul.addr %s130, 8
      %s134 = sadd.s32 %s132, %s133
      %s135 = smul.addr %s134, 4
      %s136 = scalar_lea.vmem %s0, %s135
      %s137 = smul.u32 8, %s17
      %p138 = scmp.lt.s32.totalorder %s16, 1
      %s139 = scalar_select %p138, %s16, 1
      %s140 = scalar_lea.vmem %s1, %s139
      %p141 = scmp.eq.s32.totalorder %s17, 0
      // Predicated region
      $region25: #{bes_forward.13} parent=23 // pred_check
        %p142 = pneg %p141
      $region26: #{bes_forward.13} parent=23 // pred_check_branch
        %144 = sbr.rel (%p142) target = $region28
      $region27: #{bes_forward.13} parent=23 // pred_region
        %vm145 = vcmask 122880
        %146 = vst.msk [vmem:[#allocation2] sm:$0x1] %vm145, 0.0
      $region28: #{bes_forward.13} parent=23 // pred_fallthru
        _
      %v147 = vld [vmem:[#allocation2] sm:$0x1]
      %v148 = vld [vmem:[%s136] sm:$0xf]
      %v149 = vld [vmem:[%s136 + $0x4] sm:$0xf]
      %v150 = vld [vmem:[%s136 + $0x8] sm:$0xf]
      %v151 = vld [vmem:[%s136 + $0xc] sm:$0xf]
      %v152 = vld [vmem:[%s136 + $0x10] sm:$0xf]
      %v153 = vld [vmem:[%s136 + $0x14] sm:$0xf]
      %v154 = vld [vmem:[%s136 + $0x18] sm:$0xf]
      %v155 = vld [vmem:[%s136 + $0x1c] sm:$0xf]
      %v156 = vunpack.c.l.bf16 %v148
      %v157 = vunpack.c.l.bf16 %v149
      %v158 = vunpack.c.l.bf16 %v150
      %v159 = vunpack.c.l.bf16 %v151
      %v160 = vunpack.c.l.bf16 %v152
      %v161 = vunpack.c.l.bf16 %v153
      %v162 = vunpack.c.l.bf16 %v154
      %v163 = vunpack.c.l.bf16 %v155
      %vm164 = vcmask 130048
      %v165 = vsel %vm164, %v156, 0.0
      %v166 = vsel %vm164, %v157, 0.0
      %v167 = vadd.f32 %v165, %v166
      %v168 = vsel %vm164, %v158, 0.0
      %v169 = vadd.f32 %v167, %v168
      %v170 = vsel %vm164, %v159, 0.0
      %v171 = vadd.f32 %v169, %v170
      %v172 = vsel %vm164, %v160, 0.0
      %v173 = vadd.f32 %v171, %v172
      %v174 = vsel %vm164, %v161, 0.0
      %v175 = vadd.f32 %v173, %v174
      %v176 = vsel %vm164, %v162, 0.0
      %v177 = vadd.f32 %v175, %v176
      %v178 = vsel %vm164, %v163, 0.0
      %v179 = vadd.f32 %v177, %v178
      %v180 = vrot.slane %v179, 4
      %v181 = vadd.f32 %v179, %v180
      %v182 = vrot.slane %v181, 2
      %v183 = vadd.f32 %v181, %v182
      %v184 = vrot.slane %v183, 1
      %v185 = vadd.f32 %v183, %v184
      %v186 = vadd.f32 %v147, %v185
      %vm187 = vcmask 122880
      %188 = vst.msk [vmem:[#allocation2] sm:$0x1] %vm187, %v186
      // Predicated region
      $region29: #{bes_forward.13} parent=23 // pred_check
        %p189 = pneg %p141
      $region30: #{bes_forward.13} parent=23 // pred_check_branch
        %191 = sbr.rel (%p189) target = $region32
      $region31: #{bes_forward.13} parent=23 // pred_region
        %v192 = vld [vmem:[#allocation2] sm:$0x1]
        %v193 = vmul.f32 %v192, 0.015625
        %194 = vst.msk [vmem:[%s140] sm:$0x1] %vm187, %v193
      $region32: #{bes_forward.13} parent=23 // pred_fallthru
        _
      %p195 = scmp.lt.s32.totalorder %s16, 1
      %s196 = scalar_select %p195, %s16, 1
      %s197 = scalar_lea.vmem %s1, %s196
      // Predicated region
      $region33: #{bes_forward.13} parent=23 // pred_check
        %p198 = pneg %p70
      $region34: #{bes_forward.13} parent=23 // pred_check_branch
        %200 = sbr.rel (%p198) target = $region36
      $region35: #{bes_forward.13} parent=23 // pred_region
        _
      $region36: #{bes_forward.13} parent=23 // pred_fallthru
        _
    $region24: #{bes_forward.13} parent=5 // pred_fallthru
      _
    %p201 = scmp.le.s32.totalorder 2, %s7
    // Predicated region
    $region37: #{bes_forward.13} parent=5 // pred_check
      %p202 = pneg %p201
    $region38: #{bes_forward.13} parent=5 // pred_check_branch
      %204 = sbr.rel (%p202) target = $region40
    $region39: #{bes_forward.13} parent=5 // pred_region
      %s205 = ssub.s32 %s7, 2
      // Predicated region
      $region41: #{bes_forward.13} parent=39 // pred_check
        %p206 = pneg %p76
      $region42: #{bes_forward.13} parent=39 // pred_check_branch
        %208 = sbr.rel (%p206) target = $region44
      $region43: #{bes_forward.13} parent=39 // pred_region
        %p209 = scmp.lt.s32.totalorder %s18, 1
        %s210 = scalar_select %p209, %s18, 1
        %s211 = scalar_lea.vmem %s1, %s210
      $region44: #{bes_forward.13} parent=39 // pred_fallthru
        _
    $region40: #{bes_forward.13} parent=5 // pred_fallthru
      _
  $region6: #{bes_forward.13} parent=0 // loop_footer
    %s11 = sadd.s32 1, %s7
  $region7: #{bes_forward.13} parent=0 // loop_footer_branch
    %6 = sbr.rel target = $region3
  $region8: #{bes_forward.13} parent=0 // loop_exit
    _

// kernel: bes_forward.14
$region0: #{bes_forward.14}
  #allocation0 [shape = 'u32[]', space=smem, size = 0x4, offset = 0x4, fixed_abs, tag = 'smem constant byte address 0x4 - core index']
  #allocation1 [shape = 'u32[144,128]{1,0:T(1,128)}', space=vmem, size = 0x12000, scoped, tag = 'internal scratch']
  #allocation2 [shape = 'f32[8,128]{1,0:T(8,128)}', space=vmem, size = 0x1000, scoped, tag = 'scratch operand']
  %s0 = inlined_call_operand.vmem [shape: bf16[8,256], index: 0, kind: input, shape index: {}]
  %s1 = inlined_call_operand.vmem [shape: bf16[256,128], index: 1, kind: input, shape index: {}]
  %s2 = inlined_call_operand.vmem [shape: f32[1,128], index: 2, kind: input, shape index: {}]
  %s3 = inlined_call_operand.vmem [shape: f32[1,128], index: 3, kind: input, shape index: {}]
  %s4 = inlined_call_operand.vmem [shape: bf16[8,128], index: 4, kind: output, shape index: {}]
  %s5 = sld [smem:[#allocation0]]
  $region34: #{bes_forward.14} parent=0
    _
  %s7 = ssub.s32 1, %s5
  %s8 = scalar_select 0, %s7, %s5
  // Predicated region
  $region2: #{bes_forward.14} parent=0 // pred_check
    _
  $region3: #{bes_forward.14} parent=0 // pred_check_branch
    %10 = sbr.rel (0) target = $region5
  $region4: #{bes_forward.14} parent=0 // pred_region
    _
  $region5: #{bes_forward.14} parent=0 // pred_fallthru
    _
  // Predicated region
  $region6: #{bes_forward.14} parent=0 // pred_check
    _
  $region7: #{bes_forward.14} parent=0 // pred_check_branch
    %12 = sbr.rel (0) target = $region9
  $region8: #{bes_forward.14} parent=0 // pred_region
    _
  $region9: #{bes_forward.14} parent=0 // pred_fallthru
    _
  // Predicated region
  $region10: #{bes_forward.14} parent=0 // pred_check
    _
  $region11: #{bes_forward.14} parent=0 // pred_check_branch
    %14 = sbr.rel (0) target = $region13
  $region12: #{bes_forward.14} parent=0 // pred_region
    _
  $region13: #{bes_forward.14} parent=0 // pred_fallthru
    _
  // Predicated region
  $region14: #{bes_forward.14} parent=0 // pred_check
    _
  $region15: #{bes_forward.14} parent=0 // pred_check_branch
    %16 = sbr.rel (0) target = $region17
  $region16: #{bes_forward.14} parent=0 // pred_region
    _
  $region17: #{bes_forward.14} parent=0 // pred_fallthru
    _
  %p18 = scmp.eq.s32.totalorder 0, 0
  // Predicated region
  $region18: #{bes_forward.14} parent=0 // pred_check
    %p19 = pneg %p18
  $region19: #{bes_forward.14} parent=0 // pred_check_branch
    %21 = sbr.rel (%p19) target = $region21
  $region20: #{bes_forward.14} parent=0 // pred_region
    %22 = vst [vmem:[#allocation2] sm:$0xff] 0.0
  $region21: #{bes_forward.14} parent=0 // pred_fallthru
    _
  %v23 = vld [vmem:[#allocation2] sm:$0xff]
  %v24 = vld [vmem:[%s0] sm:$0xff]
  %v25 = vld [vmem:[%s1] sm:$0xf]
  %v26 = vld [vmem:[%s1 + $0x4] sm:$0xf]
  %v27 = vld [vmem:[%s1 + $0x8] sm:$0xf]
  %v28 = vld [vmem:[%s1 + $0xc] sm:$0xf]
  %v29 = vld [vmem:[%s1 + $0x10] sm:$0xf]
  %v30 = vld [vmem:[%s1 + $0x14] sm:$0xf]
  %v31 = vld [vmem:[%s1 + $0x18] sm:$0xf]
  %v32 = vld [vmem:[%s1 + $0x1c] sm:$0xf]
  %v33 = vld [vmem:[%s1 + $0x20] sm:$0xf]
  %v34 = vld [vmem:[%s1 + $0x24] sm:$0xf]
  %v35 = vld [vmem:[%s1 + $0x28] sm:$0xf]
  %v36 = vld [vmem:[%s1 + $0x2c] sm:$0xf]
  %v37 = vld [vmem:[%s1 + $0x30] sm:$0xf]
  %v38 = vld [vmem:[%s1 + $0x34] sm:$0xf]
  %v39 = vld [vmem:[%s1 + $0x38] sm:$0xf]
  %v40 = vld [vmem:[%s1 + $0x3c] sm:$0xf]
  %v41 = vld [vmem:[%s1 + $0x40] sm:$0xf]
  %v42 = vld [vmem:[%s1 + $0x44] sm:$0xf]
  %v43 = vld [vmem:[%s1 + $0x48] sm:$0xf]
  %v44 = vld [vmem:[%s1 + $0x4c] sm:$0xf]
  %v45 = vld [vmem:[%s1 + $0x50] sm:$0xf]
  %v46 = vld [vmem:[%s1 + $0x54] sm:$0xf]
  %v47 = vld [vmem:[%s1 + $0x58] sm:$0xf]
  %v48 = vld [vmem:[%s1 + $0x5c] sm:$0xf]
  %v49 = vld [vmem:[%s1 + $0x60] sm:$0xf]
  %v50 = vld [vmem:[%s1 + $0x64] sm:$0xf]
  %v51 = vld [vmem:[%s1 + $0x68] sm:$0xf]
  %v52 = vld [vmem:[%s1 + $0x6c] sm:$0xf]
  %v53 = vld [vmem:[%s1 + $0x70] sm:$0xf]
  %v54 = vld [vmem:[%s1 + $0x74] sm:$0xf]
  %v55 = vld [vmem:[%s1 + $0x78] sm:$0xf]
  %v56 = vld [vmem:[%s1 + $0x7c] sm:$0xf]
  %v58 = vunpack.c.l.b16 %v24
  %v59 = vunpack.c.h.b16 %v24
  %v60 = vpack.c.b16 %v58, %v58
  %v61 = vpack.c.b16 %v59, %v59
  %v96 = vunpack.c.l.b16 %v25
  %v97 = vunpack.c.l.b16 %v26
  %v98 = vunpack.c.l.b16 %v27
  %v99 = vunpack.c.l.b16 %v28
  %v100 = vunpack.c.l.b16 %v29
  %v101 = vunpack.c.l.b16 %v30
  %v102 = vunpack.c.l.b16 %v31
  %v103 = vunpack.c.l.b16 %v32
  %v104 = vunpack.c.l.b16 %v33
  %v105 = vunpack.c.l.b16 %v34
  %v106 = vunpack.c.l.b16 %v35
  %v107 = vunpack.c.l.b16 %v36
  %v108 = vunpack.c.l.b16 %v37
  %v109 = vunpack.c.l.b16 %v38
  %v110 = vunpack.c.l.b16 %v39
  %v111 = vunpack.c.l.b16 %v40
  %v112 = vunpack.c.l.b16 %v41
  %v113 = vunpack.c.l.b16 %v42
  %v114 = vunpack.c.l.b16 %v43
  %v115 = vunpack.c.l.b16 %v44
  %v116 = vunpack.c.l.b16 %v45
  %v117 = vunpack.c.l.b16 %v46
  %v118 = vunpack.c.l.b16 %v47
  %v119 = vunpack.c.l.b16 %v48
  %v120 = vunpack.c.l.b16 %v49
  %v121 = vunpack.c.l.b16 %v50
  %v122 = vunpack.c.l.b16 %v51
  %v123 = vunpack.c.l.b16 %v52
  %v124 = vunpack.c.l.b16 %v53
  %v125 = vunpack.c.l.b16 %v54
  %v126 = vunpack.c.l.b16 %v55
  %v127 = vunpack.c.l.b16 %v56
  %v128 = vpack.c.b16 %v97, %v96
  %v129 = vpack.c.b16 %v99, %v98
  %v130 = vpack.c.b16 %v101, %v100
  %v131 = vpack.c.b16 %v103, %v102
  %v132 = vpack.c.b16 %v105, %v104
  %v133 = vpack.c.b16 %v107, %v106
  %v134 = vpack.c.b16 %v109, %v108
  %v135 = vpack.c.b16 %v111, %v110
  %v136 = vpack.c.b16 %v113, %v112
  %v137 = vpack.c.b16 %v115, %v114
  %v138 = vpack.c.b16 %v117, %v116
  %v139 = vpack.c.b16 %v119, %v118
  %v140 = vpack.c.b16 %v121, %v120
  %v141 = vpack.c.b16 %v123, %v122
  %v142 = vpack.c.b16 %v125, %v124
  %v143 = vpack.c.b16 %v127, %v126
  %160 = vmatprep.subr.bf16.mxu0 0
  %161 = vmatpush1.bf16.msra.mxu0 %v135
  %162 = vmatprep.subr.bf16.mxu0 0
  %163 = vmatpush1.bf16.msra.mxu0 %v134
  %164 = vmatprep.subr.bf16.mxu0 0
  %165 = vmatpush1.bf16.msra.mxu0 %v133
  %166 = vmatprep.subr.bf16.mxu0 0
  %167 = vmatpush1.bf16.msra.mxu0 %v132
  %168 = vmatprep.subr.bf16.mxu0 0
  %169 = vmatpush1.bf16.msra.mxu0 %v131
  %170 = vmatprep.subr.bf16.mxu0 0
  %171 = vmatpush1.bf16.msra.mxu0 %v130
  %172 = vmatprep.subr.bf16.mxu0 0
  %173 = vmatpush1.bf16.msra.mxu0 %v129
  %174 = vmatprep.subr.bf16.mxu0 0
  %175 = vmatpush1.bf16.msra.mxu0 %v128
  %176 = vmatprep.subr.bf16.mxu0 0
  %177 = vmatpush2.bf16.msra.mxu0 %v143
  %178 = vmatprep.subr.bf16.mxu0 0
  %179 = vmatpush2.bf16.msra.mxu0 %v142
  %180 = vmatprep.subr.bf16.mxu0 0
  %181 = vmatpush2.bf16.msra.mxu0 %v141
  %182 = vmatprep.subr.bf16.mxu0 0
  %183 = vmatpush2.bf16.msra.mxu0 %v140
  %184 = vmatprep.subr.bf16.mxu0 0
  %185 = vmatpush2.bf16.msra.mxu0 %v139
  %186 = vmatprep.subr.bf16.mxu0 0
  %187 = vmatpush2.bf16.msra.mxu0 %v138
  %188 = vmatprep.subr.bf16.mxu0 0
  %189 = vmatpush2.bf16.msra.mxu0 %v137
  %190 = vmatprep.subr.bf16.mxu0 0
  %191 = vmatpush2.bf16.msra.mxu0 %v136
  %192 = vmatprep.mubr.bf16.mxu0 %v61
  %193 = vmatmul.mubr.bf16.gmra.mxu0 %v60
  %v194 = vpop.f32.mrf.mxu0
  %v195 = vadd.f32 0.0, %v194
  %v196 = vpop.f32.mrf.mxu0
  %v197 = vpop.f32.mrf.mxu0
  %v198 = vpop.f32.mrf.mxu0
  %199 = vdwg.mxu0
  %v200 = vadd.f32 %v23, %v195
  %201 = vst [vmem:[#allocation2] sm:$0xff] %v200
  // Predicated region
  $region22: #{bes_forward.14} parent=0 // pred_check
    %p202 = pneg %p18
  $region23: #{bes_forward.14} parent=0 // pred_check_branch
    %204 = sbr.rel (%p202) target = $region25
  $region24: #{bes_forward.14} parent=0 // pred_region
    %v205 = vld [vmem:[#allocation2] sm:$0xff]
    %v206 = vld [vmem:[%s2] sm:$0x1]
    %v208 = vlaneseq
    %v209 = vshrl.u32 %v208, 7
    %v210 = vsub.s32 0, %v209
    %v211 = vrot.slane %v206, %v210
    %v213 = vmul.f32 %v205, %v211
    %v214 = vld [vmem:[%s3] sm:$0x1]
    %v216 = vlaneseq
    %v217 = vshrl.u32 %v216, 7
    %v218 = vsub.s32 0, %v217
    %v219 = vrot.slane %v214, %v218
    %v221 = vadd.f32 %v213, %v219
    %v222 = vmax.f32 %v221, 0.0
    %v223 = vpack.c.bf16 %v222, %v222
    %224 = vst [vmem:[%s4] sm:$0xf] %v223
  $region25: #{bes_forward.14} parent=0 // pred_fallthru
    _
  // Predicated region
  $region26: #{bes_forward.14} parent=0 // pred_check
    _
  $region27: #{bes_forward.14} parent=0 // pred_check_branch
    %226 = sbr.rel (0) target = $region29
  $region28: #{bes_forward.14} parent=0 // pred_region
    _
  $region29: #{bes_forward.14} parent=0 // pred_fallthru
    _
  // Predicated region
  $region30: #{bes_forward.14} parent=0 // pred_check
    _
  $region31: #{bes_forward.14} parent=0 // pred_check_branch
    %228 = sbr.rel (0) target = $region33
  $region32: #{bes_forward.14} parent=0 // pred_region
    _
  $region33: #{bes_forward.14} parent=0 // pred_fallthru
    _

// kernel: bes_forward.16
$region0: #{bes_forward.16}
  #allocation0 [shape = 'u32[]', space=smem, size = 0x4, offset = 0x4, fixed_abs, tag = 'smem constant byte address 0x4 - core index']
  #allocation1 [shape = 'u32[144,128]{1,0:T(1,128)}', space=vmem, size = 0x12000, scoped, tag = 'internal scratch']
  %s0 = inlined_call_operand.vmem [shape: bf16[16,8], index: 0, kind: input, shape index: {}]
  %s1 = inlined_call_operand.vmem [shape: bf16[2,8,1024], index: 1, kind: input, shape index: {}]
  %s2 = inlined_call_operand.vmem [shape: bf16[2,16,1024], index: 2, kind: output, shape index: {}]
  %s3 = sld [smem:[#allocation0]]
  $region41: #{bes_forward.16} parent=0
    _
  %s5 = ssub.s32 1, %s3
  %s6 = scalar_select 0, %s5, %s3
  loop: start=0, step=1, limit=4
  $region2: #{bes_forward.16} parent=0 // loop_pre_header
    _
  $region3: #{bes_forward.16} parent=0 // loop_header
    %s8 = sphi 0, %s12
    %p9 = scmp.ge.s32.totalorder %s8, 4
    %s15 = sphi 0, %s27
    %s16 = sphi 0, %s23
    %s17 = sphi 0, %s15
    %s18 = sphi 0, %s16
    %s19 = sphi 0, %s17
    %s20 = sphi 0, %s18
    %s28 = sphi 0, %s28
    %s30 = sphi 0, %s28
    %s31 = sphi 0, %s30
    %s45 = sphi 0, %s31
    %s53 = sphi 0, %s55
    %s56 = sphi 0, %s53
    %s57 = sphi 0, %s56
    %s73 = sphi 0, %s57
    %s81 = sphi 0, %s83
    %s84 = sphi 0, %s81
    %s85 = sphi 0, %s84
    %s101 = sphi 0, %s85
  $region4: #{bes_forward.16} parent=0 // loop_header_branch
    %11 = sbr.rel (%p9) target = $region8
  $region5: #{bes_forward.16} parent=0 // loop_body
    %s13 = ssub.s32 %s8, 1
    %s14 = ssub.s32 %s8, 2
    %s21 = sadd.s32 1, %s16
    %p22 = scmp.ge.s32.totalorder %s21, 1
    %s23 = scalar_select %p22, 0, %s21
    %s24 = sadd.s32 1, %s15
    %s25 = scalar_select %p22, %s24, %s15
    %p26 = scmp.ge.s32.totalorder %s25, 2
    %s27 = scalar_select %p26, 0, %s25
    %s29 = sadd.s32 %s28, 1
    %p32 = scmp.eq.s32.totalorder %s8, 1
    %p33 = scmp.ne.s32.totalorder %s28, %s30
    %p34 = scmp.eq.s32.totalorder %s8, 0
    %p35 = por %p33, %p34
    %p36 = scmp.ne.s32.totalorder %s28, %s30
    %p37 = scmp.eq.s32.totalorder %s13, 1
    %p38 = por %p36, %p37
    %p39 = scmp.ne.s32.totalorder %s30, %s31
    %p40 = scmp.eq.s32.totalorder %s13, 0
    %p41 = por %p39, %p40
    %p42 = scmp.ne.s32.totalorder %s30, %s31
    %p43 = scmp.eq.s32.totalorder %s14, 1
    %p44 = por %p42, %p43
    %p46 = scmp.ne.s32.totalorder %s31, %s45
    %p47 = scmp.eq.s32.totalorder %s14, 0
    %p48 = por %p46, %p47
    %s49 = ssub.s32 %s15, %s27
    %s50 = ssub.s32 %s16, %s23
    %s51 = sor.u32 %s49, %s50
    %p52 = scmp.eq.s32.totalorder %s51, 0
    %s54 = sadd.s32 %s53, 1
    %s55 = scalar_select %p52, %s53, %s54
    %p58 = pneg %p52
    %p59 = scmp.eq.s32.totalorder %s8, 1
    %p60 = por %p58, %p59
    %p61 = scmp.ne.s32.totalorder %s53, %s56
    %p62 = scmp.eq.s32.totalorder %s8, 0
    %p63 = por %p61, %p62
    %p64 = scmp.ne.s32.totalorder %s53, %s56
    %p65 = scmp.eq.s32.totalorder %s13, 1
    %p66 = por %p64, %p65
    %p67 = scmp.ne.s32.totalorder %s56, %s57
    %p68 = scmp.eq.s32.totalorder %s13, 0
    %p69 = por %p67, %p68
    %p70 = scmp.ne.s32.totalorder %s56, %s57
    %p71 = scmp.eq.s32.totalorder %s14, 1
    %p72 = por %p70, %p71
    %p74 = scmp.ne.s32.totalorder %s57, %s73
    %p75 = scmp.eq.s32.totalorder %s14, 0
    %p76 = por %p74, %p75
    %s77 = ssub.s32 %s15, %s27
    %s78 = ssub.s32 %s16, %s23
    %s79 = sor.u32 %s77, %s78
    %p80 = scmp.eq.s32.totalorder %s79, 0
    %s82 = sadd.s32 %s81, 1
    %s83 = scalar_select %p80, %s81, %s82
    %p86 = pneg %p80
    %p87 = scmp.eq.s32.totalorder %s8, 1
    %p88 = por %p86, %p87
    %p89 = scmp.ne.s32.totalorder %s81, %s84
    %p90 = scmp.eq.s32.totalorder %s8, 0
    %p91 = por %p89, %p90
    %p92 = scmp.ne.s32.totalorder %s81, %s84
    %p93 = scmp.eq.s32.totalorder %s13, 1
    %p94 = por %p92, %p93
    %p95 = scmp.ne.s32.totalorder %s84, %s85
    %p96 = scmp.eq.s32.totalorder %s13, 0
    %p97 = por %p95, %p96
    %p98 = scmp.ne.s32.totalorder %s84, %s85
    %p99 = scmp.eq.s32.totalorder %s14, 1
    %p100 = por %p98, %p99
    %p102 = scmp.ne.s32.totalorder %s85, %s101
    %p103 = scmp.eq.s32.totalorder %s14, 0
    %p104 = por %p102, %p103
    %p105 = scmp.le.s32.totalorder 1, %s8
    %p106 = scmp.lt.s32.totalorder %s8, 3
    %p107 = pnand %p105, %p106
    %p108 = pneg %p107
    // Predicated region
    $region9: #{bes_forward.16} parent=5 // pred_check
      _
    $region10: #{bes_forward.16} parent=5 // pred_check_branch
      %110 = sbr.rel (%p107) target = $region12
    $region11: #{bes_forward.16} parent=5 // pred_region
      %s111 = ssub.s32 %s8, 1
      // Predicated region
      $region13: #{bes_forward.16} parent=11 // pred_check
        %p112 = pneg %p41
      $region14: #{bes_forward.16} parent=11 // pred_check_branch
        %114 = sbr.rel (%p112) target = $region16
      $region15: #{bes_forward.16} parent=11 // pred_region
        _
      $region16: #{bes_forward.16} parent=11 // pred_fallthru
        _
    $region12: #{bes_forward.16} parent=5 // pred_fallthru
      _
    %p115 = scmp.lt.s32.totalorder %s8, 2
    // Predicated region
    $region17: #{bes_forward.16} parent=5 // pred_check
      %p116 = pneg %p115
    $region18: #{bes_forward.16} parent=5 // pred_check_branch
      %118 = sbr.rel (%p116) target = $region20
    $region19: #{bes_forward.16} parent=5 // pred_region
      // Predicated region
      $region21: #{bes_forward.16} parent=19 // pred_check
        %p119 = pneg %p63
      $region22: #{bes_forward.16} parent=19 // pred_check_branch
        %121 = sbr.rel (%p119) target = $region24
      $region23: #{bes_forward.16} parent=19 // pred_region
        %s122 = smul.u32 8, %s16
        %p123 = scmp.lt.s32.totalorder %s15, 1
        %s124 = scalar_select %p123, %s15, 1
        %p125 = scmp.lt.s32.totalorder %s122, 7
        %s126 = scalar_select %p125, %s122, 7
        %s127 = smul.addr %s124, 8
        %s128 = sadd.s32 %s126, %s127
        %s129 = smul.addr %s128, 4
        %s130 = scalar_lea.vmem %s1, %s129
        %s131 = smul.u32 8, %s16
      $region24: #{bes_forward.16} parent=19 // pred_fallthru
        _
    $region20: #{bes_forward.16} parent=5 // pred_fallthru
      _
    %p132 = scmp.le.s32.totalorder 1, %s8
    %p133 = scmp.lt.s32.totalorder %s8, 3
    %p134 = pnand %p132, %p133
    %p135 = pneg %p134
    // Predicated region
    $region25: #{bes_forward.16} parent=5 // pred_check
      _
    $region26: #{bes_forward.16} parent=5 // pred_check_branch
      %137 = sbr.rel (%p134) target = $region28
    $region27: #{bes_forward.16} parent=5 // pred_region
      %s138 = ssub.s32 %s8, 1
      %p139 = pneg %p41
      %p140 = pneg %p38
      %s141 = smul.u32 8, %s18
      %p142 = scmp.lt.s32.totalorder %s17, 1
      %s143 = scalar_select %p142, %s17, 1
      %p144 = scmp.lt.s32.totalorder %s141, 7
      %s145 = scalar_select %p144, %s141, 7
      %s146 = smul.addr %s143, 8
      %s147 = sadd.s32 %s145, %s146
      %s148 = smul.addr %s147, 4
      %s149 = scalar_lea.vmem %s1, %s148
      %p150 = pneg %p69
      %p151 = pneg %p66
      %p152 = pneg %p97
      %p153 = pneg %p94
      %s154 = smul.u32 8, %s18
      %p155 = scmp.lt.s32.totalorder %s17, 1
      %s156 = scalar_select %p155, %s17, 1
      %p157 = scmp.lt.s32.totalorder %s154, 7
      %s158 = scalar_select %p157, %s154, 7
      %s159 = smul.addr %s156, 16
      %s160 = sadd.s32 %s158, %s159
      %s161 = smul.addr %s160, 4
      %s162 = scalar_lea.vmem %s2, %s161
      %s163 = smul.u32 8, %s18
      %p164 = scmp.lt.s32.totalorder %s17, 1
      %s165 = scalar_select %p164, %s17, 1
      %p166 = scmp.lt.s32.totalorder %s163, 7
      %s167 = scalar_select %p166, %s163, 7
      %s168 = smul.addr %s165, 8
      %s169 = sadd.s32 %s167, %s168
      %s170 = smul.addr %s169, 4
      %s171 = scalar_lea.vmem %s1, %s170
      %s172 = smul.u32 8, %s18
      %s173 = smul.u32 8, %s18
      %p174 = scmp.lt.s32.totalorder %s17, 1
      %s175 = scalar_select %p174, %s17, 1
      %p176 = scmp.lt.s32.totalorder %s173, 7
      %s177 = scalar_select %p176, %s173, 7
      %s178 = smul.addr %s175, 16
      %s179 = sadd.s32 %s177, %s178
      %s180 = smul.addr %s179, 4
      %s181 = scalar_lea.vmem %s2, %s180
      %s182 = smul.u32 8, %s18
      %v184 = vld [vmem:[%s0] sm:$0xf]
      %v185 = vld [vmem:[%s0 + $0x4] sm:$0xf]
      %v186 = vld [vmem:[%s171] sm:$0xff]
      %v187 = vld [vmem:[%s171 + $0x8] sm:$0xff]
      %v188 = vld [vmem:[%s171 + $0x10] sm:$0xff]
      %v189 = vld [vmem:[%s171 + $0x18] sm:$0xff]
      %v192 = vunpack.c.l.b16 %v184
      %v193 = vunpack.c.l.b16 %v185
      %v194 = vpack.c.b16 %v193, %v192
      %v199 = vunpack.c.l.b16 %v186
      %v200 = vunpack.c.h.b16 %v186
      %v201 = vunpack.c.l.b16 %v187
      %v202 = vunpack.c.h.b16 %v187
      %v203 = vunpack.c.l.b16 %v188
      %v204 = vunpack.c.h.b16 %v188
      %v205 = vunpack.c.l.b16 %v189
      %v206 = vunpack.c.h.b16 %v189
      %v207 = vpack.c.b16 %v199, %v199
      %v208 = vpack.c.b16 %v200, %v200
      %v209 = vpack.c.b16 %v201, %v201
      %v210 = vpack.c.b16 %v202, %v202
      %v211 = vpack.c.b16 %v203, %v203
      %v212 = vpack.c.b16 %v204, %v204
      %v213 = vpack.c.b16 %v205, %v205
      %v214 = vpack.c.b16 %v206, %v206
      %vm215 = vcmask 64512
      %v217 = vsel %vm215, %v194, 0
      %vm219 = vcmask 1043456
      %v221 = vsel %vm219, %v207, 0
      %v224 = vsel %vm219, %v208, 0
      %v227 = vsel %vm219, %v209, 0
      %v230 = vsel %vm219, %v210, 0
      %v233 = vsel %vm219, %v211, 0
      %v236 = vsel %vm219, %v212, 0
      %v239 = vsel %vm219, %v213, 0
      %v242 = vsel %vm219, %v214, 0
      %244 = vmatprep.subr.bf16.mxu0 0
      %245 = vmatpush1.bf16.msra.mxu0 0
      %246 = vmatprep.subr.bf16.mxu0 0
      %247 = vmatpush1.bf16.msra.mxu0 0
      %248 = vmatprep.subr.bf16.mxu0 0
      %249 = vmatpush1.bf16.msra.mxu0 0
      %250 = vmatprep.subr.bf16.mxu0 0
      %251 = vmatpush1.bf16.msra.mxu0 0
      %252 = vmatprep.subr.bf16.mxu0 0
      %253 = vmatpush1.bf16.msra.mxu0 0
      %254 = vmatprep.subr.bf16.mxu0 0
      %255 = vmatpush1.bf16.msra.mxu0 0
      %256 = vmatprep.subr.bf16.mxu0 0
      %257 = vmatpush1.bf16.msra.mxu0 0
      %258 = vmatprep.subr.bf16.mxu0 %v224
      %259 = vmatpush1.bf16.msra.mxu0 %v221
      %260 = vmatprep.subr.bf16.mxu0 0
      %261 = vmatpush2.bf16.msra.mxu0 0
      %262 = vmatprep.subr.bf16.mxu0 0
      %263 = vmatpush2.bf16.msra.mxu0 0
      %264 = vmatprep.subr.bf16.mxu0 0
      %265 = vmatpush2.bf16.msra.mxu0 0
      %266 = vmatprep.subr.bf16.mxu0 0
      %267 = vmatpush2.bf16.msra.mxu0 0
      %268 = vmatprep.subr.bf16.mxu0 0
      %269 = vmatpush2.bf16.msra.mxu0 0
      %270 = vmatprep.subr.bf16.mxu0 0
      %271 = vmatpush2.bf16.msra.mxu0 0
      %272 = vmatprep.subr.bf16.mxu0 0
      %273 = vmatpush2.bf16.msra.mxu0 0
      %274 = vmatprep.subr.bf16.mxu0 0
      %275 = vmatpush2.bf16.msra.mxu0 0
      %276 = vmatprep.mubr.bf16.mxu0 0
      %277 = vmatmul.mubr.bf16.gmra.mxu0 %v217
      %v278 = vpop.f32.mrf.mxu0
      %v279 = vadd.f32 0.0, %v278
      %v280 = vpop.f32.mrf.mxu0
      %v281 = vadd.f32 0.0, %v280
      %v282 = vpop.f32.mrf.mxu0
      %v283 = vadd.f32 0.0, %v282
      %v284 = vpop.f32.mrf.mxu0
      %v285 = vadd.f32 0.0, %v284
      %286 = vdwg.mxu0
      %287 = vmatprep.subr.bf16.mxu0 0
      %288 = vmatpush1.bf16.msra.mxu0 0
      %289 = vmatprep.subr.bf16.mxu0 0
      %290 = vmatpush1.bf16.msra.mxu0 0
      %291 = vmatprep.subr.bf16.mxu0 0
      %292 = vmatpush1.bf16.msra.mxu0 0
      %293 = vmatprep.subr.bf16.mxu0 0
      %294 = vmatpush1.bf16.msra.mxu0 0
      %295 = vmatprep.subr.bf16.mxu0 0
      %296 = vmatpush1.bf16.msra.mxu0 0
      %297 = vmatprep.subr.bf16.mxu0 0
      %298 = vmatpush1.bf16.msra.mxu0 0
      %299 = vmatprep.subr.bf16.mxu0 0
      %300 = vmatpush1.bf16.msra.mxu0 0
      %301 = vmatprep.subr.bf16.mxu0 %v230
      %302 = vmatpush1.bf16.msra.mxu0 %v227
      %303 = vmatprep.subr.bf16.mxu0 0
      %304 = vmatpush2.bf16.msra.mxu0 0
      %305 = vmatprep.subr.bf16.mxu0 0
      %306 = vmatpush2.bf16.msra.mxu0 0
      %307 = vmatprep.subr.bf16.mxu0 0
      %308 = vmatpush2.bf16.msra.mxu0 0
      %309 = vmatprep.subr.bf16.mxu0 0
      %310 = vmatpush2.bf16.msra.mxu0 0
      %311 = vmatprep.subr.bf16.mxu0 0
      %312 = vmatpush2.bf16.msra.mxu0 0
      %313 = vmatprep.subr.bf16.mxu0 0
      %314 = vmatpush2.bf16.msra.mxu0 0
      %315 = vmatprep.subr.bf16.mxu0 0
      %316 = vmatpush2.bf16.msra.mxu0 0
      %317 = vmatprep.subr.bf16.mxu0 0
      %318 = vmatpush2.bf16.msra.mxu0 0
      %319 = vmatprep.mubr.bf16.mxu0 0
      %320 = vmatmul.mubr.bf16.gmra.mxu0 %v217
      %v321 = vpop.f32.mrf.mxu0
      %v322 = vadd.f32 0.0, %v321
      %v323 = vpop.f32.mrf.mxu0
      %v324 = vadd.f32 0.0, %v323
      %v325 = vpop.f32.mrf.mxu0
      %v326 = vadd.f32 0.0, %v325
      %v327 = vpop.f32.mrf.mxu0
      %v328 = vadd.f32 0.0, %v327
      %329 = vdwg.mxu0
      %330 = vmatprep.subr.bf16.mxu0 0
      %331 = vmatpush1.bf16.msra.mxu0 0
      %332 = vmatprep.subr.bf16.mxu0 0
      %333 = vmatpush1.bf16.msra.mxu0 0
      %334 = vmatprep.subr.bf16.mxu0 0
      %335 = vmatpush1.bf16.msra.mxu0 0
      %336 = vmatprep.subr.bf16.mxu0 0
      %337 = vmatpush1.bf16.msra.mxu0 0
      %338 = vmatprep.subr.bf16.mxu0 0
      %339 = vmatpush1.bf16.msra.mxu0 0
      %340 = vmatprep.subr.bf16.mxu0 0
      %341 = vmatpush1.bf16.msra.mxu0 0
      %342 = vmatprep.subr.bf16.mxu0 0
      %343 = vmatpush1.bf16.msra.mxu0 0
      %344 = vmatprep.subr.bf16.mxu0 %v236
      %345 = vmatpush1.bf16.msra.mxu0 %v233
      %346 = vmatprep.subr.bf16.mxu0 0
      %347 = vmatpush2.bf16.msra.mxu0 0
      %348 = vmatprep.subr.bf16.mxu0 0
      %349 = vmatpush2.bf16.msra.mxu0 0
      %350 = vmatprep.subr.bf16.mxu0 0
      %351 = vmatpush2.bf16.msra.mxu0 0
      %352 = vmatprep.subr.bf16.mxu0 0
      %353 = vmatpush2.bf16.msra.mxu0 0
      %354 = vmatprep.subr.bf16.mxu0 0
      %355 = vmatpush2.bf16.msra.mxu0 0
      %356 = vmatprep.subr.bf16.mxu0 0
      %357 = vmatpush2.bf16.msra.mxu0 0
      %358 = vmatprep.subr.bf16.mxu0 0
      %359 = vmatpush2.bf16.msra.mxu0 0
      %360 = vmatprep.subr.bf16.mxu0 0
      %361 = vmatpush2.bf16.msra.mxu0 0
      %362 = vmatprep.mubr.bf16.mxu0 0
      %363 = vmatmul.mubr.bf16.gmra.mxu0 %v217
      %v364 = vpop.f32.mrf.mxu0
      %v365 = vadd.f32 0.0, %v364
      %v366 = vpop.f32.mrf.mxu0
      %v367 = vadd.f32 0.0, %v366
      %v368 = vpop.f32.mrf.mxu0
      %v369 = vadd.f32 0.0, %v368
      %v370 = vpop.f32.mrf.mxu0
      %v371 = vadd.f32 0.0, %v370
      %372 = vdwg.mxu0
      %373 = vmatprep.subr.bf16.mxu0 0
      %374 = vmatpush1.bf16.msra.mxu0 0
      %375 = vmatprep.subr.bf16.mxu0 0
      %376 = vmatpush1.bf16.msra.mxu0 0
      %377 = vmatprep.subr.bf16.mxu0 0
      %378 = vmatpush1.bf16.msra.mxu0 0
      %379 = vmatprep.subr.bf16.mxu0 0
      %380 = vmatpush1.bf16.msra.mxu0 0
      %381 = vmatprep.subr.bf16.mxu0 0
      %382 = vmatpush1.bf16.msra.mxu0 0
      %383 = vmatprep.subr.bf16.mxu0 0
      %384 = vmatpush1.bf16.msra.mxu0 0
      %385 = vmatprep.subr.bf16.mxu0 0
      %386 = vmatpush1.bf16.msra.mxu0 0
      %387 = vmatprep.subr.bf16.mxu0 %v242
      %388 = vmatpush1.bf16.msra.mxu0 %v239
      %389 = vmatprep.subr.bf16.mxu0 0
      %390 = vmatpush2.bf16.msra.mxu0 0
      %391 = vmatprep.subr.bf16.mxu0 0
      %392 = vmatpush2.bf16.msra.mxu0 0
      %393 = vmatprep.subr.bf16.mxu0 0
      %394 = vmatpush2.bf16.msra.mxu0 0
      %395 = vmatprep.subr.bf16.mxu0 0
      %396 = vmatpush2.bf16.msra.mxu0 0
      %397 = vmatprep.subr.bf16.mxu0 0
      %398 = vmatpush2.bf16.msra.mxu0 0
      %399 = vmatprep.subr.bf16.mxu0 0
      %400 = vmatpush2.bf16.msra.mxu0 0
      %401 = vmatprep.subr.bf16.mxu0 0
      %402 = vmatpush2.bf16.msra.mxu0 0
      %403 = vmatprep.subr.bf16.mxu0 0
      %404 = vmatpush2.bf16.msra.mxu0 0
      %405 = vmatprep.mubr.bf16.mxu0 0
      %406 = vmatmul.mubr.bf16.gmra.mxu0 %v217
      %v407 = vpop.f32.mrf.mxu0
      %v408 = vadd.f32 0.0, %v407
      %v409 = vpop.f32.mrf.mxu0
      %v410 = vadd.f32 0.0, %v409
      %v411 = vpop.f32.mrf.mxu0
      %v412 = vadd.f32 0.0, %v411
      %v413 = vpop.f32.mrf.mxu0
      %v414 = vadd.f32 0.0, %v413
      %415 = vdwg.mxu0
      %v416 = vpack.c.bf16 %v283, %v279
      %v417 = vpack.c.bf16 %v285, %v281
      %v418 = vpack.c.bf16 %v326, %v322
      %v419 = vpack.c.bf16 %v328, %v324
      %v420 = vpack.c.bf16 %v369, %v365
      %v421 = vpack.c.bf16 %v371, %v367
      %v422 = vpack.c.bf16 %v412, %v408
      %v423 = vpack.c.bf16 %v414, %v410
      %v432 = vunpack.c.l.b16 %v416
      %v433 = vunpack.c.l.b16 %v417
      %v434 = vunpack.c.l.b16 %v418
      %v435 = vunpack.c.l.b16 %v419
      %v436 = vunpack.c.l.b16 %v420
      %v437 = vunpack.c.l.b16 %v421
      %v438 = vunpack.c.l.b16 %v422
      %v439 = vunpack.c.l.b16 %v423
      %v440 = vunpack.c.h.b16 %v416
      %v441 = vunpack.c.h.b16 %v417
      %v442 = vunpack.c.h.b16 %v418
      %v443 = vunpack.c.h.b16 %v419
      %v444 = vunpack.c.h.b16 %v420
      %v445 = vunpack.c.h.b16 %v421
      %v446 = vunpack.c.h.b16 %v422
      %v447 = vunpack.c.h.b16 %v423
      %v448 = vpack.c.b16 %v433, %v432
      %v449 = vpack.c.b16 %v435, %v434
      %v450 = vpack.c.b16 %v437, %v436
      %v451 = vpack.c.b16 %v439, %v438
      %v452 = vpack.c.b16 %v441, %v440
      %v453 = vpack.c.b16 %v443, %v442
      %v454 = vpack.c.b16 %v445, %v444
      %v455 = vpack.c.b16 %v447, %v446
      %464 = vst [vmem:[%s181] sm:$0xff] %v448
      %465 = vst [vmem:[%s181 + $0x8] sm:$0xff] %v449
      %466 = vst [vmem:[%s181 + $0x10] sm:$0xff] %v450
      %467 = vst [vmem:[%s181 + $0x18] sm:$0xff] %v451
      %468 = vst [vmem:[%s181 + $0x20] sm:$0xff] %v452
      %469 = vst [vmem:[%s181 + $0x28] sm:$0xff] %v453
      %470 = vst [vmem:[%s181 + $0x30] sm:$0xff] %v454
      %471 = vst [vmem:[%s181 + $0x38] sm:$0xff] %v455
      %s472 = smul.u32 8, %s18
      %p473 = scmp.lt.s32.totalorder %s17, 1
      %s474 = scalar_select %p473, %s17, 1
      %p475 = scmp.lt.s32.totalorder %s472, 7
      %s476 = scalar_select %p475, %s472, 7
      %s477 = smul.addr %s474, 16
      %s478 = sadd.s32 %s476, %s477
      %s479 = smul.addr %s478, 4
      %s480 = scalar_lea.vmem %s2, %s479
      // Predicated region
      $region29: #{bes_forward.16} parent=27 // pred_check
        %p481 = pneg %p94
      $region30: #{bes_forward.16} parent=27 // pred_check_branch
        %483 = sbr.rel (%p481) target = $region32
      $region31: #{bes_forward.16} parent=27 // pred_region
        %s484 = smul.u32 8, %s18
      $region32: #{bes_forward.16} parent=27 // pred_fallthru
        _
    $region28: #{bes_forward.16} parent=5 // pred_fallthru
      _
    %p485 = scmp.le.s32.totalorder 2, %s8
    // Predicated region
    $region33: #{bes_forward.16} parent=5 // pred_check
      %p486 = pneg %p485
    $region34: #{bes_forward.16} parent=5 // pred_check_branch
      %488 = sbr.rel (%p486) target = $region36
    $region35: #{bes_forward.16} parent=5 // pred_region
      %s489 = ssub.s32 %s8, 2
      // Predicated region
      $region37: #{bes_forward.16} parent=35 // pred_check
        %p490 = pneg %p100
      $region38: #{bes_forward.16} parent=35 // pred_check_branch
        %492 = sbr.rel (%p490) target = $region40
      $region39: #{bes_forward.16} parent=35 // pred_region
        %s493 = smul.u32 8, %s20
        %p494 = scmp.lt.s32.totalorder %s19, 1
        %s495 = scalar_select %p494, %s19, 1
        %p496 = scmp.lt.s32.totalorder %s493, 7
        %s497 = scalar_select %p496, %s493, 7
        %s498 = smul.addr %s495, 16
        %s499 = sadd.s32 %s497, %s498
        %s500 = smul.addr %s499, 4
        %s501 = scalar_lea.vmem %s2, %s500
      $region40: #{bes_forward.16} parent=35 // pred_fallthru
        _
    $region36: #{bes_forward.16} parent=5 // pred_fallthru
      _
  $region6: #{bes_forward.16} parent=0 // loop_footer
    %s12 = sadd.s32 1, %s8
  $region7: #{bes_forward.16} parent=0 // loop_footer_branch
    %7 = sbr.rel target = $region3
  $region8: #{bes_forward.16} parent=0 // loop_exit
    _

// kernel: bes_forward.17
$region0: #{bes_forward.17}
  #allocation0 [shape = 'u32[]', space=smem, size = 0x4, offset = 0x4, fixed_abs, tag = 'smem constant byte address 0x4 - core index']
  #allocation1 [shape = 'u32[144,128]{1,0:T(1,128)}', space=vmem, size = 0x12000, scoped, tag = 'internal scratch']
  %s0 = inlined_call_operand.vmem [shape: bf16[16,8], index: 0, kind: input, shape index: {}]
  %s1 = inlined_call_operand.vmem [shape: bf16[2,16,8,128], index: 1, kind: input, shape index: {}]
  %s2 = inlined_call_operand.vmem [shape: f32[2,16,16,128], index: 2, kind: input, shape index: {}]
  %s3 = inlined_call_operand.vmem [shape: f32[2,16,16,128], index: 3, kind: input, shape index: {}]
  %s4 = inlined_call_operand.vmem [shape: f32[2,16,16,128], index: 4, kind: output, shape index: {}]
  %s5 = sld [smem:[#allocation0]]
  $region49: #{bes_forward.17} parent=0
    _
  %s7 = ssub.s32 1, %s5
  %s8 = scalar_select 0, %s7, %s5
  loop: start=0, step=1, limit=6
  $region2: #{bes_forward.17} parent=0 // loop_pre_header
    _
  $region3: #{bes_forward.17} parent=0 // loop_header
    %s10 = sphi 0, %s14
    %p11 = scmp.ge.s32.totalorder %s10, 6
    %s17 = sphi 0, %s29
    %s18 = sphi 0, %s25
    %s19 = sphi 0, %s17
    %s20 = sphi 0, %s18
    %s21 = sphi 0, %s19
    %s22 = sphi 0, %s20
    %s30 = sphi 0, %s30
    %s32 = sphi 0, %s30
    %s33 = sphi 0, %s32
    %s47 = sphi 0, %s33
    %s55 = sphi 0, %s57
    %s58 = sphi 0, %s55
    %s59 = sphi 0, %s58
    %s75 = sphi 0, %s59
    %s83 = sphi 0, %s85
    %s86 = sphi 0, %s83
    %s87 = sphi 0, %s86
    %s103 = sphi 0, %s87
    %s111 = sphi 0, %s113
    %s114 = sphi 0, %s111
    %s115 = sphi 0, %s114
    %s131 = sphi 0, %s115
    %s139 = sphi 0, %s141
    %s142 = sphi 0, %s139
    %s143 = sphi 0, %s142
    %s159 = sphi 0, %s143
  $region4: #{bes_forward.17} parent=0 // loop_header_branch
    %13 = sbr.rel (%p11) target = $region8
  $region5: #{bes_forward.17} parent=0 // loop_body
    %s15 = ssub.s32 %s10, 1
    %s16 = ssub.s32 %s10, 2
    %s23 = sadd.s32 1, %s18
    %p24 = scmp.ge.s32.totalorder %s23, 2
    %s25 = scalar_select %p24, 0, %s23
    %s26 = sadd.s32 1, %s17
    %s27 = scalar_select %p24, %s26, %s17
    %p28 = scmp.ge.s32.totalorder %s27, 2
    %s29 = scalar_select %p28, 0, %s27
    %s31 = sadd.s32 %s30, 1
    %p34 = scmp.eq.s32.totalorder %s10, 3
    %p35 = scmp.ne.s32.totalorder %s30, %s32
    %p36 = scmp.eq.s32.totalorder %s10, 0
    %p37 = por %p35, %p36
    %p38 = scmp.ne.s32.totalorder %s30, %s32
    %p39 = scmp.eq.s32.totalorder %s15, 3
    %p40 = por %p38, %p39
    %p41 = scmp.ne.s32.totalorder %s32, %s33
    %p42 = scmp.eq.s32.totalorder %s15, 0
    %p43 = por %p41, %p42
    %p44 = scmp.ne.s32.totalorder %s32, %s33
    %p45 = scmp.eq.s32.totalorder %s16, 3
    %p46 = por %p44, %p45
    %p48 = scmp.ne.s32.totalorder %s33, %s47
    %p49 = scmp.eq.s32.totalorder %s16, 0
    %p50 = por %p48, %p49
    %s51 = ssub.s32 %s17, %s29
    %s52 = ssub.s32 %s18, %s25
    %s53 = sor.u32 %s51, %s52
    %p54 = scmp.eq.s32.totalorder %s53, 0
    %s56 = sadd.s32 %s55, 1
    %s57 = scalar_select %p54, %s55, %s56
    %p60 = pneg %p54
    %p61 = scmp.eq.s32.totalorder %s10, 3
    %p62 = por %p60, %p61
    %p63 = scmp.ne.s32.totalorder %s55, %s58
    %p64 = scmp.eq.s32.totalorder %s10, 0
    %p65 = por %p63, %p64
    %p66 = scmp.ne.s32.totalorder %s55, %s58
    %p67 = scmp.eq.s32.totalorder %s15, 3
    %p68 = por %p66, %p67
    %p69 = scmp.ne.s32.totalorder %s58, %s59
    %p70 = scmp.eq.s32.totalorder %s15, 0
    %p71 = por %p69, %p70
    %p72 = scmp.ne.s32.totalorder %s58, %s59
    %p73 = scmp.eq.s32.totalorder %s16, 3
    %p74 = por %p72, %p73
    %p76 = scmp.ne.s32.totalorder %s59, %s75
    %p77 = scmp.eq.s32.totalorder %s16, 0
    %p78 = por %p76, %p77
    %s79 = ssub.s32 %s17, %s29
    %s80 = ssub.s32 %s18, %s25
    %s81 = sor.u32 %s79, %s80
    %p82 = scmp.eq.s32.totalorder %s81, 0
    %s84 = sadd.s32 %s83, 1
    %s85 = scalar_select %p82, %s83, %s84
    %p88 = pneg %p82
    %p89 = scmp.eq.s32.totalorder %s10, 3
    %p90 = por %p88, %p89
    %p91 = scmp.ne.s32.totalorder %s83, %s86
    %p92 = scmp.eq.s32.totalorder %s10, 0
    %p93 = por %p91, %p92
    %p94 = scmp.ne.s32.totalorder %s83, %s86
    %p95 = scmp.eq.s32.totalorder %s15, 3
    %p96 = por %p94, %p95
    %p97 = scmp.ne.s32.totalorder %s86, %s87
    %p98 = scmp.eq.s32.totalorder %s15, 0
    %p99 = por %p97, %p98
    %p100 = scmp.ne.s32.totalorder %s86, %s87
    %p101 = scmp.eq.s32.totalorder %s16, 3
    %p102 = por %p100, %p101
    %p104 = scmp.ne.s32.totalorder %s87, %s103
    %p105 = scmp.eq.s32.totalorder %s16, 0
    %p106 = por %p104, %p105
    %s107 = ssub.s32 %s17, %s29
    %s108 = ssub.s32 %s18, %s25
    %s109 = sor.u32 %s107, %s108
    %p110 = scmp.eq.s32.totalorder %s109, 0
    %s112 = sadd.s32 %s111, 1
    %s113 = scalar_select %p110, %s111, %s112
    %p116 = pneg %p110
    %p117 = scmp.eq.s32.totalorder %s10, 3
    %p118 = por %p116, %p117
    %p119 = scmp.ne.s32.totalorder %s111, %s114
    %p120 = scmp.eq.s32.totalorder %s10, 0
    %p121 = por %p119, %p120
    %p122 = scmp.ne.s32.totalorder %s111, %s114
    %p123 = scmp.eq.s32.totalorder %s15, 3
    %p124 = por %p122, %p123
    %p125 = scmp.ne.s32.totalorder %s114, %s115
    %p126 = scmp.eq.s32.totalorder %s15, 0
    %p127 = por %p125, %p126
    %p128 = scmp.ne.s32.totalorder %s114, %s115
    %p129 = scmp.eq.s32.totalorder %s16, 3
    %p130 = por %p128, %p129
    %p132 = scmp.ne.s32.totalorder %s115, %s131
    %p133 = scmp.eq.s32.totalorder %s16, 0
    %p134 = por %p132, %p133
    %s135 = ssub.s32 %s17, %s29
    %s136 = ssub.s32 %s18, %s25
    %s137 = sor.u32 %s135, %s136
    %p138 = scmp.eq.s32.totalorder %s137, 0
    %s140 = sadd.s32 %s139, 1
    %s141 = scalar_select %p138, %s139, %s140
    %p144 = pneg %p138
    %p145 = scmp.eq.s32.totalorder %s10, 3
    %p146 = por %p144, %p145
    %p147 = scmp.ne.s32.totalorder %s139, %s142
    %p148 = scmp.eq.s32.totalorder %s10, 0
    %p149 = por %p147, %p148
    %p150 = scmp.ne.s32.totalorder %s139, %s142
    %p151 = scmp.eq.s32.totalorder %s15, 3
    %p152 = por %p150, %p151
    %p153 = scmp.ne.s32.totalorder %s142, %s143
    %p154 = scmp.eq.s32.totalorder %s15, 0
    %p155 = por %p153, %p154
    %p156 = scmp.ne.s32.totalorder %s142, %s143
    %p157 = scmp.eq.s32.totalorder %s16, 3
    %p158 = por %p156, %p157
    %p160 = scmp.ne.s32.totalorder %s143, %s159
    %p161 = scmp.eq.s32.totalorder %s16, 0
    %p162 = por %p160, %p161
    %p163 = scmp.le.s32.totalorder 1, %s10
    %p164 = scmp.lt.s32.totalorder %s10, 5
    %p165 = pnand %p163, %p164
    %p166 = pneg %p165
    // Predicated region
    $region9: #{bes_forward.17} parent=5 // pred_check
      _
    $region10: #{bes_forward.17} parent=5 // pred_check_branch
      %168 = sbr.rel (%p165) target = $region12
    $region11: #{bes_forward.17} parent=5 // pred_region
      %s169 = ssub.s32 %s10, 1
      // Predicated region
      $region13: #{bes_forward.17} parent=11 // pred_check
        %p170 = pneg %p43
      $region14: #{bes_forward.17} parent=11 // pred_check_branch
        %172 = sbr.rel (%p170) target = $region16
      $region15: #{bes_forward.17} parent=11 // pred_region
        _
      $region16: #{bes_forward.17} parent=11 // pred_fallthru
        _
    $region12: #{bes_forward.17} parent=5 // pred_fallthru
      _
    %p173 = scmp.lt.s32.totalorder %s10, 4
    // Predicated region
    $region17: #{bes_forward.17} parent=5 // pred_check
      %p174 = pneg %p173
    $region18: #{bes_forward.17} parent=5 // pred_check_branch
      %176 = sbr.rel (%p174) target = $region20
    $region19: #{bes_forward.17} parent=5 // pred_region
      // Predicated region
      $region21: #{bes_forward.17} parent=19 // pred_check
        %p177 = pneg %p65
      $region22: #{bes_forward.17} parent=19 // pred_check_branch
        %179 = sbr.rel (%p177) target = $region24
      $region23: #{bes_forward.17} parent=19 // pred_region
        %s180 = smul.u32 8, %s18
        %p181 = scmp.lt.s32.totalorder %s17, 1
        %s182 = scalar_select %p181, %s17, 1
        %p183 = scmp.lt.s32.totalorder %s180, 15
        %s184 = scalar_select %p183, %s180, 15
        %s185 = smul.addr %s182, 16
        %s186 = sadd.s32 %s184, %s185
        %s187 = smul.addr %s186, 4
        %s188 = scalar_lea.vmem %s1, %s187
        %s189 = smul.u32 8, %s18
      $region24: #{bes_forward.17} parent=19 // pred_fallthru
        _
      // Predicated region
      $region25: #{bes_forward.17} parent=19 // pred_check
        %p190 = pneg %p93
      $region26: #{bes_forward.17} parent=19 // pred_check_branch
        %192 = sbr.rel (%p190) target = $region28
      $region27: #{bes_forward.17} parent=19 // pred_region
        %s193 = smul.u32 8, %s18
        %p194 = scmp.lt.s32.totalorder %s17, 1
        %s195 = scalar_select %p194, %s17, 1
        %p196 = scmp.lt.s32.totalorder %s193, 15
        %s197 = scalar_select %p196, %s193, 15
        %s198 = smul.addr %s197, 2
        %s199 = smul.addr %s195, 32
        %s200 = sadd.s32 %s198, %s199
        %s201 = smul.addr %s200, 8
        %s202 = scalar_lea.vmem %s2, %s201
        %s203 = smul.u32 8, %s18
      $region28: #{bes_forward.17} parent=19 // pred_fallthru
        _
      // Predicated region
      $region29: #{bes_forward.17} parent=19 // pred_check
        %p204 = pneg %p121
      $region30: #{bes_forward.17} parent=19 // pred_check_branch
        %206 = sbr.rel (%p204) target = $region32
      $region31: #{bes_forward.17} parent=19 // pred_region
        %s207 = smul.u32 8, %s18
        %p208 = scmp.lt.s32.totalorder %s17, 1
        %s209 = scalar_select %p208, %s17, 1
        %p210 = scmp.lt.s32.totalorder %s207, 15
        %s211 = scalar_select %p210, %s207, 15
        %s212 = smul.addr %s211, 2
        %s213 = smul.addr %s209, 32
        %s214 = sadd.s32 %s212, %s213
        %s215 = smul.addr %s214, 8
        %s216 = scalar_lea.vmem %s3, %s215
        %s217 = smul.u32 8, %s18
      $region32: #{bes_forward.17} parent=19 // pred_fallthru
        _
    $region20: #{bes_forward.17} parent=5 // pred_fallthru
      _
    %p218 = scmp.le.s32.totalorder 1, %s10
    %p219 = scmp.lt.s32.totalorder %s10, 5
    %p220 = pnand %p218, %p219
    %p221 = pneg %p220
    // Predicated region
    $region33: #{bes_forward.17} parent=5 // pred_check
      _
    $region34: #{bes_forward.17} parent=5 // pred_check_branch
      %223 = sbr.rel (%p220) target = $region36
    $region35: #{bes_forward.17} parent=5 // pred_region
      %s224 = ssub.s32 %s10, 1
      %p225 = pneg %p43
      %p226 = pneg %p40
      %s227 = smul.u32 8, %s20
      %p228 = scmp.lt.s32.totalorder %s19, 1
      %s229 = scalar_select %p228, %s19, 1
      %p230 = scmp.lt.s32.totalorder %s227, 15
      %s231 = scalar_select %p230, %s227, 15
      %s232 = smul.addr %s229, 16
      %s233 = sadd.s32 %s231, %s232
      %s234 = smul.addr %s233, 4
      %s235 = scalar_lea.vmem %s1, %s234
      %p236 = pneg %p71
      %p237 = pneg %p68
      %s238 = smul.u32 8, %s20
      %p239 = scmp.lt.s32.totalorder %s19, 1
      %s240 = scalar_select %p239, %s19, 1
      %p241 = scmp.lt.s32.totalorder %s238, 15
      %s242 = scalar_select %p241, %s238, 15
      %s243 = smul.addr %s242, 2
      %s244 = smul.addr %s240, 32
      %s245 = sadd.s32 %s243, %s244
      %s246 = smul.addr %s245, 8
      %s247 = scalar_lea.vmem %s2, %s246
      %p248 = pneg %p99
      %p249 = pneg %p96
      %s250 = smul.u32 8, %s20
      %p251 = scmp.lt.s32.totalorder %s19, 1
      %s252 = scalar_select %p251, %s19, 1
      %p253 = scmp.lt.s32.totalorder %s250, 15
      %s254 = scalar_select %p253, %s250, 15
      %s255 = smul.addr %s254, 2
      %s256 = smul.addr %s252, 32
      %s257 = sadd.s32 %s255, %s256
      %s258 = smul.addr %s257, 8
      %s259 = scalar_lea.vmem %s3, %s258
      %p260 = pneg %p127
      %p261 = pneg %p124
      %p262 = pneg %p155
      %p263 = pneg %p152
      %s264 = smul.u32 8, %s20
      %p265 = scmp.lt.s32.totalorder %s19, 1
      %s266 = scalar_select %p265, %s19, 1
      %p267 = scmp.lt.s32.totalorder %s264, 15
      %s268 = scalar_select %p267, %s264, 15
      %s269 = smul.addr %s268, 2
      %s270 = smul.addr %s266, 32
      %s271 = sadd.s32 %s269, %s270
      %s272 = smul.addr %s271, 8
      %s273 = scalar_lea.vmem %s4, %s272
      %s274 = smul.u32 8, %s20
      %p275 = scmp.lt.s32.totalorder %s19, 1
      %s276 = scalar_select %p275, %s19, 1
      %p277 = scmp.lt.s32.totalorder %s274, 15
      %s278 = scalar_select %p277, %s274, 15
      %s279 = smul.addr %s276, 16
      %s280 = sadd.s32 %s278, %s279
      %s281 = smul.addr %s280, 4
      %s282 = scalar_lea.vmem %s1, %s281
      %s283 = smul.u32 8, %s20
      %s284 = smul.u32 8, %s20
      %p285 = scmp.lt.s32.totalorder %s19, 1
      %s286 = scalar_select %p285, %s19, 1
      %p287 = scmp.lt.s32.totalorder %s284, 15
      %s288 = scalar_select %p287, %s284, 15
      %s289 = smul.addr %s288, 2
      %s290 = smul.addr %s286, 32
      %s291 = sadd.s32 %s289, %s290
      %s292 = smul.addr %s291, 8
      %s293 = scalar_lea.vmem %s2, %s292
      %s294 = smul.u32 8, %s20
      %s295 = smul.u32 8, %s20
      %p296 = scmp.lt.s32.totalorder %s19, 1
      %s297 = scalar_select %p296, %s19, 1
      %p298 = scmp.lt.s32.totalorder %s295, 15
      %s299 = scalar_select %p298, %s295, 15
      %s300 = smul.addr %s299, 2
      %s301 = smul.addr %s297, 32
      %s302 = sadd.s32 %s300, %s301
      %s303 = smul.addr %s302, 8
      %s304 = scalar_lea.vmem %s3, %s303
      %s305 = smul.u32 8, %s20
      %s306 = smul.u32 8, %s20
      %p307 = scmp.lt.s32.totalorder %s19, 1
      %s308 = scalar_select %p307, %s19, 1
      %p309 = scmp.lt.s32.totalorder %s306, 15
      %s310 = scalar_select %p309, %s306, 15
      %s311 = smul.addr %s310, 2
      %s312 = smul.addr %s308, 32
      %s313 = sadd.s32 %s311, %s312
      %s314 = smul.addr %s313, 8
      %s315 = scalar_lea.vmem %s4, %s314
      %s316 = smul.u32 8, %s20
      %v318 = vld [vmem:[%s0] sm:$0xf]
      %v319 = vld [vmem:[%s0 + $0x4] sm:$0xf]
      %v320 = vld [vmem:[%s282] sm:$0xf]
      %v323 = vunpack.c.l.b16 %v318
      %v324 = vunpack.c.l.b16 %v319
      %v325 = vpack.c.b16 %v324, %v323
      %vm326 = vcmask 64512
      %v328 = vsel %vm326, %v325, 0
      %vm330 = vcmask 1043456
      %v332 = vsel %vm330, %v320, 0
      %334 = vmatprep.subr.bf16.mxu0 0
      %335 = vmatpush1.bf16.msra.mxu0 0
      %336 = vmatprep.subr.bf16.mxu0 0
      %337 = vmatpush1.bf16.msra.mxu0 0
      %338 = vmatprep.subr.bf16.mxu0 0
      %339 = vmatpush1.bf16.msra.mxu0 0
      %340 = vmatprep.subr.bf16.mxu0 0
      %341 = vmatpush1.bf16.msra.mxu0 0
      %342 = vmatprep.subr.bf16.mxu0 0
      %343 = vmatpush1.bf16.msra.mxu0 0
      %344 = vmatprep.subr.bf16.mxu0 0
      %345 = vmatpush1.bf16.msra.mxu0 0
      %346 = vmatprep.subr.bf16.mxu0 0
      %347 = vmatpush1.bf16.msra.mxu0 0
      %348 = vmatprep.subr.bf16.mxu0 0
      %349 = vmatpush1.bf16.msra.mxu0 %v332
      %350 = vmatprep.subr.bf16.mxu0 0
      %351 = vmatpush2.bf16.msra.mxu0 0
      %352 = vmatprep.subr.bf16.mxu0 0
      %353 = vmatpush2.bf16.msra.mxu0 0
      %354 = vmatprep.subr.bf16.mxu0 0
      %355 = vmatpush2.bf16.msra.mxu0 0
      %356 = vmatprep.subr.bf16.mxu0 0
      %357 = vmatpush2.bf16.msra.mxu0 0
      %358 = vmatprep.subr.bf16.mxu0 0
      %359 = vmatpush2.bf16.msra.mxu0 0
      %360 = vmatprep.subr.bf16.mxu0 0
      %361 = vmatpush2.bf16.msra.mxu0 0
      %362 = vmatprep.subr.bf16.mxu0 0
      %363 = vmatpush2.bf16.msra.mxu0 0
      %364 = vmatprep.subr.bf16.mxu0 0
      %365 = vmatpush2.bf16.msra.mxu0 0
      %366 = vmatprep.mubr.bf16.mxu0 0
      %367 = vmatmul.mubr.bf16.gmra.mxu0 %v328
      %v368 = vpop.f32.mrf.mxu0
      %v369 = vadd.f32 0.0, %v368
      %v370 = vpop.f32.mrf.mxu0
      %v371 = vpop.f32.mrf.mxu0
      %v372 = vadd.f32 0.0, %v371
      %v373 = vpop.f32.mrf.mxu0
      %374 = vdwg.mxu0
      %v375 = vld [vmem:[%s293] sm:$0xff]
      %v376 = vld [vmem:[%s293 + $0x8] sm:$0xff]
      %v377 = vld [vmem:[%s304] sm:$0xff]
      %v378 = vld [vmem:[%s304 + $0x8] sm:$0xff]
      %v379 = vmul.f32 %v377, %v375
      %v380 = vmul.f32 %v378, %v376
      %v381 = vadd.f32 %v377, %v379
      %v382 = vadd.f32 %v378, %v380
      %v383 = vmul.f32 %v369, %v375
      %v384 = vmul.f32 %v372, %v376
      %v385 = vadd.f32 %v381, %v383
      %v386 = vadd.f32 %v382, %v384
      %387 = vst [vmem:[%s315] sm:$0xff] %v385
      %388 = vst [vmem:[%s315 + $0x8] sm:$0xff] %v386
      %s389 = scalar_lea.vmem %s282, 4
      %v390 = vld [vmem:[%s389] sm:$0xf]
      %v392 = vsel %vm330, %v390, 0
      %394 = vmatprep.subr.bf16.mxu0 0
      %395 = vmatpush1.bf16.msra.mxu0 0
      %396 = vmatprep.subr.bf16.mxu0 0
      %397 = vmatpush1.bf16.msra.mxu0 0
      %398 = vmatprep.subr.bf16.mxu0 0
      %399 = vmatpush1.bf16.msra.mxu0 0
      %400 = vmatprep.subr.bf16.mxu0 0
      %401 = vmatpush1.bf16.msra.mxu0 0
      %402 = vmatprep.subr.bf16.mxu0 0
      %403 = vmatpush1.bf16.msra.mxu0 0
      %404 = vmatprep.subr.bf16.mxu0 0
      %405 = vmatpush1.bf16.msra.mxu0 0
      %406 = vmatprep.subr.bf16.mxu0 0
      %407 = vmatpush1.bf16.msra.mxu0 0
      %408 = vmatprep.subr.bf16.mxu0 0
      %409 = vmatpush1.bf16.msra.mxu0 %v392
      %410 = vmatprep.subr.bf16.mxu0 0
      %411 = vmatpush2.bf16.msra.mxu0 0
      %412 = vmatprep.subr.bf16.mxu0 0
      %413 = vmatpush2.bf16.msra.mxu0 0
      %414 = vmatprep.subr.bf16.mxu0 0
      %415 = vmatpush2.bf16.msra.mxu0 0
      %416 = vmatprep.subr.bf16.mxu0 0
      %417 = vmatpush2.bf16.msra.mxu0 0
      %418 = vmatprep.subr.bf16.mxu0 0
      %419 = vmatpush2.bf16.msra.mxu0 0
      %420 = vmatprep.subr.bf16.mxu0 0
      %421 = vmatpush2.bf16.msra.mxu0 0
      %422 = vmatprep.subr.bf16.mxu0 0
      %423 = vmatpush2.bf16.msra.mxu0 0
      %424 = vmatprep.subr.bf16.mxu0 0
      %425 = vmatpush2.bf16.msra.mxu0 0
      %426 = vmatprep.mubr.bf16.mxu0 0
      %427 = vmatmul.mubr.bf16.gmra.mxu0 %v328
      %v428 = vpop.f32.mrf.mxu0
      %v429 = vadd.f32 0.0, %v428
      %v430 = vpop.f32.mrf.mxu0
      %v431 = vpop.f32.mrf.mxu0
      %v432 = vadd.f32 0.0, %v431
      %v433 = vpop.f32.mrf.mxu0
      %434 = vdwg.mxu0
      %s435 = scalar_lea.vmem %s293, 16
      %v436 = vld [vmem:[%s435] sm:$0xff]
      %v437 = vld [vmem:[%s435 + $0x8] sm:$0xff]
      %s438 = scalar_lea.vmem %s304, 16
      %v439 = vld [vmem:[%s438] sm:$0xff]
      %v440 = vld [vmem:[%s438 + $0x8] sm:$0xff]
      %v441 = vmul.f32 %v439, %v436
      %v442 = vmul.f32 %v440, %v437
      %v443 = vadd.f32 %v439, %v441
      %v444 = vadd.f32 %v440, %v442
      %v445 = vmul.f32 %v429, %v436
      %v446 = vmul.f32 %v432, %v437
      %v447 = vadd.f32 %v443, %v445
      %v448 = vadd.f32 %v444, %v446
      %s449 = scalar_lea.vmem %s315, 16
      %450 = vst [vmem:[%s449] sm:$0xff] %v447
      %451 = vst [vmem:[%s449 + $0x8] sm:$0xff] %v448
      %s452 = scalar_lea.vmem %s282, 8
      %v453 = vld [vmem:[%s452] sm:$0xf]
      %v455 = vsel %vm330, %v453, 0
      %457 = vmatprep.subr.bf16.mxu0 0
      %458 = vmatpush1.bf16.msra.mxu0 0
      %459 = vmatprep.subr.bf16.mxu0 0
      %460 = vmatpush1.bf16.msra.mxu0 0
      %461 = vmatprep.subr.bf16.mxu0 0
      %462 = vmatpush1.bf16.msra.mxu0 0
      %463 = vmatprep.subr.bf16.mxu0 0
      %464 = vmatpush1.bf16.msra.mxu0 0
      %465 = vmatprep.subr.bf16.mxu0 0
      %466 = vmatpush1.bf16.msra.mxu0 0
      %467 = vmatprep.subr.bf16.mxu0 0
      %468 = vmatpush1.bf16.msra.mxu0 0
      %469 = vmatprep.subr.bf16.mxu0 0
      %470 = vmatpush1.bf16.msra.mxu0 0
      %471 = vmatprep.subr.bf16.mxu0 0
      %472 = vmatpush1.bf16.msra.mxu0 %v455
      %473 = vmatprep.subr.bf16.mxu0 0
      %474 = vmatpush2.bf16.msra.mxu0 0
      %475 = vmatprep.subr.bf16.mxu0 0
      %476 = vmatpush2.bf16.msra.mxu0 0
      %477 = vmatprep.subr.bf16.mxu0 0
      %478 = vmatpush2.bf16.msra.mxu0 0
      %479 = vmatprep.subr.bf16.mxu0 0
      %480 = vmatpush2.bf16.msra.mxu0 0
      %481 = vmatprep.subr.bf16.mxu0 0
      %482 = vmatpush2.bf16.msra.mxu0 0
      %483 = vmatprep.subr.bf16.mxu0 0
      %484 = vmatpush2.bf16.msra.mxu0 0
      %485 = vmatprep.subr.bf16.mxu0 0
      %486 = vmatpush2.bf16.msra.mxu0 0
      %487 = vmatprep.subr.bf16.mxu0 0
      %488 = vmatpush2.bf16.msra.mxu0 0
      %489 = vmatprep.mubr.bf16.mxu0 0
      %490 = vmatmul.mubr.bf16.gmra.mxu0 %v328
      %v491 = vpop.f32.mrf.mxu0
      %v492 = vadd.f32 0.0, %v491
      %v493 = vpop.f32.mrf.mxu0
      %v494 = vpop.f32.mrf.mxu0
      %v495 = vadd.f32 0.0, %v494
      %v496 = vpop.f32.mrf.mxu0
      %497 = vdwg.mxu0
      %s498 = scalar_lea.vmem %s293, 32
      %v499 = vld [vmem:[%s498] sm:$0xff]
      %v500 = vld [vmem:[%s498 + $0x8] sm:$0xff]
      %s501 = scalar_lea.vmem %s304, 32
      %v502 = vld [vmem:[%s501] sm:$0xff]
      %v503 = vld [vmem:[%s501 + $0x8] sm:$0xff]
      %v504 = vmul.f32 %v502, %v499
      %v505 = vmul.f32 %v503, %v500
      %v506 = vadd.f32 %v502, %v504
      %v507 = vadd.f32 %v503, %v505
      %v508 = vmul.f32 %v492, %v499
      %v509 = vmul.f32 %v495, %v500
      %v510 = vadd.f32 %v506, %v508
      %v511 = vadd.f32 %v507, %v509
      %s512 = scalar_lea.vmem %s315, 32
      %513 = vst [vmem:[%s512] sm:$0xff] %v510
      %514 = vst [vmem:[%s512 + $0x8] sm:$0xff] %v511
      %s515 = scalar_lea.vmem %s282, 12
      %v516 = vld [vmem:[%s515] sm:$0xf]
      %v518 = vsel %vm330, %v516, 0
      %520 = vmatprep.subr.bf16.mxu0 0
      %521 = vmatpush1.bf16.msra.mxu0 0
      %522 = vmatprep.subr.bf16.mxu0 0
      %523 = vmatpush1.bf16.msra.mxu0 0
      %524 = vmatprep.subr.bf16.mxu0 0
      %525 = vmatpush1.bf16.msra.mxu0 0
      %526 = vmatprep.subr.bf16.mxu0 0
      %527 = vmatpush1.bf16.msra.mxu0 0
      %528 = vmatprep.subr.bf16.mxu0 0
      %529 = vmatpush1.bf16.msra.mxu0 0
      %530 = vmatprep.subr.bf16.mxu0 0
      %531 = vmatpush1.bf16.msra.mxu0 0
      %532 = vmatprep.subr.bf16.mxu0 0
      %533 = vmatpush1.bf16.msra.mxu0 0
      %534 = vmatprep.subr.bf16.mxu0 0
      %535 = vmatpush1.bf16.msra.mxu0 %v518
      %536 = vmatprep.subr.bf16.mxu0 0
      %537 = vmatpush2.bf16.msra.mxu0 0
      %538 = vmatprep.subr.bf16.mxu0 0
      %539 = vmatpush2.bf16.msra.mxu0 0
      %540 = vmatprep.subr.bf16.mxu0 0
      %541 = vmatpush2.bf16.msra.mxu0 0
      %542 = vmatprep.subr.bf16.mxu0 0
      %543 = vmatpush2.bf16.msra.mxu0 0
      %544 = vmatprep.subr.bf16.mxu0 0
      %545 = vmatpush2.bf16.msra.mxu0 0
      %546 = vmatprep.subr.bf16.mxu0 0
      %547 = vmatpush2.bf16.msra.mxu0 0
      %548 = vmatprep.subr.bf16.mxu0 0
      %549 = vmatpush2.bf16.msra.mxu0 0
      %550 = vmatprep.subr.bf16.mxu0 0
      %551 = vmatpush2.bf16.msra.mxu0 0
      %552 = vmatprep.mubr.bf16.mxu0 0
      %553 = vmatmul.mubr.bf16.gmra.mxu0 %v328
      %v554 = vpop.f32.mrf.mxu0
      %v555 = vadd.f32 0.0, %v554
      %v556 = vpop.f32.mrf.mxu0
      %v557 = vpop.f32.mrf.mxu0
      %v558 = vadd.f32 0.0, %v557
      %v559 = vpop.f32.mrf.mxu0
      %560 = vdwg.mxu0
      %s561 = scalar_lea.vmem %s293, 48
      %v562 = vld [vmem:[%s561] sm:$0xff]
      %v563 = vld [vmem:[%s561 + $0x8] sm:$0xff]
      %s564 = scalar_lea.vmem %s304, 48
      %v565 = vld [vmem:[%s564] sm:$0xff]
      %v566 = vld [vmem:[%s564 + $0x8] sm:$0xff]
      %v567 = vmul.f32 %v565, %v562
      %v568 = vmul.f32 %v566, %v563
      %v569 = vadd.f32 %v565, %v567
      %v570 = vadd.f32 %v566, %v568
      %v571 = vmul.f32 %v555, %v562
      %v572 = vmul.f32 %v558, %v563
      %v573 = vadd.f32 %v569, %v571
      %v574 = vadd.f32 %v570, %v572
      %s575 = scalar_lea.vmem %s315, 48
      %576 = vst [vmem:[%s575] sm:$0xff] %v573
      %577 = vst [vmem:[%s575 + $0x8] sm:$0xff] %v574
      %s578 = scalar_lea.vmem %s282, 16
      %v579 = vld [vmem:[%s578] sm:$0xf]
      %v581 = vsel %vm330, %v579, 0
      %583 = vmatprep.subr.bf16.mxu0 0
      %584 = vmatpush1.bf16.msra.mxu0 0
      %585 = vmatprep.subr.bf16.mxu0 0
      %586 = vmatpush1.bf16.msra.mxu0 0
      %587 = vmatprep.subr.bf16.mxu0 0
      %588 = vmatpush1.bf16.msra.mxu0 0
      %589 = vmatprep.subr.bf16.mxu0 0
      %590 = vmatpush1.bf16.msra.mxu0 0
      %591 = vmatprep.subr.bf16.mxu0 0
      %592 = vmatpush1.bf16.msra.mxu0 0
      %593 = vmatprep.subr.bf16.mxu0 0
      %594 = vmatpush1.bf16.msra.mxu0 0
      %595 = vmatprep.subr.bf16.mxu0 0
      %596 = vmatpush1.bf16.msra.mxu0 0
      %597 = vmatprep.subr.bf16.mxu0 0
      %598 = vmatpush1.bf16.msra.mxu0 %v581
      %599 = vmatprep.subr.bf16.mxu0 0
      %600 = vmatpush2.bf16.msra.mxu0 0
      %601 = vmatprep.subr.bf16.mxu0 0
      %602 = vmatpush2.bf16.msra.mxu0 0
      %603 = vmatprep.subr.bf16.mxu0 0
      %604 = vmatpush2.bf16.msra.mxu0 0
      %605 = vmatprep.subr.bf16.mxu0 0
      %606 = vmatpush2.bf16.msra.mxu0 0
      %607 = vmatprep.subr.bf16.mxu0 0
      %608 = vmatpush2.bf16.msra.mxu0 0
      %609 = vmatprep.subr.bf16.mxu0 0
      %610 = vmatpush2.bf16.msra.mxu0 0
      %611 = vmatprep.subr.bf16.mxu0 0
      %612 = vmatpush2.bf16.msra.mxu0 0
      %613 = vmatprep.subr.bf16.mxu0 0
      %614 = vmatpush2.bf16.msra.mxu0 0
      %615 = vmatprep.mubr.bf16.mxu0 0
      %616 = vmatmul.mubr.bf16.gmra.mxu0 %v328
      %v617 = vpop.f32.mrf.mxu0
      %v618 = vadd.f32 0.0, %v617
      %v619 = vpop.f32.mrf.mxu0
      %v620 = vpop.f32.mrf.mxu0
      %v621 = vadd.f32 0.0, %v620
      %v622 = vpop.f32.mrf.mxu0
      %623 = vdwg.mxu0
      %s624 = scalar_lea.vmem %s293, 64
      %v625 = vld [vmem:[%s624] sm:$0xff]
      %v626 = vld [vmem:[%s624 + $0x8] sm:$0xff]
      %s627 = scalar_lea.vmem %s304, 64
      %v628 = vld [vmem:[%s627] sm:$0xff]
      %v629 = vld [vmem:[%s627 + $0x8] sm:$0xff]
      %v630 = vmul.f32 %v628, %v625
      %v631 = vmul.f32 %v629, %v626
      %v632 = vadd.f32 %v628, %v630
      %v633 = vadd.f32 %v629, %v631
      %v634 = vmul.f32 %v618, %v625
      %v635 = vmul.f32 %v621, %v626
      %v636 = vadd.f32 %v632, %v634
      %v637 = vadd.f32 %v633, %v635
      %s638 = scalar_lea.vmem %s315, 64
      %639 = vst [vmem:[%s638] sm:$0xff] %v636
      %640 = vst [vmem:[%s638 + $0x8] sm:$0xff] %v637
      %s641 = scalar_lea.vmem %s282, 20
      %v642 = vld [vmem:[%s641] sm:$0xf]
      %v644 = vsel %vm330, %v642, 0
      %646 = vmatprep.subr.bf16.mxu0 0
      %647 = vmatpush1.bf16.msra.mxu0 0
      %648 = vmatprep.subr.bf16.mxu0 0
      %649 = vmatpush1.bf16.msra.mxu0 0
      %650 = vmatprep.subr.bf16.mxu0 0
      %651 = vmatpush1.bf16.msra.mxu0 0
      %652 = vmatprep.subr.bf16.mxu0 0
      %653 = vmatpush1.bf16.msra.mxu0 0
      %654 = vmatprep.subr.bf16.mxu0 0
      %655 = vmatpush1.bf16.msra.mxu0 0
      %656 = vmatprep.subr.bf16.mxu0 0
      %657 = vmatpush1.bf16.msra.mxu0 0
      %658 = vmatprep.subr.bf16.mxu0 0
      %659 = vmatpush1.bf16.msra.mxu0 0
      %660 = vmatprep.subr.bf16.mxu0 0
      %661 = vmatpush1.bf16.msra.mxu0 %v644
      %662 = vmatprep.subr.bf16.mxu0 0
      %663 = vmatpush2.bf16.msra.mxu0 0
      %664 = vmatprep.subr.bf16.mxu0 0
      %665 = vmatpush2.bf16.msra.mxu0 0
      %666 = vmatprep.subr.bf16.mxu0 0
      %667 = vmatpush2.bf16.msra.mxu0 0
      %668 = vmatprep.subr.bf16.mxu0 0
      %669 = vmatpush2.bf16.msra.mxu0 0
      %670 = vmatprep.subr.bf16.mxu0 0
      %671 = vmatpush2.bf16.msra.mxu0 0
      %672 = vmatprep.subr.bf16.mxu0 0
      %673 = vmatpush2.bf16.msra.mxu0 0
      %674 = vmatprep.subr.bf16.mxu0 0
      %675 = vmatpush2.bf16.msra.mxu0 0
      %676 = vmatprep.subr.bf16.mxu0 0
      %677 = vmatpush2.bf16.msra.mxu0 0
      %678 = vmatprep.mubr.bf16.mxu0 0
      %679 = vmatmul.mubr.bf16.gmra.mxu0 %v328
      %v680 = vpop.f32.mrf.mxu0
      %v681 = vadd.f32 0.0, %v680
      %v682 = vpop.f32.mrf.mxu0
      %v683 = vpop.f32.mrf.mxu0
      %v684 = vadd.f32 0.0, %v683
      %v685 = vpop.f32.mrf.mxu0
      %686 = vdwg.mxu0
      %s687 = scalar_lea.vmem %s293, 80
      %v688 = vld [vmem:[%s687] sm:$0xff]
      %v689 = vld [vmem:[%s687 + $0x8] sm:$0xff]
      %s690 = scalar_lea.vmem %s304, 80
      %v691 = vld [vmem:[%s690] sm:$0xff]
      %v692 = vld [vmem:[%s690 + $0x8] sm:$0xff]
      %v693 = vmul.f32 %v691, %v688
      %v694 = vmul.f32 %v692, %v689
      %v695 = vadd.f32 %v691, %v693
      %v696 = vadd.f32 %v692, %v694
      %v697 = vmul.f32 %v681, %v688
      %v698 = vmul.f32 %v684, %v689
      %v699 = vadd.f32 %v695, %v697
      %v700 = vadd.f32 %v696, %v698
      %s701 = scalar_lea.vmem %s315, 80
      %702 = vst [vmem:[%s701] sm:$0xff] %v699
      %703 = vst [vmem:[%s701 + $0x8] sm:$0xff] %v700
      %s704 = scalar_lea.vmem %s282, 24
      %v705 = vld [vmem:[%s704] sm:$0xf]
      %v707 = vsel %vm330, %v705, 0
      %709 = vmatprep.subr.bf16.mxu0 0
      %710 = vmatpush1.bf16.msra.mxu0 0
      %711 = vmatprep.subr.bf16.mxu0 0
      %712 = vmatpush1.bf16.msra.mxu0 0
      %713 = vmatprep.subr.bf16.mxu0 0
      %714 = vmatpush1.bf16.msra.mxu0 0
      %715 = vmatprep.subr.bf16.mxu0 0
      %716 = vmatpush1.bf16.msra.mxu0 0
      %717 = vmatprep.subr.bf16.mxu0 0
      %718 = vmatpush1.bf16.msra.mxu0 0
      %719 = vmatprep.subr.bf16.mxu0 0
      %720 = vmatpush1.bf16.msra.mxu0 0
      %721 = vmatprep.subr.bf16.mxu0 0
      %722 = vmatpush1.bf16.msra.mxu0 0
      %723 = vmatprep.subr.bf16.mxu0 0
      %724 = vmatpush1.bf16.msra.mxu0 %v707
      %725 = vmatprep.subr.bf16.mxu0 0
      %726 = vmatpush2.bf16.msra.mxu0 0
      %727 = vmatprep.subr.bf16.mxu0 0
      %728 = vmatpush2.bf16.msra.mxu0 0
      %729 = vmatprep.subr.bf16.mxu0 0
      %730 = vmatpush2.bf16.msra.mxu0 0
      %731 = vmatprep.subr.bf16.mxu0 0
      %732 = vmatpush2.bf16.msra.mxu0 0
      %733 = vmatprep.subr.bf16.mxu0 0
      %734 = vmatpush2.bf16.msra.mxu0 0
      %735 = vmatprep.subr.bf16.mxu0 0
      %736 = vmatpush2.bf16.msra.mxu0 0
      %737 = vmatprep.subr.bf16.mxu0 0
      %738 = vmatpush2.bf16.msra.mxu0 0
      %739 = vmatprep.subr.bf16.mxu0 0
      %740 = vmatpush2.bf16.msra.mxu0 0
      %741 = vmatprep.mubr.bf16.mxu0 0
      %742 = vmatmul.mubr.bf16.gmra.mxu0 %v328
      %v743 = vpop.f32.mrf.mxu0
      %v744 = vadd.f32 0.0, %v743
      %v745 = vpop.f32.mrf.mxu0
      %v746 = vpop.f32.mrf.mxu0
      %v747 = vadd.f32 0.0, %v746
      %v748 = vpop.f32.mrf.mxu0
      %749 = vdwg.mxu0
      %s750 = scalar_lea.vmem %s293, 96
      %v751 = vld [vmem:[%s750] sm:$0xff]
      %v752 = vld [vmem:[%s750 + $0x8] sm:$0xff]
      %s753 = scalar_lea.vmem %s304, 96
      %v754 = vld [vmem:[%s753] sm:$0xff]
      %v755 = vld [vmem:[%s753 + $0x8] sm:$0xff]
      %v756 = vmul.f32 %v754, %v751
      %v757 = vmul.f32 %v755, %v752
      %v758 = vadd.f32 %v754, %v756
      %v759 = vadd.f32 %v755, %v757
      %v760 = vmul.f32 %v744, %v751
      %v761 = vmul.f32 %v747, %v752
      %v762 = vadd.f32 %v758, %v760
      %v763 = vadd.f32 %v759, %v761
      %s764 = scalar_lea.vmem %s315, 96
      %765 = vst [vmem:[%s764] sm:$0xff] %v762
      %766 = vst [vmem:[%s764 + $0x8] sm:$0xff] %v763
      %s767 = scalar_lea.vmem %s282, 28
      %v768 = vld [vmem:[%s767] sm:$0xf]
      %v770 = vsel %vm330, %v768, 0
      %772 = vmatprep.subr.bf16.mxu0 0
      %773 = vmatpush1.bf16.msra.mxu0 0
      %774 = vmatprep.subr.bf16.mxu0 0
      %775 = vmatpush1.bf16.msra.mxu0 0
      %776 = vmatprep.subr.bf16.mxu0 0
      %777 = vmatpush1.bf16.msra.mxu0 0
      %778 = vmatprep.subr.bf16.mxu0 0
      %779 = vmatpush1.bf16.msra.mxu0 0
      %780 = vmatprep.subr.bf16.mxu0 0
      %781 = vmatpush1.bf16.msra.mxu0 0
      %782 = vmatprep.subr.bf16.mxu0 0
      %783 = vmatpush1.bf16.msra.mxu0 0
      %784 = vmatprep.subr.bf16.mxu0 0
      %785 = vmatpush1.bf16.msra.mxu0 0
      %786 = vmatprep.subr.bf16.mxu0 0
      %787 = vmatpush1.bf16.msra.mxu0 %v770
      %788 = vmatprep.subr.bf16.mxu0 0
      %789 = vmatpush2.bf16.msra.mxu0 0
      %790 = vmatprep.subr.bf16.mxu0 0
      %791 = vmatpush2.bf16.msra.mxu0 0
      %792 = vmatprep.subr.bf16.mxu0 0
      %793 = vmatpush2.bf16.msra.mxu0 0
      %794 = vmatprep.subr.bf16.mxu0 0
      %795 = vmatpush2.bf16.msra.mxu0 0
      %796 = vmatprep.subr.bf16.mxu0 0
      %797 = vmatpush2.bf16.msra.mxu0 0
      %798 = vmatprep.subr.bf16.mxu0 0
      %799 = vmatpush2.bf16.msra.mxu0 0
      %800 = vmatprep.subr.bf16.mxu0 0
      %801 = vmatpush2.bf16.msra.mxu0 0
      %802 = vmatprep.subr.bf16.mxu0 0
      %803 = vmatpush2.bf16.msra.mxu0 0
      %804 = vmatprep.mubr.bf16.mxu0 0
      %805 = vmatmul.mubr.bf16.gmra.mxu0 %v328
      %v806 = vpop.f32.mrf.mxu0
      %v807 = vadd.f32 0.0, %v806
      %v808 = vpop.f32.mrf.mxu0
      %v809 = vpop.f32.mrf.mxu0
      %v810 = vadd.f32 0.0, %v809
      %v811 = vpop.f32.mrf.mxu0
      %812 = vdwg.mxu0
      %s813 = scalar_lea.vmem %s293, 112
      %v814 = vld [vmem:[%s813] sm:$0xff]
      %v815 = vld [vmem:[%s813 + $0x8] sm:$0xff]
      %s816 = scalar_lea.vmem %s304, 112
      %v817 = vld [vmem:[%s816] sm:$0xff]
      %v818 = vld [vmem:[%s816 + $0x8] sm:$0xff]
      %v819 = vmul.f32 %v817, %v814
      %v820 = vmul.f32 %v818, %v815
      %v821 = vadd.f32 %v817, %v819
      %v822 = vadd.f32 %v818, %v820
      %v823 = vmul.f32 %v807, %v814
      %v824 = vmul.f32 %v810, %v815
      %v825 = vadd.f32 %v821, %v823
      %v826 = vadd.f32 %v822, %v824
      %s827 = scalar_lea.vmem %s315, 112
      %828 = vst [vmem:[%s827] sm:$0xff] %v825
      %829 = vst [vmem:[%s827 + $0x8] sm:$0xff] %v826
      %s830 = smul.u32 8, %s20
      %p831 = scmp.lt.s32.totalorder %s19, 1
      %s832 = scalar_select %p831, %s19, 1
      %p833 = scmp.lt.s32.totalorder %s830, 15
      %s834 = scalar_select %p833, %s830, 15
      %s835 = smul.addr %s834, 2
      %s836 = smul.addr %s832, 32
      %s837 = sadd.s32 %s835, %s836
      %s838 = smul.addr %s837, 8
      %s839 = scalar_lea.vmem %s4, %s838
      // Predicated region
      $region37: #{bes_forward.17} parent=35 // pred_check
        %p840 = pneg %p152
      $region38: #{bes_forward.17} parent=35 // pred_check_branch
        %842 = sbr.rel (%p840) target = $region40
      $region39: #{bes_forward.17} parent=35 // pred_region
        %s843 = smul.u32 8, %s20
      $region40: #{bes_forward.17} parent=35 // pred_fallthru
        _
    $region36: #{bes_forward.17} parent=5 // pred_fallthru
      _
    %p844 = scmp.le.s32.totalorder 2, %s10
    // Predicated region
    $region41: #{bes_forward.17} parent=5 // pred_check
      %p845 = pneg %p844
    $region42: #{bes_forward.17} parent=5 // pred_check_branch
      %847 = sbr.rel (%p845) target = $region44
    $region43: #{bes_forward.17} parent=5 // pred_region
      %s848 = ssub.s32 %s10, 2
      // Predicated region
      $region45: #{bes_forward.17} parent=43 // pred_check
        %p849 = pneg %p158
      $region46: #{bes_forward.17} parent=43 // pred_check_branch
        %851 = sbr.rel (%p849) target = $region48
      $region47: #{bes_forward.17} parent=43 // pred_region
        %s852 = smul.u32 8, %s22
        %p853 = scmp.lt.s32.totalorder %s21, 1
        %s854 = scalar_select %p853, %s21, 1
        %p855 = scmp.lt.s32.totalorder %s852, 15
        %s856 = scalar_select %p855, %s852, 15
        %s857 = smul.addr %s856, 2
        %s858 = smul.addr %s854, 32
        %s859 = sadd.s32 %s857, %s858
        %s860 = smul.addr %s859, 8
        %s861 = scalar_lea.vmem %s4, %s860
      $region48: #{bes_forward.17} parent=43 // pred_fallthru
        _
    $region44: #{bes_forward.17} parent=5 // pred_fallthru
      _
  $region6: #{bes_forward.17} parent=0 // loop_footer
    %s14 = sadd.s32 1, %s10
  $region7: #{bes_forward.17} parent=0 // loop_footer_branch
    %9 = sbr.rel target = $region3
  $region8: #{bes_forward.17} parent=0 // loop_exit
    _

</llo_original>
